<compile_context>
chip_gen: v6e
topology: v6e:2x2x1
jax: 0.10.0
libtpu: 0.0.40
codegen_flags: <defaults>
</compile_context>

<pallas_src>
import jax
import jax.numpy as jnp
from jax import lax
from jax.experimental import pallas as pl
from jax.experimental.pallas import tpu as pltpu

C_IN = 3
C_OUT = 4
K = 4
STRIDE = 2
PAD = 0


def _convt_tanh_kernel(w_ref, b_ref, x_ref, o_ref, pad_ref):
    """Polyphase ConvTranspose2d(stride=2, pad=0) + tanh.

    w_ref:   (C_IN*C_OUT*K*K,) f32 SMEM  -- PyTorch (ci, co, kh, kw) layout, flat
    b_ref:   (C_OUT,)          f32 SMEM
    x_ref:   (N, C_IN, H, W)   f32 VMEM
    o_ref:   (N, C_OUT, 2, 2, H+1, W+1) f32 VMEM  -- phase-separated output
    pad_ref: (N, C_IN, H+2, W+2) f32 VMEM scratch -- zero-padded copy of x
    """
    n_b, _, h_in, w_in = x_ref.shape
    ho, wo = h_in + 1, w_in + 1  # per-phase output extent (15, 15)

    # Zero-padded input (border of 1 on each side), built once in VMEM.
    pad_ref[...] = jnp.zeros_like(pad_ref)
    pad_ref[:, :, 1:h_in + 1, 1:w_in + 1] = x_ref[...]

    for n in range(n_b):
        # Hoist the 4 shifted (ho, wo) views per input channel.  Each view is
        # reused by all C_OUT * 4 phase accumulators (12 slices total).
        views = [[[pad_ref[n, ci, 1 - dh:1 - dh + ho, 1 - dw:1 - dw + wo]
                   for dw in range(2)]
                  for dh in range(2)]
                 for ci in range(C_IN)]

        for co in range(C_OUT):
            bias_plane = jnp.full((ho, wo), b_ref[co], dtype=jnp.float32)
            for rh in range(2):
                for rw in range(2):
                    acc = bias_plane
                    for ci in range(C_IN):
                        for dh in range(2):
                            for dw in range(2):
                                kh = rh + 2 * dh
                                kw = rw + 2 * dw
                                w = w_ref[((ci * C_OUT + co) * K + kh) * K + kw]
                                acc = acc + w * views[ci][dh][dw]
                    o_ref[n, co, rh, rw] = jnp.tanh(acc)


@jax.jit
def conv_transpose_tanh(x, weight, bias):
    """x: (N, C_IN, H, W) f32; weight: (C_IN, C_OUT, K, K) f32 (PyTorch
    ConvTranspose2d layout); bias: (C_OUT,) f32.  Returns tanh(conv_transpose)."""
    n, cin, h, w = x.shape
    assert cin == C_IN
    ho, wo = h + 1, w + 1
    h_out = (h - 1) * STRIDE - 2 * PAD + K
    w_out = (w - 1) * STRIDE - 2 * PAD + K

    w_flat = weight.reshape(-1).astype(jnp.float32)   # no transpose/flip needed
    b_f32 = bias.astype(jnp.float32)

    out_phase = pl.pallas_call(
        _convt_tanh_kernel,
        out_shape=jax.ShapeDtypeStruct((n, C_OUT, 2, 2, ho, wo), jnp.float32),
        in_specs=[
            pl.BlockSpec(memory_space=pltpu.MemorySpace.SMEM),   # flat weights
            pl.BlockSpec(memory_space=pltpu.MemorySpace.SMEM),   # bias
            pl.BlockSpec(memory_space=pltpu.MemorySpace.VMEM),   # x (whole array)
        ],
        out_specs=pl.BlockSpec(memory_space=pltpu.MemorySpace.VMEM),
        scratch_shapes=[pltpu.VMEM((n, C_IN, h + 2, w + 2), jnp.float32)],
    )(w_flat, b_f32, x.astype(jnp.float32))

    # Interleave phases: y[n, co, 2a+rh, 2b+rw] = out_phase[n, co, rh, rw, a, b]
    y = out_phase.transpose(0, 1, 4, 2, 5, 3).reshape(n, C_OUT, h_out, w_out)
    return y


def _reference(x, weight, bias):
    """Pure-JAX reference (transposed conv as dilated direct conv)."""
    w_conv = jnp.flip(jnp.transpose(weight, (1, 0, 2, 3)), axis=(2, 3))
    pad = K - 1 - PAD
    y = lax.conv_general_dilated(
        x, w_conv,
        window_strides=(1, 1),
        padding=[(pad, pad), (pad, pad)],
        lhs_dilation=(STRIDE, STRIDE),
        dimension_numbers=("NCHW", "OIHW", "NCHW"),
    )
    y = y + bias.reshape(1, C_OUT, 1, 1)
    return jnp.tanh(y)


if __name__ == "__main__":
    key = jax.random.PRNGKey(0)
    kx, kw_, kb = jax.random.split(key, 3)

    # Input matches the module's driver: x1 = torch.randn(1, 3, 14, 14)
    x = jax.random.normal(kx, (1, C_IN, 14, 14), dtype=jnp.float32)
    # PyTorch ConvTranspose2d weight shape: (in_channels, out_channels, K, K)
    fan = C_IN * K * K
    bound = 1.0 / (fan ** 0.5)
    weight = jax.random.uniform(kw_, (C_IN, C_OUT, K, K), jnp.float32, -bound, bound)
    bias = jax.random.uniform(kb, (C_OUT,), jnp.float32, -bound, bound)

    out = conv_transpose_tanh(x, weight, bias)
    out = jax.block_until_ready(out)

    ref = _reference(x, weight, bias)
    assert out.shape == (1, C_OUT, 30, 30), out.shape
    assert jnp.allclose(out, ref, atol=1e-5, rtol=1e-5), "mismatch vs reference"

    print("KERNEL_OK")
</pallas_src>

<mosaic_0001>
module attributes {stable_mosaic.version = 11 : i64} {
  func.func @_convt_tanh_kernel(%arg0: memref<192xf32, #tpu.memory_space<smem>>, %arg1: memref<4xf32, #tpu.memory_space<smem>>, %arg2: memref<1x3x14x14xf32, #tpu.memory_space<vmem>>, %arg3: memref<1x4x2x2x15x15xf32, #tpu.memory_space<vmem>>, %arg4: memref<1x3x16x16xf32, #tpu.memory_space<vmem>>) attributes {dimension_semantics = [], scalar_prefetch = 0 : i64, scratch_operands = 1 : i64, tpu.core_type = #tpu.core_type<tc>} {
    %cst = arith.constant 0.000000e+00 : f32
    %0 = vector.broadcast %cst : f32 to vector<1x3x16x16xf32>
    %c0 = arith.constant 0 : index
    %c0_0 = arith.constant 0 : index
    %c0_1 = arith.constant 0 : index
    %c0_2 = arith.constant 0 : index
    %1 = vector.load %arg4[%c0, %c0_0, %c0_1, %c0_2] : memref<1x3x16x16xf32, #tpu.memory_space<vmem>>, vector<1x3x16x16xf32>
    tpu.vector_store %arg4[%c0, %c0_0, %c0_1, %c0_2], %0 {strides = array<i32>} : memref<1x3x16x16xf32, #tpu.memory_space<vmem>>, vector<1x3x16x16xf32>,
    %c0_3 = arith.constant 0 : index
    %c0_4 = arith.constant 0 : index
    %c0_5 = arith.constant 0 : index
    %c0_6 = arith.constant 0 : index
    %2 = vector.load %arg2[%c0_3, %c0_4, %c0_5, %c0_6] : memref<1x3x14x14xf32, #tpu.memory_space<vmem>>, vector<1x3x14x14xf32>
    %c0_7 = arith.constant 0 : index
    %c0_8 = arith.constant 0 : index
    %c1 = arith.constant 1 : index
    %c1_9 = arith.constant 1 : index
    %3 = vector.load %arg4[%c0_7, %c0_8, %c1, %c1_9] : memref<1x3x16x16xf32, #tpu.memory_space<vmem>>, vector<1x3x14x14xf32>
    tpu.vector_store %arg4[%c0_7, %c0_8, %c1, %c1_9], %2 {strides = array<i32>} : memref<1x3x16x16xf32, #tpu.memory_space<vmem>>, vector<1x3x14x14xf32>,
    %c0_10 = arith.constant 0 : index
    %c0_11 = arith.constant 0 : index
    %c1_12 = arith.constant 1 : index
    %c1_13 = arith.constant 1 : index
    %4 = vector.load %arg4[%c0_10, %c0_11, %c1_12, %c1_13] : memref<1x3x16x16xf32, #tpu.memory_space<vmem>>, vector<1x1x15x15xf32>
    %5 = vector.shape_cast %4 : vector<1x1x15x15xf32> to vector<15x15xf32>
    %c0_14 = arith.constant 0 : index
    %c0_15 = arith.constant 0 : index
    %c1_16 = arith.constant 1 : index
    %c0_17 = arith.constant 0 : index
    %6 = vector.load %arg4[%c0_14, %c0_15, %c1_16, %c0_17] : memref<1x3x16x16xf32, #tpu.memory_space<vmem>>, vector<1x1x15x15xf32>
    %7 = vector.shape_cast %6 : vector<1x1x15x15xf32> to vector<15x15xf32>
    %c0_18 = arith.constant 0 : index
    %c0_19 = arith.constant 0 : index
    %c0_20 = arith.constant 0 : index
    %c1_21 = arith.constant 1 : index
    %8 = vector.load %arg4[%c0_18, %c0_19, %c0_20, %c1_21] : memref<1x3x16x16xf32, #tpu.memory_space<vmem>>, vector<1x1x15x15xf32>
    %9 = vector.shape_cast %8 : vector<1x1x15x15xf32> to vector<15x15xf32>
    %c0_22 = arith.constant 0 : index
    %c0_23 = arith.constant 0 : index
    %c0_24 = arith.constant 0 : index
    %c0_25 = arith.constant 0 : index
    %10 = vector.load %arg4[%c0_22, %c0_23, %c0_24, %c0_25] : memref<1x3x16x16xf32, #tpu.memory_space<vmem>>, vector<1x1x15x15xf32>
    %11 = vector.shape_cast %10 : vector<1x1x15x15xf32> to vector<15x15xf32>
    %c0_26 = arith.constant 0 : index
    %c1_27 = arith.constant 1 : index
    %c1_28 = arith.constant 1 : index
    %c1_29 = arith.constant 1 : index
    %12 = vector.load %arg4[%c0_26, %c1_27, %c1_28, %c1_29] : memref<1x3x16x16xf32, #tpu.memory_space<vmem>>, vector<1x1x15x15xf32>
    %13 = vector.shape_cast %12 : vector<1x1x15x15xf32> to vector<15x15xf32>
    %c0_30 = arith.constant 0 : index
    %c1_31 = arith.constant 1 : index
    %c1_32 = arith.constant 1 : index
    %c0_33 = arith.constant 0 : index
    %14 = vector.load %arg4[%c0_30, %c1_31, %c1_32, %c0_33] : memref<1x3x16x16xf32, #tpu.memory_space<vmem>>, vector<1x1x15x15xf32>
    %15 = vector.shape_cast %14 : vector<1x1x15x15xf32> to vector<15x15xf32>
    %c0_34 = arith.constant 0 : index
    %c1_35 = arith.constant 1 : index
    %c0_36 = arith.constant 0 : index
    %c1_37 = arith.constant 1 : index
    %16 = vector.load %arg4[%c0_34, %c1_35, %c0_36, %c1_37] : memref<1x3x16x16xf32, #tpu.memory_space<vmem>>, vector<1x1x15x15xf32>
    %17 = vector.shape_cast %16 : vector<1x1x15x15xf32> to vector<15x15xf32>
    %c0_38 = arith.constant 0 : index
    %c1_39 = arith.constant 1 : index
    %c0_40 = arith.constant 0 : index
    %c0_41 = arith.constant 0 : index
    %18 = vector.load %arg4[%c0_38, %c1_39, %c0_40, %c0_41] : memref<1x3x16x16xf32, #tpu.memory_space<vmem>>, vector<1x1x15x15xf32>
    %19 = vector.shape_cast %18 : vector<1x1x15x15xf32> to vector<15x15xf32>
    %c0_42 = arith.constant 0 : index
    %c2 = arith.constant 2 : index
    %c1_43 = arith.constant 1 : index
    %c1_44 = arith.constant 1 : index
    %20 = vector.load %arg4[%c0_42, %c2, %c1_43, %c1_44] : memref<1x3x16x16xf32, #tpu.memory_space<vmem>>, vector<1x1x15x15xf32>
    %21 = vector.shape_cast %20 : vector<1x1x15x15xf32> to vector<15x15xf32>
    %c0_45 = arith.constant 0 : index
    %c2_46 = arith.constant 2 : index
    %c1_47 = arith.constant 1 : index
    %c0_48 = arith.constant 0 : index
    %22 = vector.load %arg4[%c0_45, %c2_46, %c1_47, %c0_48] : memref<1x3x16x16xf32, #tpu.memory_space<vmem>>, vector<1x1x15x15xf32>
    %23 = vector.shape_cast %22 : vector<1x1x15x15xf32> to vector<15x15xf32>
    %c0_49 = arith.constant 0 : index
    %c2_50 = arith.constant 2 : index
    %c0_51 = arith.constant 0 : index
    %c1_52 = arith.constant 1 : index
    %24 = vector.load %arg4[%c0_49, %c2_50, %c0_51, %c1_52] : memref<1x3x16x16xf32, #tpu.memory_space<vmem>>, vector<1x1x15x15xf32>
    %25 = vector.shape_cast %24 : vector<1x1x15x15xf32> to vector<15x15xf32>
    %c0_53 = arith.constant 0 : index
    %c2_54 = arith.constant 2 : index
    %c0_55 = arith.constant 0 : index
    %c0_56 = arith.constant 0 : index
    %26 = vector.load %arg4[%c0_53, %c2_54, %c0_55, %c0_56] : memref<1x3x16x16xf32, #tpu.memory_space<vmem>>, vector<1x1x15x15xf32>
    %27 = vector.shape_cast %26 : vector<1x1x15x15xf32> to vector<15x15xf32>
    %c0_57 = arith.constant 0 : index
    %28 = memref.load %arg1[%c0_57] : memref<4xf32, #tpu.memory_space<smem>>
    %29 = vector.broadcast %28 : f32 to vector<15x15xf32>
    %c0_58 = arith.constant 0 : index
    %30 = memref.load %arg0[%c0_58] : memref<192xf32, #tpu.memory_space<smem>>
    %31 = vector.broadcast %30 : f32 to vector<15x15xf32>
    %32 = arith.mulf %31, %5 : vector<15x15xf32>
    %33 = arith.addf %29, %32 : vector<15x15xf32>
    %c2_59 = arith.constant 2 : index
    %34 = memref.load %arg0[%c2_59] : memref<192xf32, #tpu.memory_space<smem>>
    %35 = vector.broadcast %34 : f32 to vector<15x15xf32>
    %36 = arith.mulf %35, %7 : vector<15x15xf32>
    %37 = arith.addf %33, %36 : vector<15x15xf32>
    %c8 = arith.constant 8 : index
    %38 = memref.load %arg0[%c8] : memref<192xf32, #tpu.memory_space<smem>>
    %39 = vector.broadcast %38 : f32 to vector<15x15xf32>
    %40 = arith.mulf %39, %9 : vector<15x15xf32>
    %41 = arith.addf %37, %40 : vector<15x15xf32>
    %c10 = arith.constant 10 : index
    %42 = memref.load %arg0[%c10] : memref<192xf32, #tpu.memory_space<smem>>
    %43 = vector.broadcast %42 : f32 to vector<15x15xf32>
    %44 = arith.mulf %43, %11 : vector<15x15xf32>
    %45 = arith.addf %41, %44 : vector<15x15xf32>
    %c64 = arith.constant 64 : index
    %46 = memref.load %arg0[%c64] : memref<192xf32, #tpu.memory_space<smem>>
    %47 = vector.broadcast %46 : f32 to vector<15x15xf32>
    %48 = arith.mulf %47, %13 : vector<15x15xf32>
    %49 = arith.addf %45, %48 : vector<15x15xf32>
    %c66 = arith.constant 66 : index
    %50 = memref.load %arg0[%c66] : memref<192xf32, #tpu.memory_space<smem>>
    %51 = vector.broadcast %50 : f32 to vector<15x15xf32>
    %52 = arith.mulf %51, %15 : vector<15x15xf32>
    %53 = arith.addf %49, %52 : vector<15x15xf32>
    %c72 = arith.constant 72 : index
    %54 = memref.load %arg0[%c72] : memref<192xf32, #tpu.memory_space<smem>>
    %55 = vector.broadcast %54 : f32 to vector<15x15xf32>
    %56 = arith.mulf %55, %17 : vector<15x15xf32>
    %57 = arith.addf %53, %56 : vector<15x15xf32>
    %c74 = arith.constant 74 : index
    %58 = memref.load %arg0[%c74] : memref<192xf32, #tpu.memory_space<smem>>
    %59 = vector.broadcast %58 : f32 to vector<15x15xf32>
    %60 = arith.mulf %59, %19 : vector<15x15xf32>
    %61 = arith.addf %57, %60 : vector<15x15xf32>
    %c128 = arith.constant 128 : index
    %62 = memref.load %arg0[%c128] : memref<192xf32, #tpu.memory_space<smem>>
    %63 = vector.broadcast %62 : f32 to vector<15x15xf32>
    %64 = arith.mulf %63, %21 : vector<15x15xf32>
    %65 = arith.addf %61, %64 : vector<15x15xf32>
    %c130 = arith.constant 130 : index
    %66 = memref.load %arg0[%c130] : memref<192xf32, #tpu.memory_space<smem>>
    %67 = vector.broadcast %66 : f32 to vector<15x15xf32>
    %68 = arith.mulf %67, %23 : vector<15x15xf32>
    %69 = arith.addf %65, %68 : vector<15x15xf32>
    %c136 = arith.constant 136 : index
    %70 = memref.load %arg0[%c136] : memref<192xf32, #tpu.memory_space<smem>>
    %71 = vector.broadcast %70 : f32 to vector<15x15xf32>
    %72 = arith.mulf %71, %25 : vector<15x15xf32>
    %73 = arith.addf %69, %72 : vector<15x15xf32>
    %c138 = arith.constant 138 : index
    %74 = memref.load %arg0[%c138] : memref<192xf32, #tpu.memory_space<smem>>
    %75 = vector.broadcast %74 : f32 to vector<15x15xf32>
    %76 = arith.mulf %75, %27 : vector<15x15xf32>
    %77 = arith.addf %73, %76 : vector<15x15xf32>
    %78 = math.tanh %77 : vector<15x15xf32>
    %c0_60 = arith.constant 0 : index
    %c0_61 = arith.constant 0 : index
    %c0_62 = arith.constant 0 : index
    %c0_63 = arith.constant 0 : index
    %c0_64 = arith.constant 0 : index
    %c0_65 = arith.constant 0 : index
    %79 = vector.load %arg3[%c0_60, %c0_61, %c0_62, %c0_63, %c0_64, %c0_65] : memref<1x4x2x2x15x15xf32, #tpu.memory_space<vmem>>, vector<1x1x1x1x15x15xf32>
    %80 = vector.shape_cast %79 : vector<1x1x1x1x15x15xf32> to vector<15x15xf32>
    %81 = vector.shape_cast %78 : vector<15x15xf32> to vector<1x1x1x1x15x15xf32>
    tpu.vector_store %arg3[%c0_60, %c0_61, %c0_62, %c0_63, %c0_64, %c0_65], %81 {strides = array<i32>} : memref<1x4x2x2x15x15xf32, #tpu.memory_space<vmem>>, vector<1x1x1x1x15x15xf32>,
    %c1_66 = arith.constant 1 : index
    %82 = memref.load %arg0[%c1_66] : memref<192xf32, #tpu.memory_space<smem>>
    %83 = vector.broadcast %82 : f32 to vector<15x15xf32>
    %84 = arith.mulf %83, %5 : vector<15x15xf32>
    %85 = arith.addf %29, %84 : vector<15x15xf32>
    %c3 = arith.constant 3 : index
    %86 = memref.load %arg0[%c3] : memref<192xf32, #tpu.memory_space<smem>>
    %87 = vector.broadcast %86 : f32 to vector<15x15xf32>
    %88 = arith.mulf %87, %7 : vector<15x15xf32>
    %89 = arith.addf %85, %88 : vector<15x15xf32>
    %c9 = arith.constant 9 : index
    %90 = memref.load %arg0[%c9] : memref<192xf32, #tpu.memory_space<smem>>
    %91 = vector.broadcast %90 : f32 to vector<15x15xf32>
    %92 = arith.mulf %91, %9 : vector<15x15xf32>
    %93 = arith.addf %89, %92 : vector<15x15xf32>
    %c11 = arith.constant 11 : index
    %94 = memref.load %arg0[%c11] : memref<192xf32, #tpu.memory_space<smem>>
    %95 = vector.broadcast %94 : f32 to vector<15x15xf32>
    %96 = arith.mulf %95, %11 : vector<15x15xf32>
    %97 = arith.addf %93, %96 : vector<15x15xf32>
    %c65 = arith.constant 65 : index
    %98 = memref.load %arg0[%c65] : memref<192xf32, #tpu.memory_space<smem>>
    %99 = vector.broadcast %98 : f32 to vector<15x15xf32>
    %100 = arith.mulf %99, %13 : vector<15x15xf32>
    %101 = arith.addf %97, %100 : vector<15x15xf32>
    %c67 = arith.constant 67 : index
    %102 = memref.load %arg0[%c67] : memref<192xf32, #tpu.memory_space<smem>>
    %103 = vector.broadcast %102 : f32 to vector<15x15xf32>
    %104 = arith.mulf %103, %15 : vector<15x15xf32>
    %105 = arith.addf %101, %104 : vector<15x15xf32>
    %c73 = arith.constant 73 : index
    %106 = memref.load %arg0[%c73] : memref<192xf32, #tpu.memory_space<smem>>
    %107 = vector.broadcast %106 : f32 to vector<15x15xf32>
    %108 = arith.mulf %107, %17 : vector<15x15xf32>
    %109 = arith.addf %105, %108 : vector<15x15xf32>
    %c75 = arith.constant 75 : index
    %110 = memref.load %arg0[%c75] : memref<192xf32, #tpu.memory_space<smem>>
    %111 = vector.broadcast %110 : f32 to vector<15x15xf32>
    %112 = arith.mulf %111, %19 : vector<15x15xf32>
    %113 = arith.addf %109, %112 : vector<15x15xf32>
    %c129 = arith.constant 129 : index
    %114 = memref.load %arg0[%c129] : memref<192xf32, #tpu.memory_space<smem>>
    %115 = vector.broadcast %114 : f32 to vector<15x15xf32>
    %116 = arith.mulf %115, %21 : vector<15x15xf32>
    %117 = arith.addf %113, %116 : vector<15x15xf32>
    %c131 = arith.constant 131 : index
    %118 = memref.load %arg0[%c131] : memref<192xf32, #tpu.memory_space<smem>>
    %119 = vector.broadcast %118 : f32 to vector<15x15xf32>
    %120 = arith.mulf %119, %23 : vector<15x15xf32>
    %121 = arith.addf %117, %120 : vector<15x15xf32>
    %c137 = arith.constant 137 : index
    %122 = memref.load %arg0[%c137] : memref<192xf32, #tpu.memory_space<smem>>
    %123 = vector.broadcast %122 : f32 to vector<15x15xf32>
    %124 = arith.mulf %123, %25 : vector<15x15xf32>
    %125 = arith.addf %121, %124 : vector<15x15xf32>
    %c139 = arith.constant 139 : index
    %126 = memref.load %arg0[%c139] : memref<192xf32, #tpu.memory_space<smem>>
    %127 = vector.broadcast %126 : f32 to vector<15x15xf32>
    %128 = arith.mulf %127, %27 : vector<15x15xf32>
    %129 = arith.addf %125, %128 : vector<15x15xf32>
    %130 = math.tanh %129 : vector<15x15xf32>
    %c0_67 = arith.constant 0 : index
    %c0_68 = arith.constant 0 : index
    %c0_69 = arith.constant 0 : index
    %c1_70 = arith.constant 1 : index
    %c0_71 = arith.constant 0 : index
    %c0_72 = arith.constant 0 : index
    %131 = vector.load %arg3[%c0_67, %c0_68, %c0_69, %c1_70, %c0_71, %c0_72] : memref<1x4x2x2x15x15xf32, #tpu.memory_space<vmem>>, vector<1x1x1x1x15x15xf32>
    %132 = vector.shape_cast %131 : vector<1x1x1x1x15x15xf32> to vector<15x15xf32>
    %133 = vector.shape_cast %130 : vector<15x15xf32> to vector<1x1x1x1x15x15xf32>
    tpu.vector_store %arg3[%c0_67, %c0_68, %c0_69, %c1_70, %c0_71, %c0_72], %133 {strides = array<i32>} : memref<1x4x2x2x15x15xf32, #tpu.memory_space<vmem>>, vector<1x1x1x1x15x15xf32>,
    %c4 = arith.constant 4 : index
    %134 = memref.load %arg0[%c4] : memref<192xf32, #tpu.memory_space<smem>>
    %135 = vector.broadcast %134 : f32 to vector<15x15xf32>
    %136 = arith.mulf %135, %5 : vector<15x15xf32>
    %137 = arith.addf %29, %136 : vector<15x15xf32>
    %c6 = arith.constant 6 : index
    %138 = memref.load %arg0[%c6] : memref<192xf32, #tpu.memory_space<smem>>
    %139 = vector.broadcast %138 : f32 to vector<15x15xf32>
    %140 = arith.mulf %139, %7 : vector<15x15xf32>
    %141 = arith.addf %137, %140 : vector<15x15xf32>
    %c12 = arith.constant 12 : index
    %142 = memref.load %arg0[%c12] : memref<192xf32, #tpu.memory_space<smem>>
    %143 = vector.broadcast %142 : f32 to vector<15x15xf32>
    %144 = arith.mulf %143, %9 : vector<15x15xf32>
    %145 = arith.addf %141, %144 : vector<15x15xf32>
    %c14 = arith.constant 14 : index
    %146 = memref.load %arg0[%c14] : memref<192xf32, #tpu.memory_space<smem>>
    %147 = vector.broadcast %146 : f32 to vector<15x15xf32>
    %148 = arith.mulf %147, %11 : vector<15x15xf32>
    %149 = arith.addf %145, %148 : vector<15x15xf32>
    %c68 = arith.constant 68 : index
    %150 = memref.load %arg0[%c68] : memref<192xf32, #tpu.memory_space<smem>>
    %151 = vector.broadcast %150 : f32 to vector<15x15xf32>
    %152 = arith.mulf %151, %13 : vector<15x15xf32>
    %153 = arith.addf %149, %152 : vector<15x15xf32>
    %c70 = arith.constant 70 : index
    %154 = memref.load %arg0[%c70] : memref<192xf32, #tpu.memory_space<smem>>
    %155 = vector.broadcast %154 : f32 to vector<15x15xf32>
    %156 = arith.mulf %155, %15 : vector<15x15xf32>
    %157 = arith.addf %153, %156 : vector<15x15xf32>
    %c76 = arith.constant 76 : index
    %158 = memref.load %arg0[%c76] : memref<192xf32, #tpu.memory_space<smem>>
    %159 = vector.broadcast %158 : f32 to vector<15x15xf32>
    %160 = arith.mulf %159, %17 : vector<15x15xf32>
    %161 = arith.addf %157, %160 : vector<15x15xf32>
    %c78 = arith.constant 78 : index
    %162 = memref.load %arg0[%c78] : memref<192xf32, #tpu.memory_space<smem>>
    %163 = vector.broadcast %162 : f32 to vector<15x15xf32>
    %164 = arith.mulf %163, %19 : vector<15x15xf32>
    %165 = arith.addf %161, %164 : vector<15x15xf32>
    %c132 = arith.constant 132 : index
    %166 = memref.load %arg0[%c132] : memref<192xf32, #tpu.memory_space<smem>>
    %167 = vector.broadcast %166 : f32 to vector<15x15xf32>
    %168 = arith.mulf %167, %21 : vector<15x15xf32>
    %169 = arith.addf %165, %168 : vector<15x15xf32>
    %c134 = arith.constant 134 : index
    %170 = memref.load %arg0[%c134] : memref<192xf32, #tpu.memory_space<smem>>
    %171 = vector.broadcast %170 : f32 to vector<15x15xf32>
    %172 = arith.mulf %171, %23 : vector<15x15xf32>
    %173 = arith.addf %169, %172 : vector<15x15xf32>
    %c140 = arith.constant 140 : index
    %174 = memref.load %arg0[%c140] : memref<192xf32, #tpu.memory_space<smem>>
    %175 = vector.broadcast %174 : f32 to vector<15x15xf32>
    %176 = arith.mulf %175, %25 : vector<15x15xf32>
    %177 = arith.addf %173, %176 : vector<15x15xf32>
    %c142 = arith.constant 142 : index
    %178 = memref.load %arg0[%c142] : memref<192xf32, #tpu.memory_space<smem>>
    %179 = vector.broadcast %178 : f32 to vector<15x15xf32>
    %180 = arith.mulf %179, %27 : vector<15x15xf32>
    %181 = arith.addf %177, %180 : vector<15x15xf32>
    %182 = math.tanh %181 : vector<15x15xf32>
    %c0_73 = arith.constant 0 : index
    %c0_74 = arith.constant 0 : index
    %c1_75 = arith.constant 1 : index
    %c0_76 = arith.constant 0 : index
    %c0_77 = arith.constant 0 : index
    %c0_78 = arith.constant 0 : index
    %183 = vector.load %arg3[%c0_73, %c0_74, %c1_75, %c0_76, %c0_77, %c0_78] : memref<1x4x2x2x15x15xf32, #tpu.memory_space<vmem>>, vector<1x1x1x1x15x15xf32>
    %184 = vector.shape_cast %183 : vector<1x1x1x1x15x15xf32> to vector<15x15xf32>
    %185 = vector.shape_cast %182 : vector<15x15xf32> to vector<1x1x1x1x15x15xf32>
    tpu.vector_store %arg3[%c0_73, %c0_74, %c1_75, %c0_76, %c0_77, %c0_78], %185 {strides = array<i32>} : memref<1x4x2x2x15x15xf32, #tpu.memory_space<vmem>>, vector<1x1x1x1x15x15xf32>,
    %c5 = arith.constant 5 : index
    %186 = memref.load %arg0[%c5] : memref<192xf32, #tpu.memory_space<smem>>
    %187 = vector.broadcast %186 : f32 to vector<15x15xf32>
    %188 = arith.mulf %187, %5 : vector<15x15xf32>
    %189 = arith.addf %29, %188 : vector<15x15xf32>
    %c7 = arith.constant 7 : index
    %190 = memref.load %arg0[%c7] : memref<192xf32, #tpu.memory_space<smem>>
    %191 = vector.broadcast %190 : f32 to vector<15x15xf32>
    %192 = arith.mulf %191, %7 : vector<15x15xf32>
    %193 = arith.addf %189, %192 : vector<15x15xf32>
    %c13 = arith.constant 13 : index
    %194 = memref.load %arg0[%c13] : memref<192xf32, #tpu.memory_space<smem>>
    %195 = vector.broadcast %194 : f32 to vector<15x15xf32>
    %196 = arith.mulf %195, %9 : vector<15x15xf32>
    %197 = arith.addf %193, %196 : vector<15x15xf32>
    %c15 = arith.constant 15 : index
    %198 = memref.load %arg0[%c15] : memref<192xf32, #tpu.memory_space<smem>>
    %199 = vector.broadcast %198 : f32 to vector<15x15xf32>
    %200 = arith.mulf %199, %11 : vector<15x15xf32>
    %201 = arith.addf %197, %200 : vector<15x15xf32>
    %c69 = arith.constant 69 : index
    %202 = memref.load %arg0[%c69] : memref<192xf32, #tpu.memory_space<smem>>
    %203 = vector.broadcast %202 : f32 to vector<15x15xf32>
    %204 = arith.mulf %203, %13 : vector<15x15xf32>
    %205 = arith.addf %201, %204 : vector<15x15xf32>
    %c71 = arith.constant 71 : index
    %206 = memref.load %arg0[%c71] : memref<192xf32, #tpu.memory_space<smem>>
    %207 = vector.broadcast %206 : f32 to vector<15x15xf32>
    %208 = arith.mulf %207, %15 : vector<15x15xf32>
    %209 = arith.addf %205, %208 : vector<15x15xf32>
    %c77 = arith.constant 77 : index
    %210 = memref.load %arg0[%c77] : memref<192xf32, #tpu.memory_space<smem>>
    %211 = vector.broadcast %210 : f32 to vector<15x15xf32>
    %212 = arith.mulf %211, %17 : vector<15x15xf32>
    %213 = arith.addf %209, %212 : vector<15x15xf32>
    %c79 = arith.constant 79 : index
    %214 = memref.load %arg0[%c79] : memref<192xf32, #tpu.memory_space<smem>>
    %215 = vector.broadcast %214 : f32 to vector<15x15xf32>
    %216 = arith.mulf %215, %19 : vector<15x15xf32>
    %217 = arith.addf %213, %216 : vector<15x15xf32>
    %c133 = arith.constant 133 : index
    %218 = memref.load %arg0[%c133] : memref<192xf32, #tpu.memory_space<smem>>
    %219 = vector.broadcast %218 : f32 to vector<15x15xf32>
    %220 = arith.mulf %219, %21 : vector<15x15xf32>
    %221 = arith.addf %217, %220 : vector<15x15xf32>
    %c135 = arith.constant 135 : index
    %222 = memref.load %arg0[%c135] : memref<192xf32, #tpu.memory_space<smem>>
    %223 = vector.broadcast %222 : f32 to vector<15x15xf32>
    %224 = arith.mulf %223, %23 : vector<15x15xf32>
    %225 = arith.addf %221, %224 : vector<15x15xf32>
    %c141 = arith.constant 141 : index
    %226 = memref.load %arg0[%c141] : memref<192xf32, #tpu.memory_space<smem>>
    %227 = vector.broadcast %226 : f32 to vector<15x15xf32>
    %228 = arith.mulf %227, %25 : vector<15x15xf32>
    %229 = arith.addf %225, %228 : vector<15x15xf32>
    %c143 = arith.constant 143 : index
    %230 = memref.load %arg0[%c143] : memref<192xf32, #tpu.memory_space<smem>>
    %231 = vector.broadcast %230 : f32 to vector<15x15xf32>
    %232 = arith.mulf %231, %27 : vector<15x15xf32>
    %233 = arith.addf %229, %232 : vector<15x15xf32>
    %234 = math.tanh %233 : vector<15x15xf32>
    %c0_79 = arith.constant 0 : index
    %c0_80 = arith.constant 0 : index
    %c1_81 = arith.constant 1 : index
    %c1_82 = arith.constant 1 : index
    %c0_83 = arith.constant 0 : index
    %c0_84 = arith.constant 0 : index
    %235 = vector.load %arg3[%c0_79, %c0_80, %c1_81, %c1_82, %c0_83, %c0_84] : memref<1x4x2x2x15x15xf32, #tpu.memory_space<vmem>>, vector<1x1x1x1x15x15xf32>
    %236 = vector.shape_cast %235 : vector<1x1x1x1x15x15xf32> to vector<15x15xf32>
    %237 = vector.shape_cast %234 : vector<15x15xf32> to vector<1x1x1x1x15x15xf32>
    tpu.vector_store %arg3[%c0_79, %c0_80, %c1_81, %c1_82, %c0_83, %c0_84], %237 {strides = array<i32>} : memref<1x4x2x2x15x15xf32, #tpu.memory_space<vmem>>, vector<1x1x1x1x15x15xf32>,
    %c1_85 = arith.constant 1 : index
    %238 = memref.load %arg1[%c1_85] : memref<4xf32, #tpu.memory_space<smem>>
    %239 = vector.broadcast %238 : f32 to vector<15x15xf32>
    %c16 = arith.constant 16 : index
    %240 = memref.load %arg0[%c16] : memref<192xf32, #tpu.memory_space<smem>>
    %241 = vector.broadcast %240 : f32 to vector<15x15xf32>
    %242 = arith.mulf %241, %5 : vector<15x15xf32>
    %243 = arith.addf %239, %242 : vector<15x15xf32>
    %c18 = arith.constant 18 : index
    %244 = memref.load %arg0[%c18] : memref<192xf32, #tpu.memory_space<smem>>
    %245 = vector.broadcast %244 : f32 to vector<15x15xf32>
    %246 = arith.mulf %245, %7 : vector<15x15xf32>
    %247 = arith.addf %243, %246 : vector<15x15xf32>
    %c24 = arith.constant 24 : index
    %248 = memref.load %arg0[%c24] : memref<192xf32, #tpu.memory_space<smem>>
    %249 = vector.broadcast %248 : f32 to vector<15x15xf32>
    %250 = arith.mulf %249, %9 : vector<15x15xf32>
    %251 = arith.addf %247, %250 : vector<15x15xf32>
    %c26 = arith.constant 26 : index
    %252 = memref.load %arg0[%c26] : memref<192xf32, #tpu.memory_space<smem>>
    %253 = vector.broadcast %252 : f32 to vector<15x15xf32>
    %254 = arith.mulf %253, %11 : vector<15x15xf32>
    %255 = arith.addf %251, %254 : vector<15x15xf32>
    %c80 = arith.constant 80 : index
    %256 = memref.load %arg0[%c80] : memref<192xf32, #tpu.memory_space<smem>>
    %257 = vector.broadcast %256 : f32 to vector<15x15xf32>
    %258 = arith.mulf %257, %13 : vector<15x15xf32>
    %259 = arith.addf %255, %258 : vector<15x15xf32>
    %c82 = arith.constant 82 : index
    %260 = memref.load %arg0[%c82] : memref<192xf32, #tpu.memory_space<smem>>
    %261 = vector.broadcast %260 : f32 to vector<15x15xf32>
    %262 = arith.mulf %261, %15 : vector<15x15xf32>
    %263 = arith.addf %259, %262 : vector<15x15xf32>
    %c88 = arith.constant 88 : index
    %264 = memref.load %arg0[%c88] : memref<192xf32, #tpu.memory_space<smem>>
    %265 = vector.broadcast %264 : f32 to vector<15x15xf32>
    %266 = arith.mulf %265, %17 : vector<15x15xf32>
    %267 = arith.addf %263, %266 : vector<15x15xf32>
    %c90 = arith.constant 90 : index
    %268 = memref.load %arg0[%c90] : memref<192xf32, #tpu.memory_space<smem>>
    %269 = vector.broadcast %268 : f32 to vector<15x15xf32>
    %270 = arith.mulf %269, %19 : vector<15x15xf32>
    %271 = arith.addf %267, %270 : vector<15x15xf32>
    %c144 = arith.constant 144 : index
    %272 = memref.load %arg0[%c144] : memref<192xf32, #tpu.memory_space<smem>>
    %273 = vector.broadcast %272 : f32 to vector<15x15xf32>
    %274 = arith.mulf %273, %21 : vector<15x15xf32>
    %275 = arith.addf %271, %274 : vector<15x15xf32>
    %c146 = arith.constant 146 : index
    %276 = memref.load %arg0[%c146] : memref<192xf32, #tpu.memory_space<smem>>
    %277 = vector.broadcast %276 : f32 to vector<15x15xf32>
    %278 = arith.mulf %277, %23 : vector<15x15xf32>
    %279 = arith.addf %275, %278 : vector<15x15xf32>
    %c152 = arith.constant 152 : index
    %280 = memref.load %arg0[%c152] : memref<192xf32, #tpu.memory_space<smem>>
    %281 = vector.broadcast %280 : f32 to vector<15x15xf32>
    %282 = arith.mulf %281, %25 : vector<15x15xf32>
    %283 = arith.addf %279, %282 : vector<15x15xf32>
    %c154 = arith.constant 154 : index
    %284 = memref.load %arg0[%c154] : memref<192xf32, #tpu.memory_space<smem>>
    %285 = vector.broadcast %284 : f32 to vector<15x15xf32>
    %286 = arith.mulf %285, %27 : vector<15x15xf32>
    %287 = arith.addf %283, %286 : vector<15x15xf32>
    %288 = math.tanh %287 : vector<15x15xf32>
    %c0_86 = arith.constant 0 : index
    %c1_87 = arith.constant 1 : index
    %c0_88 = arith.constant 0 : index
    %c0_89 = arith.constant 0 : index
    %c0_90 = arith.constant 0 : index
    %c0_91 = arith.constant 0 : index
    %289 = vector.load %arg3[%c0_86, %c1_87, %c0_88, %c0_89, %c0_90, %c0_91] : memref<1x4x2x2x15x15xf32, #tpu.memory_space<vmem>>, vector<1x1x1x1x15x15xf32>
    %290 = vector.shape_cast %289 : vector<1x1x1x1x15x15xf32> to vector<15x15xf32>
    %291 = vector.shape_cast %288 : vector<15x15xf32> to vector<1x1x1x1x15x15xf32>
    tpu.vector_store %arg3[%c0_86, %c1_87, %c0_88, %c0_89, %c0_90, %c0_91], %291 {strides = array<i32>} : memref<1x4x2x2x15x15xf32, #tpu.memory_space<vmem>>, vector<1x1x1x1x15x15xf32>,
    %c17 = arith.constant 17 : index
    %292 = memref.load %arg0[%c17] : memref<192xf32, #tpu.memory_space<smem>>
    %293 = vector.broadcast %292 : f32 to vector<15x15xf32>
    %294 = arith.mulf %293, %5 : vector<15x15xf32>
    %295 = arith.addf %239, %294 : vector<15x15xf32>
    %c19 = arith.constant 19 : index
    %296 = memref.load %arg0[%c19] : memref<192xf32, #tpu.memory_space<smem>>
    %297 = vector.broadcast %296 : f32 to vector<15x15xf32>
    %298 = arith.mulf %297, %7 : vector<15x15xf32>
    %299 = arith.addf %295, %298 : vector<15x15xf32>
    %c25 = arith.constant 25 : index
    %300 = memref.load %arg0[%c25] : memref<192xf32, #tpu.memory_space<smem>>
    %301 = vector.broadcast %300 : f32 to vector<15x15xf32>
    %302 = arith.mulf %301, %9 : vector<15x15xf32>
    %303 = arith.addf %299, %302 : vector<15x15xf32>
    %c27 = arith.constant 27 : index
    %304 = memref.load %arg0[%c27] : memref<192xf32, #tpu.memory_space<smem>>
    %305 = vector.broadcast %304 : f32 to vector<15x15xf32>
    %306 = arith.mulf %305, %11 : vector<15x15xf32>
    %307 = arith.addf %303, %306 : vector<15x15xf32>
    %c81 = arith.constant 81 : index
    %308 = memref.load %arg0[%c81] : memref<192xf32, #tpu.memory_space<smem>>
    %309 = vector.broadcast %308 : f32 to vector<15x15xf32>
    %310 = arith.mulf %309, %13 : vector<15x15xf32>
    %311 = arith.addf %307, %310 : vector<15x15xf32>
    %c83 = arith.constant 83 : index
    %312 = memref.load %arg0[%c83] : memref<192xf32, #tpu.memory_space<smem>>
    %313 = vector.broadcast %312 : f32 to vector<15x15xf32>
    %314 = arith.mulf %313, %15 : vector<15x15xf32>
    %315 = arith.addf %311, %314 : vector<15x15xf32>
    %c89 = arith.constant 89 : index
    %316 = memref.load %arg0[%c89] : memref<192xf32, #tpu.memory_space<smem>>
    %317 = vector.broadcast %316 : f32 to vector<15x15xf32>
    %318 = arith.mulf %317, %17 : vector<15x15xf32>
    %319 = arith.addf %315, %318 : vector<15x15xf32>
    %c91 = arith.constant 91 : index
    %320 = memref.load %arg0[%c91] : memref<192xf32, #tpu.memory_space<smem>>
    %321 = vector.broadcast %320 : f32 to vector<15x15xf32>
    %322 = arith.mulf %321, %19 : vector<15x15xf32>
    %323 = arith.addf %319, %322 : vector<15x15xf32>
    %c145 = arith.constant 145 : index
    %324 = memref.load %arg0[%c145] : memref<192xf32, #tpu.memory_space<smem>>
    %325 = vector.broadcast %324 : f32 to vector<15x15xf32>
    %326 = arith.mulf %325, %21 : vector<15x15xf32>
    %327 = arith.addf %323, %326 : vector<15x15xf32>
    %c147 = arith.constant 147 : index
    %328 = memref.load %arg0[%c147] : memref<192xf32, #tpu.memory_space<smem>>
    %329 = vector.broadcast %328 : f32 to vector<15x15xf32>
    %330 = arith.mulf %329, %23 : vector<15x15xf32>
    %331 = arith.addf %327, %330 : vector<15x15xf32>
    %c153 = arith.constant 153 : index
    %332 = memref.load %arg0[%c153] : memref<192xf32, #tpu.memory_space<smem>>
    %333 = vector.broadcast %332 : f32 to vector<15x15xf32>
    %334 = arith.mulf %333, %25 : vector<15x15xf32>
    %335 = arith.addf %331, %334 : vector<15x15xf32>
    %c155 = arith.constant 155 : index
    %336 = memref.load %arg0[%c155] : memref<192xf32, #tpu.memory_space<smem>>
    %337 = vector.broadcast %336 : f32 to vector<15x15xf32>
    %338 = arith.mulf %337, %27 : vector<15x15xf32>
    %339 = arith.addf %335, %338 : vector<15x15xf32>
    %340 = math.tanh %339 : vector<15x15xf32>
    %c0_92 = arith.constant 0 : index
    %c1_93 = arith.constant 1 : index
    %c0_94 = arith.constant 0 : index
    %c1_95 = arith.constant 1 : index
    %c0_96 = arith.constant 0 : index
    %c0_97 = arith.constant 0 : index
    %341 = vector.load %arg3[%c0_92, %c1_93, %c0_94, %c1_95, %c0_96, %c0_97] : memref<1x4x2x2x15x15xf32, #tpu.memory_space<vmem>>, vector<1x1x1x1x15x15xf32>
    %342 = vector.shape_cast %341 : vector<1x1x1x1x15x15xf32> to vector<15x15xf32>
    %343 = vector.shape_cast %340 : vector<15x15xf32> to vector<1x1x1x1x15x15xf32>
    tpu.vector_store %arg3[%c0_92, %c1_93, %c0_94, %c1_95, %c0_96, %c0_97], %343 {strides = array<i32>} : memref<1x4x2x2x15x15xf32, #tpu.memory_space<vmem>>, vector<1x1x1x1x15x15xf32>,
    %c20 = arith.constant 20 : index
    %344 = memref.load %arg0[%c20] : memref<192xf32, #tpu.memory_space<smem>>
    %345 = vector.broadcast %344 : f32 to vector<15x15xf32>
    %346 = arith.mulf %345, %5 : vector<15x15xf32>
    %347 = arith.addf %239, %346 : vector<15x15xf32>
    %c22 = arith.constant 22 : index
    %348 = memref.load %arg0[%c22] : memref<192xf32, #tpu.memory_space<smem>>
    %349 = vector.broadcast %348 : f32 to vector<15x15xf32>
    %350 = arith.mulf %349, %7 : vector<15x15xf32>
    %351 = arith.addf %347, %350 : vector<15x15xf32>
    %c28 = arith.constant 28 : index
    %352 = memref.load %arg0[%c28] : memref<192xf32, #tpu.memory_space<smem>>
    %353 = vector.broadcast %352 : f32 to vector<15x15xf32>
    %354 = arith.mulf %353, %9 : vector<15x15xf32>
    %355 = arith.addf %351, %354 : vector<15x15xf32>
    %c30 = arith.constant 30 : index
    %356 = memref.load %arg0[%c30] : memref<192xf32, #tpu.memory_space<smem>>
    %357 = vector.broadcast %356 : f32 to vector<15x15xf32>
    %358 = arith.mulf %357, %11 : vector<15x15xf32>
    %359 = arith.addf %355, %358 : vector<15x15xf32>
    %c84 = arith.constant 84 : index
    %360 = memref.load %arg0[%c84] : memref<192xf32, #tpu.memory_space<smem>>
    %361 = vector.broadcast %360 : f32 to vector<15x15xf32>
    %362 = arith.mulf %361, %13 : vector<15x15xf32>
    %363 = arith.addf %359, %362 : vector<15x15xf32>
    %c86 = arith.constant 86 : index
    %364 = memref.load %arg0[%c86] : memref<192xf32, #tpu.memory_space<smem>>
    %365 = vector.broadcast %364 : f32 to vector<15x15xf32>
    %366 = arith.mulf %365, %15 : vector<15x15xf32>
    %367 = arith.addf %363, %366 : vector<15x15xf32>
    %c92 = arith.constant 92 : index
    %368 = memref.load %arg0[%c92] : memref<192xf32, #tpu.memory_space<smem>>
    %369 = vector.broadcast %368 : f32 to vector<15x15xf32>
    %370 = arith.mulf %369, %17 : vector<15x15xf32>
    %371 = arith.addf %367, %370 : vector<15x15xf32>
    %c94 = arith.constant 94 : index
    %372 = memref.load %arg0[%c94] : memref<192xf32, #tpu.memory_space<smem>>
    %373 = vector.broadcast %372 : f32 to vector<15x15xf32>
    %374 = arith.mulf %373, %19 : vector<15x15xf32>
    %375 = arith.addf %371, %374 : vector<15x15xf32>
    %c148 = arith.constant 148 : index
    %376 = memref.load %arg0[%c148] : memref<192xf32, #tpu.memory_space<smem>>
    %377 = vector.broadcast %376 : f32 to vector<15x15xf32>
    %378 = arith.mulf %377, %21 : vector<15x15xf32>
    %379 = arith.addf %375, %378 : vector<15x15xf32>
    %c150 = arith.constant 150 : index
    %380 = memref.load %arg0[%c150] : memref<192xf32, #tpu.memory_space<smem>>
    %381 = vector.broadcast %380 : f32 to vector<15x15xf32>
    %382 = arith.mulf %381, %23 : vector<15x15xf32>
    %383 = arith.addf %379, %382 : vector<15x15xf32>
    %c156 = arith.constant 156 : index
    %384 = memref.load %arg0[%c156] : memref<192xf32, #tpu.memory_space<smem>>
    %385 = vector.broadcast %384 : f32 to vector<15x15xf32>
    %386 = arith.mulf %385, %25 : vector<15x15xf32>
    %387 = arith.addf %383, %386 : vector<15x15xf32>
    %c158 = arith.constant 158 : index
    %388 = memref.load %arg0[%c158] : memref<192xf32, #tpu.memory_space<smem>>
    %389 = vector.broadcast %388 : f32 to vector<15x15xf32>
    %390 = arith.mulf %389, %27 : vector<15x15xf32>
    %391 = arith.addf %387, %390 : vector<15x15xf32>
    %392 = math.tanh %391 : vector<15x15xf32>
    %c0_98 = arith.constant 0 : index
    %c1_99 = arith.constant 1 : index
    %c1_100 = arith.constant 1 : index
    %c0_101 = arith.constant 0 : index
    %c0_102 = arith.constant 0 : index
    %c0_103 = arith.constant 0 : index
    %393 = vector.load %arg3[%c0_98, %c1_99, %c1_100, %c0_101, %c0_102, %c0_103] : memref<1x4x2x2x15x15xf32, #tpu.memory_space<vmem>>, vector<1x1x1x1x15x15xf32>
    %394 = vector.shape_cast %393 : vector<1x1x1x1x15x15xf32> to vector<15x15xf32>
    %395 = vector.shape_cast %392 : vector<15x15xf32> to vector<1x1x1x1x15x15xf32>
    tpu.vector_store %arg3[%c0_98, %c1_99, %c1_100, %c0_101, %c0_102, %c0_103], %395 {strides = array<i32>} : memref<1x4x2x2x15x15xf32, #tpu.memory_space<vmem>>, vector<1x1x1x1x15x15xf32>,
    %c21 = arith.constant 21 : index
    %396 = memref.load %arg0[%c21] : memref<192xf32, #tpu.memory_space<smem>>
    %397 = vector.broadcast %396 : f32 to vector<15x15xf32>
    %398 = arith.mulf %397, %5 : vector<15x15xf32>
    %399 = arith.addf %239, %398 : vector<15x15xf32>
    %c23 = arith.constant 23 : index
    %400 = memref.load %arg0[%c23] : memref<192xf32, #tpu.memory_space<smem>>
    %401 = vector.broadcast %400 : f32 to vector<15x15xf32>
    %402 = arith.mulf %401, %7 : vector<15x15xf32>
    %403 = arith.addf %399, %402 : vector<15x15xf32>
    %c29 = arith.constant 29 : index
    %404 = memref.load %arg0[%c29] : memref<192xf32, #tpu.memory_space<smem>>
    %405 = vector.broadcast %404 : f32 to vector<15x15xf32>
    %406 = arith.mulf %405, %9 : vector<15x15xf32>
    %407 = arith.addf %403, %406 : vector<15x15xf32>
    %c31 = arith.constant 31 : index
    %408 = memref.load %arg0[%c31] : memref<192xf32, #tpu.memory_space<smem>>
    %409 = vector.broadcast %408 : f32 to vector<15x15xf32>
    %410 = arith.mulf %409, %11 : vector<15x15xf32>
    %411 = arith.addf %407, %410 : vector<15x15xf32>
    %c85 = arith.constant 85 : index
    %412 = memref.load %arg0[%c85] : memref<192xf32, #tpu.memory_space<smem>>
    %413 = vector.broadcast %412 : f32 to vector<15x15xf32>
    %414 = arith.mulf %413, %13 : vector<15x15xf32>
    %415 = arith.addf %411, %414 : vector<15x15xf32>
    %c87 = arith.constant 87 : index
    %416 = memref.load %arg0[%c87] : memref<192xf32, #tpu.memory_space<smem>>
    %417 = vector.broadcast %416 : f32 to vector<15x15xf32>
    %418 = arith.mulf %417, %15 : vector<15x15xf32>
    %419 = arith.addf %415, %418 : vector<15x15xf32>
    %c93 = arith.constant 93 : index
    %420 = memref.load %arg0[%c93] : memref<192xf32, #tpu.memory_space<smem>>
    %421 = vector.broadcast %420 : f32 to vector<15x15xf32>
    %422 = arith.mulf %421, %17 : vector<15x15xf32>
    %423 = arith.addf %419, %422 : vector<15x15xf32>
    %c95 = arith.constant 95 : index
    %424 = memref.load %arg0[%c95] : memref<192xf32, #tpu.memory_space<smem>>
    %425 = vector.broadcast %424 : f32 to vector<15x15xf32>
    %426 = arith.mulf %425, %19 : vector<15x15xf32>
    %427 = arith.addf %423, %426 : vector<15x15xf32>
    %c149 = arith.constant 149 : index
    %428 = memref.load %arg0[%c149] : memref<192xf32, #tpu.memory_space<smem>>
    %429 = vector.broadcast %428 : f32 to vector<15x15xf32>
    %430 = arith.mulf %429, %21 : vector<15x15xf32>
    %431 = arith.addf %427, %430 : vector<15x15xf32>
    %c151 = arith.constant 151 : index
    %432 = memref.load %arg0[%c151] : memref<192xf32, #tpu.memory_space<smem>>
    %433 = vector.broadcast %432 : f32 to vector<15x15xf32>
    %434 = arith.mulf %433, %23 : vector<15x15xf32>
    %435 = arith.addf %431, %434 : vector<15x15xf32>
    %c157 = arith.constant 157 : index
    %436 = memref.load %arg0[%c157] : memref<192xf32, #tpu.memory_space<smem>>
    %437 = vector.broadcast %436 : f32 to vector<15x15xf32>
    %438 = arith.mulf %437, %25 : vector<15x15xf32>
    %439 = arith.addf %435, %438 : vector<15x15xf32>
    %c159 = arith.constant 159 : index
    %440 = memref.load %arg0[%c159] : memref<192xf32, #tpu.memory_space<smem>>
    %441 = vector.broadcast %440 : f32 to vector<15x15xf32>
    %442 = arith.mulf %441, %27 : vector<15x15xf32>
    %443 = arith.addf %439, %442 : vector<15x15xf32>
    %444 = math.tanh %443 : vector<15x15xf32>
    %c0_104 = arith.constant 0 : index
    %c1_105 = arith.constant 1 : index
    %c1_106 = arith.constant 1 : index
    %c1_107 = arith.constant 1 : index
    %c0_108 = arith.constant 0 : index
    %c0_109 = arith.constant 0 : index
    %445 = vector.load %arg3[%c0_104, %c1_105, %c1_106, %c1_107, %c0_108, %c0_109] : memref<1x4x2x2x15x15xf32, #tpu.memory_space<vmem>>, vector<1x1x1x1x15x15xf32>
    %446 = vector.shape_cast %445 : vector<1x1x1x1x15x15xf32> to vector<15x15xf32>
    %447 = vector.shape_cast %444 : vector<15x15xf32> to vector<1x1x1x1x15x15xf32>
    tpu.vector_store %arg3[%c0_104, %c1_105, %c1_106, %c1_107, %c0_108, %c0_109], %447 {strides = array<i32>} : memref<1x4x2x2x15x15xf32, #tpu.memory_space<vmem>>, vector<1x1x1x1x15x15xf32>,
    %c2_110 = arith.constant 2 : index
    %448 = memref.load %arg1[%c2_110] : memref<4xf32, #tpu.memory_space<smem>>
    %449 = vector.broadcast %448 : f32 to vector<15x15xf32>
    %c32 = arith.constant 32 : index
    %450 = memref.load %arg0[%c32] : memref<192xf32, #tpu.memory_space<smem>>
    %451 = vector.broadcast %450 : f32 to vector<15x15xf32>
    %452 = arith.mulf %451, %5 : vector<15x15xf32>
    %453 = arith.addf %449, %452 : vector<15x15xf32>
    %c34 = arith.constant 34 : index
    %454 = memref.load %arg0[%c34] : memref<192xf32, #tpu.memory_space<smem>>
    %455 = vector.broadcast %454 : f32 to vector<15x15xf32>
    %456 = arith.mulf %455, %7 : vector<15x15xf32>
    %457 = arith.addf %453, %456 : vector<15x15xf32>
    %c40 = arith.constant 40 : index
    %458 = memref.load %arg0[%c40] : memref<192xf32, #tpu.memory_space<smem>>
    %459 = vector.broadcast %458 : f32 to vector<15x15xf32>
    %460 = arith.mulf %459, %9 : vector<15x15xf32>
    %461 = arith.addf %457, %460 : vector<15x15xf32>
    %c42 = arith.constant 42 : index
    %462 = memref.load %arg0[%c42] : memref<192xf32, #tpu.memory_space<smem>>
    %463 = vector.broadcast %462 : f32 to vector<15x15xf32>
    %464 = arith.mulf %463, %11 : vector<15x15xf32>
    %465 = arith.addf %461, %464 : vector<15x15xf32>
    %c96 = arith.constant 96 : index
    %466 = memref.load %arg0[%c96] : memref<192xf32, #tpu.memory_space<smem>>
    %467 = vector.broadcast %466 : f32 to vector<15x15xf32>
    %468 = arith.mulf %467, %13 : vector<15x15xf32>
    %469 = arith.addf %465, %468 : vector<15x15xf32>
    %c98 = arith.constant 98 : index
    %470 = memref.load %arg0[%c98] : memref<192xf32, #tpu.memory_space<smem>>
    %471 = vector.broadcast %470 : f32 to vector<15x15xf32>
    %472 = arith.mulf %471, %15 : vector<15x15xf32>
    %473 = arith.addf %469, %472 : vector<15x15xf32>
    %c104 = arith.constant 104 : index
    %474 = memref.load %arg0[%c104] : memref<192xf32, #tpu.memory_space<smem>>
    %475 = vector.broadcast %474 : f32 to vector<15x15xf32>
    %476 = arith.mulf %475, %17 : vector<15x15xf32>
    %477 = arith.addf %473, %476 : vector<15x15xf32>
    %c106 = arith.constant 106 : index
    %478 = memref.load %arg0[%c106] : memref<192xf32, #tpu.memory_space<smem>>
    %479 = vector.broadcast %478 : f32 to vector<15x15xf32>
    %480 = arith.mulf %479, %19 : vector<15x15xf32>
    %481 = arith.addf %477, %480 : vector<15x15xf32>
    %c160 = arith.constant 160 : index
    %482 = memref.load %arg0[%c160] : memref<192xf32, #tpu.memory_space<smem>>
    %483 = vector.broadcast %482 : f32 to vector<15x15xf32>
    %484 = arith.mulf %483, %21 : vector<15x15xf32>
    %485 = arith.addf %481, %484 : vector<15x15xf32>
    %c162 = arith.constant 162 : index
    %486 = memref.load %arg0[%c162] : memref<192xf32, #tpu.memory_space<smem>>
    %487 = vector.broadcast %486 : f32 to vector<15x15xf32>
    %488 = arith.mulf %487, %23 : vector<15x15xf32>
    %489 = arith.addf %485, %488 : vector<15x15xf32>
    %c168 = arith.constant 168 : index
    %490 = memref.load %arg0[%c168] : memref<192xf32, #tpu.memory_space<smem>>
    %491 = vector.broadcast %490 : f32 to vector<15x15xf32>
    %492 = arith.mulf %491, %25 : vector<15x15xf32>
    %493 = arith.addf %489, %492 : vector<15x15xf32>
    %c170 = arith.constant 170 : index
    %494 = memref.load %arg0[%c170] : memref<192xf32, #tpu.memory_space<smem>>
    %495 = vector.broadcast %494 : f32 to vector<15x15xf32>
    %496 = arith.mulf %495, %27 : vector<15x15xf32>
    %497 = arith.addf %493, %496 : vector<15x15xf32>
    %498 = math.tanh %497 : vector<15x15xf32>
    %c0_111 = arith.constant 0 : index
    %c2_112 = arith.constant 2 : index
    %c0_113 = arith.constant 0 : index
    %c0_114 = arith.constant 0 : index
    %c0_115 = arith.constant 0 : index
    %c0_116 = arith.constant 0 : index
    %499 = vector.load %arg3[%c0_111, %c2_112, %c0_113, %c0_114, %c0_115, %c0_116] : memref<1x4x2x2x15x15xf32, #tpu.memory_space<vmem>>, vector<1x1x1x1x15x15xf32>
    %500 = vector.shape_cast %499 : vector<1x1x1x1x15x15xf32> to vector<15x15xf32>
    %501 = vector.shape_cast %498 : vector<15x15xf32> to vector<1x1x1x1x15x15xf32>
    tpu.vector_store %arg3[%c0_111, %c2_112, %c0_113, %c0_114, %c0_115, %c0_116], %501 {strides = array<i32>} : memref<1x4x2x2x15x15xf32, #tpu.memory_space<vmem>>, vector<1x1x1x1x15x15xf32>,
    %c33 = arith.constant 33 : index
    %502 = memref.load %arg0[%c33] : memref<192xf32, #tpu.memory_space<smem>>
    %503 = vector.broadcast %502 : f32 to vector<15x15xf32>
    %504 = arith.mulf %503, %5 : vector<15x15xf32>
    %505 = arith.addf %449, %504 : vector<15x15xf32>
    %c35 = arith.constant 35 : index
    %506 = memref.load %arg0[%c35] : memref<192xf32, #tpu.memory_space<smem>>
    %507 = vector.broadcast %506 : f32 to vector<15x15xf32>
    %508 = arith.mulf %507, %7 : vector<15x15xf32>
    %509 = arith.addf %505, %508 : vector<15x15xf32>
    %c41 = arith.constant 41 : index
    %510 = memref.load %arg0[%c41] : memref<192xf32, #tpu.memory_space<smem>>
    %511 = vector.broadcast %510 : f32 to vector<15x15xf32>
    %512 = arith.mulf %511, %9 : vector<15x15xf32>
    %513 = arith.addf %509, %512 : vector<15x15xf32>
    %c43 = arith.constant 43 : index
    %514 = memref.load %arg0[%c43] : memref<192xf32, #tpu.memory_space<smem>>
    %515 = vector.broadcast %514 : f32 to vector<15x15xf32>
    %516 = arith.mulf %515, %11 : vector<15x15xf32>
    %517 = arith.addf %513, %516 : vector<15x15xf32>
    %c97 = arith.constant 97 : index
    %518 = memref.load %arg0[%c97] : memref<192xf32, #tpu.memory_space<smem>>
    %519 = vector.broadcast %518 : f32 to vector<15x15xf32>
    %520 = arith.mulf %519, %13 : vector<15x15xf32>
    %521 = arith.addf %517, %520 : vector<15x15xf32>
    %c99 = arith.constant 99 : index
    %522 = memref.load %arg0[%c99] : memref<192xf32, #tpu.memory_space<smem>>
    %523 = vector.broadcast %522 : f32 to vector<15x15xf32>
    %524 = arith.mulf %523, %15 : vector<15x15xf32>
    %525 = arith.addf %521, %524 : vector<15x15xf32>
    %c105 = arith.constant 105 : index
    %526 = memref.load %arg0[%c105] : memref<192xf32, #tpu.memory_space<smem>>
    %527 = vector.broadcast %526 : f32 to vector<15x15xf32>
    %528 = arith.mulf %527, %17 : vector<15x15xf32>
    %529 = arith.addf %525, %528 : vector<15x15xf32>
    %c107 = arith.constant 107 : index
    %530 = memref.load %arg0[%c107] : memref<192xf32, #tpu.memory_space<smem>>
    %531 = vector.broadcast %530 : f32 to vector<15x15xf32>
    %532 = arith.mulf %531, %19 : vector<15x15xf32>
    %533 = arith.addf %529, %532 : vector<15x15xf32>
    %c161 = arith.constant 161 : index
    %534 = memref.load %arg0[%c161] : memref<192xf32, #tpu.memory_space<smem>>
    %535 = vector.broadcast %534 : f32 to vector<15x15xf32>
    %536 = arith.mulf %535, %21 : vector<15x15xf32>
    %537 = arith.addf %533, %536 : vector<15x15xf32>
    %c163 = arith.constant 163 : index
    %538 = memref.load %arg0[%c163] : memref<192xf32, #tpu.memory_space<smem>>
    %539 = vector.broadcast %538 : f32 to vector<15x15xf32>
    %540 = arith.mulf %539, %23 : vector<15x15xf32>
    %541 = arith.addf %537, %540 : vector<15x15xf32>
    %c169 = arith.constant 169 : index
    %542 = memref.load %arg0[%c169] : memref<192xf32, #tpu.memory_space<smem>>
    %543 = vector.broadcast %542 : f32 to vector<15x15xf32>
    %544 = arith.mulf %543, %25 : vector<15x15xf32>
    %545 = arith.addf %541, %544 : vector<15x15xf32>
    %c171 = arith.constant 171 : index
    %546 = memref.load %arg0[%c171] : memref<192xf32, #tpu.memory_space<smem>>
    %547 = vector.broadcast %546 : f32 to vector<15x15xf32>
    %548 = arith.mulf %547, %27 : vector<15x15xf32>
    %549 = arith.addf %545, %548 : vector<15x15xf32>
    %550 = math.tanh %549 : vector<15x15xf32>
    %c0_117 = arith.constant 0 : index
    %c2_118 = arith.constant 2 : index
    %c0_119 = arith.constant 0 : index
    %c1_120 = arith.constant 1 : index
    %c0_121 = arith.constant 0 : index
    %c0_122 = arith.constant 0 : index
    %551 = vector.load %arg3[%c0_117, %c2_118, %c0_119, %c1_120, %c0_121, %c0_122] : memref<1x4x2x2x15x15xf32, #tpu.memory_space<vmem>>, vector<1x1x1x1x15x15xf32>
    %552 = vector.shape_cast %551 : vector<1x1x1x1x15x15xf32> to vector<15x15xf32>
    %553 = vector.shape_cast %550 : vector<15x15xf32> to vector<1x1x1x1x15x15xf32>
    tpu.vector_store %arg3[%c0_117, %c2_118, %c0_119, %c1_120, %c0_121, %c0_122], %553 {strides = array<i32>} : memref<1x4x2x2x15x15xf32, #tpu.memory_space<vmem>>, vector<1x1x1x1x15x15xf32>,
    %c36 = arith.constant 36 : index
    %554 = memref.load %arg0[%c36] : memref<192xf32, #tpu.memory_space<smem>>
    %555 = vector.broadcast %554 : f32 to vector<15x15xf32>
    %556 = arith.mulf %555, %5 : vector<15x15xf32>
    %557 = arith.addf %449, %556 : vector<15x15xf32>
    %c38 = arith.constant 38 : index
    %558 = memref.load %arg0[%c38] : memref<192xf32, #tpu.memory_space<smem>>
    %559 = vector.broadcast %558 : f32 to vector<15x15xf32>
    %560 = arith.mulf %559, %7 : vector<15x15xf32>
    %561 = arith.addf %557, %560 : vector<15x15xf32>
    %c44 = arith.constant 44 : index
    %562 = memref.load %arg0[%c44] : memref<192xf32, #tpu.memory_space<smem>>
    %563 = vector.broadcast %562 : f32 to vector<15x15xf32>
    %564 = arith.mulf %563, %9 : vector<15x15xf32>
    %565 = arith.addf %561, %564 : vector<15x15xf32>
    %c46 = arith.constant 46 : index
    %566 = memref.load %arg0[%c46] : memref<192xf32, #tpu.memory_space<smem>>
    %567 = vector.broadcast %566 : f32 to vector<15x15xf32>
    %568 = arith.mulf %567, %11 : vector<15x15xf32>
    %569 = arith.addf %565, %568 : vector<15x15xf32>
    %c100 = arith.constant 100 : index
    %570 = memref.load %arg0[%c100] : memref<192xf32, #tpu.memory_space<smem>>
    %571 = vector.broadcast %570 : f32 to vector<15x15xf32>
    %572 = arith.mulf %571, %13 : vector<15x15xf32>
    %573 = arith.addf %569, %572 : vector<15x15xf32>
    %c102 = arith.constant 102 : index
    %574 = memref.load %arg0[%c102] : memref<192xf32, #tpu.memory_space<smem>>
    %575 = vector.broadcast %574 : f32 to vector<15x15xf32>
    %576 = arith.mulf %575, %15 : vector<15x15xf32>
    %577 = arith.addf %573, %576 : vector<15x15xf32>
    %c108 = arith.constant 108 : index
    %578 = memref.load %arg0[%c108] : memref<192xf32, #tpu.memory_space<smem>>
    %579 = vector.broadcast %578 : f32 to vector<15x15xf32>
    %580 = arith.mulf %579, %17 : vector<15x15xf32>
    %581 = arith.addf %577, %580 : vector<15x15xf32>
    %c110 = arith.constant 110 : index
    %582 = memref.load %arg0[%c110] : memref<192xf32, #tpu.memory_space<smem>>
    %583 = vector.broadcast %582 : f32 to vector<15x15xf32>
    %584 = arith.mulf %583, %19 : vector<15x15xf32>
    %585 = arith.addf %581, %584 : vector<15x15xf32>
    %c164 = arith.constant 164 : index
    %586 = memref.load %arg0[%c164] : memref<192xf32, #tpu.memory_space<smem>>
    %587 = vector.broadcast %586 : f32 to vector<15x15xf32>
    %588 = arith.mulf %587, %21 : vector<15x15xf32>
    %589 = arith.addf %585, %588 : vector<15x15xf32>
    %c166 = arith.constant 166 : index
    %590 = memref.load %arg0[%c166] : memref<192xf32, #tpu.memory_space<smem>>
    %591 = vector.broadcast %590 : f32 to vector<15x15xf32>
    %592 = arith.mulf %591, %23 : vector<15x15xf32>
    %593 = arith.addf %589, %592 : vector<15x15xf32>
    %c172 = arith.constant 172 : index
    %594 = memref.load %arg0[%c172] : memref<192xf32, #tpu.memory_space<smem>>
    %595 = vector.broadcast %594 : f32 to vector<15x15xf32>
    %596 = arith.mulf %595, %25 : vector<15x15xf32>
    %597 = arith.addf %593, %596 : vector<15x15xf32>
    %c174 = arith.constant 174 : index
    %598 = memref.load %arg0[%c174] : memref<192xf32, #tpu.memory_space<smem>>
    %599 = vector.broadcast %598 : f32 to vector<15x15xf32>
    %600 = arith.mulf %599, %27 : vector<15x15xf32>
    %601 = arith.addf %597, %600 : vector<15x15xf32>
    %602 = math.tanh %601 : vector<15x15xf32>
    %c0_123 = arith.constant 0 : index
    %c2_124 = arith.constant 2 : index
    %c1_125 = arith.constant 1 : index
    %c0_126 = arith.constant 0 : index
    %c0_127 = arith.constant 0 : index
    %c0_128 = arith.constant 0 : index
    %603 = vector.load %arg3[%c0_123, %c2_124, %c1_125, %c0_126, %c0_127, %c0_128] : memref<1x4x2x2x15x15xf32, #tpu.memory_space<vmem>>, vector<1x1x1x1x15x15xf32>
    %604 = vector.shape_cast %603 : vector<1x1x1x1x15x15xf32> to vector<15x15xf32>
    %605 = vector.shape_cast %602 : vector<15x15xf32> to vector<1x1x1x1x15x15xf32>
    tpu.vector_store %arg3[%c0_123, %c2_124, %c1_125, %c0_126, %c0_127, %c0_128], %605 {strides = array<i32>} : memref<1x4x2x2x15x15xf32, #tpu.memory_space<vmem>>, vector<1x1x1x1x15x15xf32>,
    %c37 = arith.constant 37 : index
    %606 = memref.load %arg0[%c37] : memref<192xf32, #tpu.memory_space<smem>>
    %607 = vector.broadcast %606 : f32 to vector<15x15xf32>
    %608 = arith.mulf %607, %5 : vector<15x15xf32>
    %609 = arith.addf %449, %608 : vector<15x15xf32>
    %c39 = arith.constant 39 : index
    %610 = memref.load %arg0[%c39] : memref<192xf32, #tpu.memory_space<smem>>
    %611 = vector.broadcast %610 : f32 to vector<15x15xf32>
    %612 = arith.mulf %611, %7 : vector<15x15xf32>
    %613 = arith.addf %609, %612 : vector<15x15xf32>
    %c45 = arith.constant 45 : index
    %614 = memref.load %arg0[%c45] : memref<192xf32, #tpu.memory_space<smem>>
    %615 = vector.broadcast %614 : f32 to vector<15x15xf32>
    %616 = arith.mulf %615, %9 : vector<15x15xf32>
    %617 = arith.addf %613, %616 : vector<15x15xf32>
    %c47 = arith.constant 47 : index
    %618 = memref.load %arg0[%c47] : memref<192xf32, #tpu.memory_space<smem>>
    %619 = vector.broadcast %618 : f32 to vector<15x15xf32>
    %620 = arith.mulf %619, %11 : vector<15x15xf32>
    %621 = arith.addf %617, %620 : vector<15x15xf32>
    %c101 = arith.constant 101 : index
    %622 = memref.load %arg0[%c101] : memref<192xf32, #tpu.memory_space<smem>>
    %623 = vector.broadcast %622 : f32 to vector<15x15xf32>
    %624 = arith.mulf %623, %13 : vector<15x15xf32>
    %625 = arith.addf %621, %624 : vector<15x15xf32>
    %c103 = arith.constant 103 : index
    %626 = memref.load %arg0[%c103] : memref<192xf32, #tpu.memory_space<smem>>
    %627 = vector.broadcast %626 : f32 to vector<15x15xf32>
    %628 = arith.mulf %627, %15 : vector<15x15xf32>
    %629 = arith.addf %625, %628 : vector<15x15xf32>
    %c109 = arith.constant 109 : index
    %630 = memref.load %arg0[%c109] : memref<192xf32, #tpu.memory_space<smem>>
    %631 = vector.broadcast %630 : f32 to vector<15x15xf32>
    %632 = arith.mulf %631, %17 : vector<15x15xf32>
    %633 = arith.addf %629, %632 : vector<15x15xf32>
    %c111 = arith.constant 111 : index
    %634 = memref.load %arg0[%c111] : memref<192xf32, #tpu.memory_space<smem>>
    %635 = vector.broadcast %634 : f32 to vector<15x15xf32>
    %636 = arith.mulf %635, %19 : vector<15x15xf32>
    %637 = arith.addf %633, %636 : vector<15x15xf32>
    %c165 = arith.constant 165 : index
    %638 = memref.load %arg0[%c165] : memref<192xf32, #tpu.memory_space<smem>>
    %639 = vector.broadcast %638 : f32 to vector<15x15xf32>
    %640 = arith.mulf %639, %21 : vector<15x15xf32>
    %641 = arith.addf %637, %640 : vector<15x15xf32>
    %c167 = arith.constant 167 : index
    %642 = memref.load %arg0[%c167] : memref<192xf32, #tpu.memory_space<smem>>
    %643 = vector.broadcast %642 : f32 to vector<15x15xf32>
    %644 = arith.mulf %643, %23 : vector<15x15xf32>
    %645 = arith.addf %641, %644 : vector<15x15xf32>
    %c173 = arith.constant 173 : index
    %646 = memref.load %arg0[%c173] : memref<192xf32, #tpu.memory_space<smem>>
    %647 = vector.broadcast %646 : f32 to vector<15x15xf32>
    %648 = arith.mulf %647, %25 : vector<15x15xf32>
    %649 = arith.addf %645, %648 : vector<15x15xf32>
    %c175 = arith.constant 175 : index
    %650 = memref.load %arg0[%c175] : memref<192xf32, #tpu.memory_space<smem>>
    %651 = vector.broadcast %650 : f32 to vector<15x15xf32>
    %652 = arith.mulf %651, %27 : vector<15x15xf32>
    %653 = arith.addf %649, %652 : vector<15x15xf32>
    %654 = math.tanh %653 : vector<15x15xf32>
    %c0_129 = arith.constant 0 : index
    %c2_130 = arith.constant 2 : index
    %c1_131 = arith.constant 1 : index
    %c1_132 = arith.constant 1 : index
    %c0_133 = arith.constant 0 : index
    %c0_134 = arith.constant 0 : index
    %655 = vector.load %arg3[%c0_129, %c2_130, %c1_131, %c1_132, %c0_133, %c0_134] : memref<1x4x2x2x15x15xf32, #tpu.memory_space<vmem>>, vector<1x1x1x1x15x15xf32>
    %656 = vector.shape_cast %655 : vector<1x1x1x1x15x15xf32> to vector<15x15xf32>
    %657 = vector.shape_cast %654 : vector<15x15xf32> to vector<1x1x1x1x15x15xf32>
    tpu.vector_store %arg3[%c0_129, %c2_130, %c1_131, %c1_132, %c0_133, %c0_134], %657 {strides = array<i32>} : memref<1x4x2x2x15x15xf32, #tpu.memory_space<vmem>>, vector<1x1x1x1x15x15xf32>,
    %c3_135 = arith.constant 3 : index
    %658 = memref.load %arg1[%c3_135] : memref<4xf32, #tpu.memory_space<smem>>
    %659 = vector.broadcast %658 : f32 to vector<15x15xf32>
    %c48 = arith.constant 48 : index
    %660 = memref.load %arg0[%c48] : memref<192xf32, #tpu.memory_space<smem>>
    %661 = vector.broadcast %660 : f32 to vector<15x15xf32>
    %662 = arith.mulf %661, %5 : vector<15x15xf32>
    %663 = arith.addf %659, %662 : vector<15x15xf32>
    %c50 = arith.constant 50 : index
    %664 = memref.load %arg0[%c50] : memref<192xf32, #tpu.memory_space<smem>>
    %665 = vector.broadcast %664 : f32 to vector<15x15xf32>
    %666 = arith.mulf %665, %7 : vector<15x15xf32>
    %667 = arith.addf %663, %666 : vector<15x15xf32>
    %c56 = arith.constant 56 : index
    %668 = memref.load %arg0[%c56] : memref<192xf32, #tpu.memory_space<smem>>
    %669 = vector.broadcast %668 : f32 to vector<15x15xf32>
    %670 = arith.mulf %669, %9 : vector<15x15xf32>
    %671 = arith.addf %667, %670 : vector<15x15xf32>
    %c58 = arith.constant 58 : index
    %672 = memref.load %arg0[%c58] : memref<192xf32, #tpu.memory_space<smem>>
    %673 = vector.broadcast %672 : f32 to vector<15x15xf32>
    %674 = arith.mulf %673, %11 : vector<15x15xf32>
    %675 = arith.addf %671, %674 : vector<15x15xf32>
    %c112 = arith.constant 112 : index
    %676 = memref.load %arg0[%c112] : memref<192xf32, #tpu.memory_space<smem>>
    %677 = vector.broadcast %676 : f32 to vector<15x15xf32>
    %678 = arith.mulf %677, %13 : vector<15x15xf32>
    %679 = arith.addf %675, %678 : vector<15x15xf32>
    %c114 = arith.constant 114 : index
    %680 = memref.load %arg0[%c114] : memref<192xf32, #tpu.memory_space<smem>>
    %681 = vector.broadcast %680 : f32 to vector<15x15xf32>
    %682 = arith.mulf %681, %15 : vector<15x15xf32>
    %683 = arith.addf %679, %682 : vector<15x15xf32>
    %c120 = arith.constant 120 : index
    %684 = memref.load %arg0[%c120] : memref<192xf32, #tpu.memory_space<smem>>
    %685 = vector.broadcast %684 : f32 to vector<15x15xf32>
    %686 = arith.mulf %685, %17 : vector<15x15xf32>
    %687 = arith.addf %683, %686 : vector<15x15xf32>
    %c122 = arith.constant 122 : index
    %688 = memref.load %arg0[%c122] : memref<192xf32, #tpu.memory_space<smem>>
    %689 = vector.broadcast %688 : f32 to vector<15x15xf32>
    %690 = arith.mulf %689, %19 : vector<15x15xf32>
    %691 = arith.addf %687, %690 : vector<15x15xf32>
    %c176 = arith.constant 176 : index
    %692 = memref.load %arg0[%c176] : memref<192xf32, #tpu.memory_space<smem>>
    %693 = vector.broadcast %692 : f32 to vector<15x15xf32>
    %694 = arith.mulf %693, %21 : vector<15x15xf32>
    %695 = arith.addf %691, %694 : vector<15x15xf32>
    %c178 = arith.constant 178 : index
    %696 = memref.load %arg0[%c178] : memref<192xf32, #tpu.memory_space<smem>>
    %697 = vector.broadcast %696 : f32 to vector<15x15xf32>
    %698 = arith.mulf %697, %23 : vector<15x15xf32>
    %699 = arith.addf %695, %698 : vector<15x15xf32>
    %c184 = arith.constant 184 : index
    %700 = memref.load %arg0[%c184] : memref<192xf32, #tpu.memory_space<smem>>
    %701 = vector.broadcast %700 : f32 to vector<15x15xf32>
    %702 = arith.mulf %701, %25 : vector<15x15xf32>
    %703 = arith.addf %699, %702 : vector<15x15xf32>
    %c186 = arith.constant 186 : index
    %704 = memref.load %arg0[%c186] : memref<192xf32, #tpu.memory_space<smem>>
    %705 = vector.broadcast %704 : f32 to vector<15x15xf32>
    %706 = arith.mulf %705, %27 : vector<15x15xf32>
    %707 = arith.addf %703, %706 : vector<15x15xf32>
    %708 = math.tanh %707 : vector<15x15xf32>
    %c0_136 = arith.constant 0 : index
    %c3_137 = arith.constant 3 : index
    %c0_138 = arith.constant 0 : index
    %c0_139 = arith.constant 0 : index
    %c0_140 = arith.constant 0 : index
    %c0_141 = arith.constant 0 : index
    %709 = vector.load %arg3[%c0_136, %c3_137, %c0_138, %c0_139, %c0_140, %c0_141] : memref<1x4x2x2x15x15xf32, #tpu.memory_space<vmem>>, vector<1x1x1x1x15x15xf32>
    %710 = vector.shape_cast %709 : vector<1x1x1x1x15x15xf32> to vector<15x15xf32>
    %711 = vector.shape_cast %708 : vector<15x15xf32> to vector<1x1x1x1x15x15xf32>
    tpu.vector_store %arg3[%c0_136, %c3_137, %c0_138, %c0_139, %c0_140, %c0_141], %711 {strides = array<i32>} : memref<1x4x2x2x15x15xf32, #tpu.memory_space<vmem>>, vector<1x1x1x1x15x15xf32>,
    %c49 = arith.constant 49 : index
    %712 = memref.load %arg0[%c49] : memref<192xf32, #tpu.memory_space<smem>>
    %713 = vector.broadcast %712 : f32 to vector<15x15xf32>
    %714 = arith.mulf %713, %5 : vector<15x15xf32>
    %715 = arith.addf %659, %714 : vector<15x15xf32>
    %c51 = arith.constant 51 : index
    %716 = memref.load %arg0[%c51] : memref<192xf32, #tpu.memory_space<smem>>
    %717 = vector.broadcast %716 : f32 to vector<15x15xf32>
    %718 = arith.mulf %717, %7 : vector<15x15xf32>
    %719 = arith.addf %715, %718 : vector<15x15xf32>
    %c57 = arith.constant 57 : index
    %720 = memref.load %arg0[%c57] : memref<192xf32, #tpu.memory_space<smem>>
    %721 = vector.broadcast %720 : f32 to vector<15x15xf32>
    %722 = arith.mulf %721, %9 : vector<15x15xf32>
    %723 = arith.addf %719, %722 : vector<15x15xf32>
    %c59 = arith.constant 59 : index
    %724 = memref.load %arg0[%c59] : memref<192xf32, #tpu.memory_space<smem>>
    %725 = vector.broadcast %724 : f32 to vector<15x15xf32>
    %726 = arith.mulf %725, %11 : vector<15x15xf32>
    %727 = arith.addf %723, %726 : vector<15x15xf32>
    %c113 = arith.constant 113 : index
    %728 = memref.load %arg0[%c113] : memref<192xf32, #tpu.memory_space<smem>>
    %729 = vector.broadcast %728 : f32 to vector<15x15xf32>
    %730 = arith.mulf %729, %13 : vector<15x15xf32>
    %731 = arith.addf %727, %730 : vector<15x15xf32>
    %c115 = arith.constant 115 : index
    %732 = memref.load %arg0[%c115] : memref<192xf32, #tpu.memory_space<smem>>
    %733 = vector.broadcast %732 : f32 to vector<15x15xf32>
    %734 = arith.mulf %733, %15 : vector<15x15xf32>
    %735 = arith.addf %731, %734 : vector<15x15xf32>
    %c121 = arith.constant 121 : index
    %736 = memref.load %arg0[%c121] : memref<192xf32, #tpu.memory_space<smem>>
    %737 = vector.broadcast %736 : f32 to vector<15x15xf32>
    %738 = arith.mulf %737, %17 : vector<15x15xf32>
    %739 = arith.addf %735, %738 : vector<15x15xf32>
    %c123 = arith.constant 123 : index
    %740 = memref.load %arg0[%c123] : memref<192xf32, #tpu.memory_space<smem>>
    %741 = vector.broadcast %740 : f32 to vector<15x15xf32>
    %742 = arith.mulf %741, %19 : vector<15x15xf32>
    %743 = arith.addf %739, %742 : vector<15x15xf32>
    %c177 = arith.constant 177 : index
    %744 = memref.load %arg0[%c177] : memref<192xf32, #tpu.memory_space<smem>>
    %745 = vector.broadcast %744 : f32 to vector<15x15xf32>
    %746 = arith.mulf %745, %21 : vector<15x15xf32>
    %747 = arith.addf %743, %746 : vector<15x15xf32>
    %c179 = arith.constant 179 : index
    %748 = memref.load %arg0[%c179] : memref<192xf32, #tpu.memory_space<smem>>
    %749 = vector.broadcast %748 : f32 to vector<15x15xf32>
    %750 = arith.mulf %749, %23 : vector<15x15xf32>
    %751 = arith.addf %747, %750 : vector<15x15xf32>
    %c185 = arith.constant 185 : index
    %752 = memref.load %arg0[%c185] : memref<192xf32, #tpu.memory_space<smem>>
    %753 = vector.broadcast %752 : f32 to vector<15x15xf32>
    %754 = arith.mulf %753, %25 : vector<15x15xf32>
    %755 = arith.addf %751, %754 : vector<15x15xf32>
    %c187 = arith.constant 187 : index
    %756 = memref.load %arg0[%c187] : memref<192xf32, #tpu.memory_space<smem>>
    %757 = vector.broadcast %756 : f32 to vector<15x15xf32>
    %758 = arith.mulf %757, %27 : vector<15x15xf32>
    %759 = arith.addf %755, %758 : vector<15x15xf32>
    %760 = math.tanh %759 : vector<15x15xf32>
    %c0_142 = arith.constant 0 : index
    %c3_143 = arith.constant 3 : index
    %c0_144 = arith.constant 0 : index
    %c1_145 = arith.constant 1 : index
    %c0_146 = arith.constant 0 : index
    %c0_147 = arith.constant 0 : index
    %761 = vector.load %arg3[%c0_142, %c3_143, %c0_144, %c1_145, %c0_146, %c0_147] : memref<1x4x2x2x15x15xf32, #tpu.memory_space<vmem>>, vector<1x1x1x1x15x15xf32>
    %762 = vector.shape_cast %761 : vector<1x1x1x1x15x15xf32> to vector<15x15xf32>
    %763 = vector.shape_cast %760 : vector<15x15xf32> to vector<1x1x1x1x15x15xf32>
    tpu.vector_store %arg3[%c0_142, %c3_143, %c0_144, %c1_145, %c0_146, %c0_147], %763 {strides = array<i32>} : memref<1x4x2x2x15x15xf32, #tpu.memory_space<vmem>>, vector<1x1x1x1x15x15xf32>,
    %c52 = arith.constant 52 : index
    %764 = memref.load %arg0[%c52] : memref<192xf32, #tpu.memory_space<smem>>
    %765 = vector.broadcast %764 : f32 to vector<15x15xf32>
    %766 = arith.mulf %765, %5 : vector<15x15xf32>
    %767 = arith.addf %659, %766 : vector<15x15xf32>
    %c54 = arith.constant 54 : index
    %768 = memref.load %arg0[%c54] : memref<192xf32, #tpu.memory_space<smem>>
    %769 = vector.broadcast %768 : f32 to vector<15x15xf32>
    %770 = arith.mulf %769, %7 : vector<15x15xf32>
    %771 = arith.addf %767, %770 : vector<15x15xf32>
    %c60 = arith.constant 60 : index
    %772 = memref.load %arg0[%c60] : memref<192xf32, #tpu.memory_space<smem>>
    %773 = vector.broadcast %772 : f32 to vector<15x15xf32>
    %774 = arith.mulf %773, %9 : vector<15x15xf32>
    %775 = arith.addf %771, %774 : vector<15x15xf32>
    %c62 = arith.constant 62 : index
    %776 = memref.load %arg0[%c62] : memref<192xf32, #tpu.memory_space<smem>>
    %777 = vector.broadcast %776 : f32 to vector<15x15xf32>
    %778 = arith.mulf %777, %11 : vector<15x15xf32>
    %779 = arith.addf %775, %778 : vector<15x15xf32>
    %c116 = arith.constant 116 : index
    %780 = memref.load %arg0[%c116] : memref<192xf32, #tpu.memory_space<smem>>
    %781 = vector.broadcast %780 : f32 to vector<15x15xf32>
    %782 = arith.mulf %781, %13 : vector<15x15xf32>
    %783 = arith.addf %779, %782 : vector<15x15xf32>
    %c118 = arith.constant 118 : index
    %784 = memref.load %arg0[%c118] : memref<192xf32, #tpu.memory_space<smem>>
    %785 = vector.broadcast %784 : f32 to vector<15x15xf32>
    %786 = arith.mulf %785, %15 : vector<15x15xf32>
    %787 = arith.addf %783, %786 : vector<15x15xf32>
    %c124 = arith.constant 124 : index
    %788 = memref.load %arg0[%c124] : memref<192xf32, #tpu.memory_space<smem>>
    %789 = vector.broadcast %788 : f32 to vector<15x15xf32>
    %790 = arith.mulf %789, %17 : vector<15x15xf32>
    %791 = arith.addf %787, %790 : vector<15x15xf32>
    %c126 = arith.constant 126 : index
    %792 = memref.load %arg0[%c126] : memref<192xf32, #tpu.memory_space<smem>>
    %793 = vector.broadcast %792 : f32 to vector<15x15xf32>
    %794 = arith.mulf %793, %19 : vector<15x15xf32>
    %795 = arith.addf %791, %794 : vector<15x15xf32>
    %c180 = arith.constant 180 : index
    %796 = memref.load %arg0[%c180] : memref<192xf32, #tpu.memory_space<smem>>
    %797 = vector.broadcast %796 : f32 to vector<15x15xf32>
    %798 = arith.mulf %797, %21 : vector<15x15xf32>
    %799 = arith.addf %795, %798 : vector<15x15xf32>
    %c182 = arith.constant 182 : index
    %800 = memref.load %arg0[%c182] : memref<192xf32, #tpu.memory_space<smem>>
    %801 = vector.broadcast %800 : f32 to vector<15x15xf32>
    %802 = arith.mulf %801, %23 : vector<15x15xf32>
    %803 = arith.addf %799, %802 : vector<15x15xf32>
    %c188 = arith.constant 188 : index
    %804 = memref.load %arg0[%c188] : memref<192xf32, #tpu.memory_space<smem>>
    %805 = vector.broadcast %804 : f32 to vector<15x15xf32>
    %806 = arith.mulf %805, %25 : vector<15x15xf32>
    %807 = arith.addf %803, %806 : vector<15x15xf32>
    %c190 = arith.constant 190 : index
    %808 = memref.load %arg0[%c190] : memref<192xf32, #tpu.memory_space<smem>>
    %809 = vector.broadcast %808 : f32 to vector<15x15xf32>
    %810 = arith.mulf %809, %27 : vector<15x15xf32>
    %811 = arith.addf %807, %810 : vector<15x15xf32>
    %812 = math.tanh %811 : vector<15x15xf32>
    %c0_148 = arith.constant 0 : index
    %c3_149 = arith.constant 3 : index
    %c1_150 = arith.constant 1 : index
    %c0_151 = arith.constant 0 : index
    %c0_152 = arith.constant 0 : index
    %c0_153 = arith.constant 0 : index
    %813 = vector.load %arg3[%c0_148, %c3_149, %c1_150, %c0_151, %c0_152, %c0_153] : memref<1x4x2x2x15x15xf32, #tpu.memory_space<vmem>>, vector<1x1x1x1x15x15xf32>
    %814 = vector.shape_cast %813 : vector<1x1x1x1x15x15xf32> to vector<15x15xf32>
    %815 = vector.shape_cast %812 : vector<15x15xf32> to vector<1x1x1x1x15x15xf32>
    tpu.vector_store %arg3[%c0_148, %c3_149, %c1_150, %c0_151, %c0_152, %c0_153], %815 {strides = array<i32>} : memref<1x4x2x2x15x15xf32, #tpu.memory_space<vmem>>, vector<1x1x1x1x15x15xf32>,
    %c53 = arith.constant 53 : index
    %816 = memref.load %arg0[%c53] : memref<192xf32, #tpu.memory_space<smem>>
    %817 = vector.broadcast %816 : f32 to vector<15x15xf32>
    %818 = arith.mulf %817, %5 : vector<15x15xf32>
    %819 = arith.addf %659, %818 : vector<15x15xf32>
    %c55 = arith.constant 55 : index
    %820 = memref.load %arg0[%c55] : memref<192xf32, #tpu.memory_space<smem>>
    %821 = vector.broadcast %820 : f32 to vector<15x15xf32>
    %822 = arith.mulf %821, %7 : vector<15x15xf32>
    %823 = arith.addf %819, %822 : vector<15x15xf32>
    %c61 = arith.constant 61 : index
    %824 = memref.load %arg0[%c61] : memref<192xf32, #tpu.memory_space<smem>>
    %825 = vector.broadcast %824 : f32 to vector<15x15xf32>
    %826 = arith.mulf %825, %9 : vector<15x15xf32>
    %827 = arith.addf %823, %826 : vector<15x15xf32>
    %c63 = arith.constant 63 : index
    %828 = memref.load %arg0[%c63] : memref<192xf32, #tpu.memory_space<smem>>
    %829 = vector.broadcast %828 : f32 to vector<15x15xf32>
    %830 = arith.mulf %829, %11 : vector<15x15xf32>
    %831 = arith.addf %827, %830 : vector<15x15xf32>
    %c117 = arith.constant 117 : index
    %832 = memref.load %arg0[%c117] : memref<192xf32, #tpu.memory_space<smem>>
    %833 = vector.broadcast %832 : f32 to vector<15x15xf32>
    %834 = arith.mulf %833, %13 : vector<15x15xf32>
    %835 = arith.addf %831, %834 : vector<15x15xf32>
    %c119 = arith.constant 119 : index
    %836 = memref.load %arg0[%c119] : memref<192xf32, #tpu.memory_space<smem>>
    %837 = vector.broadcast %836 : f32 to vector<15x15xf32>
    %838 = arith.mulf %837, %15 : vector<15x15xf32>
    %839 = arith.addf %835, %838 : vector<15x15xf32>
    %c125 = arith.constant 125 : index
    %840 = memref.load %arg0[%c125] : memref<192xf32, #tpu.memory_space<smem>>
    %841 = vector.broadcast %840 : f32 to vector<15x15xf32>
    %842 = arith.mulf %841, %17 : vector<15x15xf32>
    %843 = arith.addf %839, %842 : vector<15x15xf32>
    %c127 = arith.constant 127 : index
    %844 = memref.load %arg0[%c127] : memref<192xf32, #tpu.memory_space<smem>>
    %845 = vector.broadcast %844 : f32 to vector<15x15xf32>
    %846 = arith.mulf %845, %19 : vector<15x15xf32>
    %847 = arith.addf %843, %846 : vector<15x15xf32>
    %c181 = arith.constant 181 : index
    %848 = memref.load %arg0[%c181] : memref<192xf32, #tpu.memory_space<smem>>
    %849 = vector.broadcast %848 : f32 to vector<15x15xf32>
    %850 = arith.mulf %849, %21 : vector<15x15xf32>
    %851 = arith.addf %847, %850 : vector<15x15xf32>
    %c183 = arith.constant 183 : index
    %852 = memref.load %arg0[%c183] : memref<192xf32, #tpu.memory_space<smem>>
    %853 = vector.broadcast %852 : f32 to vector<15x15xf32>
    %854 = arith.mulf %853, %23 : vector<15x15xf32>
    %855 = arith.addf %851, %854 : vector<15x15xf32>
    %c189 = arith.constant 189 : index
    %856 = memref.load %arg0[%c189] : memref<192xf32, #tpu.memory_space<smem>>
    %857 = vector.broadcast %856 : f32 to vector<15x15xf32>
    %858 = arith.mulf %857, %25 : vector<15x15xf32>
    %859 = arith.addf %855, %858 : vector<15x15xf32>
    %c191 = arith.constant 191 : index
    %860 = memref.load %arg0[%c191] : memref<192xf32, #tpu.memory_space<smem>>
    %861 = vector.broadcast %860 : f32 to vector<15x15xf32>
    %862 = arith.mulf %861, %27 : vector<15x15xf32>
    %863 = arith.addf %859, %862 : vector<15x15xf32>
    %864 = math.tanh %863 : vector<15x15xf32>
    %c0_154 = arith.constant 0 : index
    %c3_155 = arith.constant 3 : index
    %c1_156 = arith.constant 1 : index
    %c1_157 = arith.constant 1 : index
    %c0_158 = arith.constant 0 : index
    %c0_159 = arith.constant 0 : index
    %865 = vector.load %arg3[%c0_154, %c3_155, %c1_156, %c1_157, %c0_158, %c0_159] : memref<1x4x2x2x15x15xf32, #tpu.memory_space<vmem>>, vector<1x1x1x1x15x15xf32>
    %866 = vector.shape_cast %865 : vector<1x1x1x1x15x15xf32> to vector<15x15xf32>
    %867 = vector.shape_cast %864 : vector<15x15xf32> to vector<1x1x1x1x15x15xf32>
    tpu.vector_store %arg3[%c0_154, %c3_155, %c1_156, %c1_157, %c0_158, %c0_159], %867 {strides = array<i32>} : memref<1x4x2x2x15x15xf32, #tpu.memory_space<vmem>>, vector<1x1x1x1x15x15xf32>,
    return
  }
}

</mosaic_0001>

<llo_original>
// kernel: conv_transpose_tanh.1
$region0: #{conv_transpose_tanh.1}
  #allocation0 [shape = 'u32[]', space=smem, size = 0x4, offset = 0x4, fixed_abs, tag = 'smem constant byte address 0x4 - core index']
  #allocation1 [shape = 'u32[144,128]{1,0:T(1,128)}', space=vmem, size = 0x12000, scoped, tag = 'internal scratch']
  #allocation2 [shape = 'f32[1,3,16,16]{3,2,1,0:T(8,128)}', space=vmem, size = 0x6000, scoped, tag = 'scratch operand']
  %s0 = inlined_call_operand.vmem [shape: f32[192], index: 0, kind: input, shape index: {}]
  %s1 = inlined_call_operand.vmem [shape: f32[4], index: 1, kind: input, shape index: {}]
  %s2 = inlined_call_operand.vmem [shape: f32[1,3,14,14], index: 2, kind: input, shape index: {}]
  %s3 = inlined_call_operand.vmem [shape: f32[1,4,2,2,15,15], index: 3, kind: output, shape index: {}]
  %s4 = sld [smem:[#allocation0]]
  $region30: #{conv_transpose_tanh.1} parent=0
    _
  %s6 = ssub.s32 1, %s4
  %s7 = scalar_select 0, %s6, %s4
  $region1: #{conv_transpose_tanh.1} parent=0
    #allocation3 [shape = 'u8[1024]{0}', space=smem, size = 0x400, scoped, tag = 'input window, operand 0, single buffered']
    #allocation4 [shape = 's32[1]{0}', space=sflag, size = 0x4, scoped, tag = 'scoped memory for conv_transpose_tanh.1']
    #allocation5 [shape = 'u8[512]{0}', space=smem, size = 0x200, scoped, tag = 'input window, operand 1, single buffered']
    #allocation6 [shape = 's32[1]{0}', space=sflag, size = 0x4, scoped, tag = 'scoped memory for conv_transpose_tanh.1']
    %8 = vsyncpa [#allocation4], 0
    %9 = vsyncpa [#allocation6], 0
    // Predicated region
    $region2: #{conv_transpose_tanh.1} parent=1 // pred_check
      _
    $region3: #{conv_transpose_tanh.1} parent=1 // pred_check_branch
      %11 = sbr.rel (0) target = $region5
    $region4: #{conv_transpose_tanh.1} parent=1 // pred_region
      %s13 = ssub.s32 32, 32
      %14 = vsyncadd [#allocation4], %s13
      %s16 = sshll.u32 %s0, 4
      %s17 = int_to_ptr.vmem [resolvable:$true] %s16
      %19 = dma.vmem_to_smem %s17, 32, [#allocation3], [#allocation4]
    $region5: #{conv_transpose_tanh.1} parent=1 // pred_fallthru
      _
    // Predicated region
    $region6: #{conv_transpose_tanh.1} parent=1 // pred_check
      _
    $region7: #{conv_transpose_tanh.1} parent=1 // pred_check_branch
      %21 = sbr.rel (0) target = $region9
    $region8: #{conv_transpose_tanh.1} parent=1 // pred_region
      %s23 = ssub.s32 16, 16
      %24 = vsyncadd [#allocation6], %s23
      %s26 = sshll.u32 %s1, 4
      %s27 = int_to_ptr.vmem [resolvable:$true] %s26
      %29 = dma.vmem_to_smem %s27, 16, [#allocation5], [#allocation6]
    $region9: #{conv_transpose_tanh.1} parent=1 // pred_fallthru
      _
    // Predicated region
    $region10: #{conv_transpose_tanh.1} parent=1 // pred_check
      _
    $region11: #{conv_transpose_tanh.1} parent=1 // pred_check_branch
      %31 = sbr.rel (0) target = $region13
    $region12: #{conv_transpose_tanh.1} parent=1 // pred_region
      _
    $region13: #{conv_transpose_tanh.1} parent=1 // pred_fallthru
      _
    // Predicated region
    $region14: #{conv_transpose_tanh.1} parent=1 // pred_check
      _
    $region15: #{conv_transpose_tanh.1} parent=1 // pred_check_branch
      %33 = sbr.rel (0) target = $region17
    $region16: #{conv_transpose_tanh.1} parent=1 // pred_region
      %34 = dma.done [#allocation4], 32
    $region17: #{conv_transpose_tanh.1} parent=1 // pred_fallthru
      _
    // Predicated region
    $region18: #{conv_transpose_tanh.1} parent=1 // pred_check
      _
    $region19: #{conv_transpose_tanh.1} parent=1 // pred_check_branch
      %36 = sbr.rel (0) target = $region21
    $region20: #{conv_transpose_tanh.1} parent=1 // pred_region
      %37 = dma.done [#allocation6], 16
    $region21: #{conv_transpose_tanh.1} parent=1 // pred_fallthru
      _
    %38 = sfence
    %vm39 = vcmask 130048
    %40 = vst.msk [vmem:[#allocation2] sm:$0xff] %vm39, 0.0
    %41 = vst.msk [vmem:[#allocation2 + $0x8] sm:$0xff] %vm39, 0.0
    %42 = vst.msk [vmem:[#allocation2 + $0x10] sm:$0xff] %vm39, 0.0
    %43 = vst.msk [vmem:[#allocation2 + $0x18] sm:$0xff] %vm39, 0.0
    %44 = vst.msk [vmem:[#allocation2 + $0x20] sm:$0xff] %vm39, 0.0
    %45 = vst.msk [vmem:[#allocation2 + $0x28] sm:$0xff] %vm39, 0.0
    %v46 = vld [vmem:[%s2] sm:$0xff]
    %v47 = vld [vmem:[%s2 + $0x8] sm:$0x3f]
    %v48 = vld [vmem:[%s2 + $0x10] sm:$0xff]
    %v49 = vld [vmem:[%s2 + $0x18] sm:$0x3f]
    %v50 = vld [vmem:[%s2 + $0x20] sm:$0xff]
    %v51 = vld [vmem:[%s2 + $0x28] sm:$0x3f]
    %58 = vrot.lane.b32.xlu0 %v46, 1
    %v59 = vpop.permute.xlu0 %58
    %60 = vrot.lane.b32.xlu0 %v47, 1
    %v61 = vpop.permute.xlu0 %60
    %62 = vrot.lane.b32.xlu0 %v48, 1
    %v63 = vpop.permute.xlu0 %62
    %64 = vrot.lane.b32.xlu0 %v49, 1
    %v65 = vpop.permute.xlu0 %64
    %66 = vrot.lane.b32.xlu0 %v50, 1
    %v67 = vpop.permute.xlu0 %66
    %68 = vrot.lane.b32.xlu0 %v51, 1
    %v69 = vpop.permute.xlu0 %68
    %vm76 = vcmask 121864
    %77 = vst.msk [vmem:[#allocation2 + $0x1] sm:$0xff] %vm76, %v59
    %vm78 = vcmask 119816
    %79 = vst.msk [vmem:[#allocation2 + $0x9] sm:$0x3f] %vm78, %v61
    %80 = vst.msk [vmem:[#allocation2 + $0x11] sm:$0xff] %vm76, %v63
    %81 = vst.msk [vmem:[#allocation2 + $0x19] sm:$0x3f] %vm78, %v65
    %82 = vst.msk [vmem:[#allocation2 + $0x21] sm:$0xff] %vm76, %v67
    %83 = vst.msk [vmem:[#allocation2 + $0x29] sm:$0x3f] %vm78, %v69
    %v84 = vld [vmem:[#allocation2 + $0x1] sm:$0xff]
    %v85 = vld [vmem:[#allocation2 + $0x9] sm:$0x7f]
    %v86 = vld [vmem:[#allocation2] sm:$0xff]
    %v87 = vld [vmem:[#allocation2 + $0x8] sm:$0x7f]
    %s88 = scalar_lea.vmem [#allocation2], 16
    %v89 = vld [vmem:[%s88 + $0x1] sm:$0xff]
    %v90 = vld [vmem:[%s88 + $0x9] sm:$0x7f]
    %v91 = vld [vmem:[%s88] sm:$0xff]
    %v92 = vld [vmem:[%s88 + $0x8] sm:$0x7f]
    %s93 = scalar_lea.vmem [#allocation2], 32
    %v94 = vld [vmem:[%s93 + $0x1] sm:$0xff]
    %v95 = vld [vmem:[%s93 + $0x9] sm:$0x7f]
    %v96 = vld [vmem:[%s93] sm:$0xff]
    %v97 = vld [vmem:[%s93 + $0x8] sm:$0x7f]
    %s98 = sld [smem:[#allocation5]]
    %v99 = vstv %s98
    %s100 = sld [smem:[#allocation3]]
    %v101 = vstv %s100
    %v102 = vmul.f32 %v101, %v84
    %v103 = vmul.f32 %v101, %v85
    %v104 = vadd.f32 %v99, %v102
    %v105 = vadd.f32 %v99, %v103
    %s106 = sld [smem:[#allocation3 + $0x2]]
    %v107 = vstv %s106
    %v108 = vmul.f32 %v107, %v84
    %v109 = vmul.f32 %v107, %v85
    %112 = vrot.lane.b32.xlu0 %v108, 1
    %v113 = vpop.permute.xlu0 %112
    %114 = vrot.lane.b32.xlu0 %v109, 1
    %v115 = vpop.permute.xlu0 %114
    %v118 = vadd.f32 %v104, %v113
    %v119 = vadd.f32 %v105, %v115
    %s120 = sld [smem:[#allocation3 + $0x8]]
    %v121 = vstv %s120
    %v122 = vmul.f32 %v121, %v86
    %v123 = vmul.f32 %v121, %v87
    %v124 = vadd.f32 %v118, %v122
    %v125 = vadd.f32 %v119, %v123
    %s126 = sld [smem:[#allocation3 + $0xa]]
    %v127 = vstv %s126
    %v128 = vmul.f32 %v127, %v86
    %v129 = vmul.f32 %v127, %v87
    %132 = vrot.lane.b32.xlu0 %v128, 1
    %v133 = vpop.permute.xlu0 %132
    %134 = vrot.lane.b32.xlu0 %v129, 1
    %v135 = vpop.permute.xlu0 %134
    %v138 = vadd.f32 %v124, %v133
    %v139 = vadd.f32 %v125, %v135
    %s140 = sld [smem:[#allocation3 + $0x40]]
    %v141 = vstv %s140
    %v142 = vmul.f32 %v141, %v89
    %v143 = vmul.f32 %v141, %v90
    %v144 = vadd.f32 %v138, %v142
    %v145 = vadd.f32 %v139, %v143
    %s146 = sld [smem:[#allocation3 + $0x42]]
    %v147 = vstv %s146
    %v148 = vmul.f32 %v147, %v89
    %v149 = vmul.f32 %v147, %v90
    %152 = vrot.lane.b32.xlu0 %v148, 1
    %v153 = vpop.permute.xlu0 %152
    %154 = vrot.lane.b32.xlu0 %v149, 1
    %v155 = vpop.permute.xlu0 %154
    %v158 = vadd.f32 %v144, %v153
    %v159 = vadd.f32 %v145, %v155
    %s160 = sld [smem:[#allocation3 + $0x48]]
    %v161 = vstv %s160
    %v162 = vmul.f32 %v161, %v91
    %v163 = vmul.f32 %v161, %v92
    %v164 = vadd.f32 %v158, %v162
    %v165 = vadd.f32 %v159, %v163
    %s166 = sld [smem:[#allocation3 + $0x4a]]
    %v167 = vstv %s166
    %v168 = vmul.f32 %v167, %v91
    %v169 = vmul.f32 %v167, %v92
    %172 = vrot.lane.b32.xlu0 %v168, 1
    %v173 = vpop.permute.xlu0 %172
    %174 = vrot.lane.b32.xlu0 %v169, 1
    %v175 = vpop.permute.xlu0 %174
    %v178 = vadd.f32 %v164, %v173
    %v179 = vadd.f32 %v165, %v175
    %s180 = sld [smem:[#allocation3 + $0x80]]
    %v181 = vstv %s180
    %v182 = vmul.f32 %v181, %v94
    %v183 = vmul.f32 %v181, %v95
    %v184 = vadd.f32 %v178, %v182
    %v185 = vadd.f32 %v179, %v183
    %s186 = sld [smem:[#allocation3 + $0x82]]
    %v187 = vstv %s186
    %v188 = vmul.f32 %v187, %v94
    %v189 = vmul.f32 %v187, %v95
    %192 = vrot.lane.b32.xlu0 %v188, 1
    %v193 = vpop.permute.xlu0 %192
    %194 = vrot.lane.b32.xlu0 %v189, 1
    %v195 = vpop.permute.xlu0 %194
    %v198 = vadd.f32 %v184, %v193
    %v199 = vadd.f32 %v185, %v195
    %s200 = sld [smem:[#allocation3 + $0x88]]
    %v201 = vstv %s200
    %v202 = vmul.f32 %v201, %v96
    %v203 = vmul.f32 %v201, %v97
    %v204 = vadd.f32 %v198, %v202
    %v205 = vadd.f32 %v199, %v203
    %s206 = sld [smem:[#allocation3 + $0x8a]]
    %v207 = vstv %s206
    %v208 = vmul.f32 %v207, %v96
    %v209 = vmul.f32 %v207, %v97
    %212 = vrot.lane.b32.xlu0 %v208, 1
    %v213 = vpop.permute.xlu0 %212
    %214 = vrot.lane.b32.xlu0 %v209, 1
    %v215 = vpop.permute.xlu0 %214
    %v218 = vadd.f32 %v204, %v213
    %v219 = vadd.f32 %v205, %v215
    %v220 = vtanh.pop %v218
    %v221 = vtanh.pop %v219
    %224 = vrot.lane.b32.xlu0 %v220, 127
    %v225 = vpop.permute.xlu0 %224
    %226 = vrot.lane.b32.xlu0 %v221, 127
    %v227 = vpop.permute.xlu0 %226
    %vm230 = vcmask 121856
    %231 = vst.msk [vmem:[%s3] sm:$0xff] %vm230, %v225
    %vm232 = vcmask 120832
    %233 = vst.msk [vmem:[%s3 + $0x8] sm:$0x7f] %vm232, %v227
    %s234 = sld [smem:[#allocation3 + $0x1]]
    %v235 = vstv %s234
    %v236 = vmul.f32 %v235, %v84
    %v237 = vmul.f32 %v235, %v85
    %v238 = vadd.f32 %v99, %v236
    %v239 = vadd.f32 %v99, %v237
    %s240 = sld [smem:[#allocation3 + $0x3]]
    %v241 = vstv %s240
    %v242 = vmul.f32 %v241, %v84
    %v243 = vmul.f32 %v241, %v85
    %246 = vrot.lane.b32.xlu0 %v242, 1
    %v247 = vpop.permute.xlu0 %246
    %248 = vrot.lane.b32.xlu0 %v243, 1
    %v249 = vpop.permute.xlu0 %248
    %v252 = vadd.f32 %v238, %v247
    %v253 = vadd.f32 %v239, %v249
    %s254 = sld [smem:[#allocation3 + $0x9]]
    %v255 = vstv %s254
    %v256 = vmul.f32 %v255, %v86
    %v257 = vmul.f32 %v255, %v87
    %v258 = vadd.f32 %v252, %v256
    %v259 = vadd.f32 %v253, %v257
    %s260 = sld [smem:[#allocation3 + $0xb]]
    %v261 = vstv %s260
    %v262 = vmul.f32 %v261, %v86
    %v263 = vmul.f32 %v261, %v87
    %266 = vrot.lane.b32.xlu0 %v262, 1
    %v267 = vpop.permute.xlu0 %266
    %268 = vrot.lane.b32.xlu0 %v263, 1
    %v269 = vpop.permute.xlu0 %268
    %v272 = vadd.f32 %v258, %v267
    %v273 = vadd.f32 %v259, %v269
    %s274 = sld [smem:[#allocation3 + $0x41]]
    %v275 = vstv %s274
    %v276 = vmul.f32 %v275, %v89
    %v277 = vmul.f32 %v275, %v90
    %v278 = vadd.f32 %v272, %v276
    %v279 = vadd.f32 %v273, %v277
    %s280 = sld [smem:[#allocation3 + $0x43]]
    %v281 = vstv %s280
    %v282 = vmul.f32 %v281, %v89
    %v283 = vmul.f32 %v281, %v90
    %286 = vrot.lane.b32.xlu0 %v282, 1
    %v287 = vpop.permute.xlu0 %286
    %288 = vrot.lane.b32.xlu0 %v283, 1
    %v289 = vpop.permute.xlu0 %288
    %v292 = vadd.f32 %v278, %v287
    %v293 = vadd.f32 %v279, %v289
    %s294 = sld [smem:[#allocation3 + $0x49]]
    %v295 = vstv %s294
    %v296 = vmul.f32 %v295, %v91
    %v297 = vmul.f32 %v295, %v92
    %v298 = vadd.f32 %v292, %v296
    %v299 = vadd.f32 %v293, %v297
    %s300 = sld [smem:[#allocation3 + $0x4b]]
    %v301 = vstv %s300
    %v302 = vmul.f32 %v301, %v91
    %v303 = vmul.f32 %v301, %v92
    %306 = vrot.lane.b32.xlu0 %v302, 1
    %v307 = vpop.permute.xlu0 %306
    %308 = vrot.lane.b32.xlu0 %v303, 1
    %v309 = vpop.permute.xlu0 %308
    %v312 = vadd.f32 %v298, %v307
    %v313 = vadd.f32 %v299, %v309
    %s314 = sld [smem:[#allocation3 + $0x81]]
    %v315 = vstv %s314
    %v316 = vmul.f32 %v315, %v94
    %v317 = vmul.f32 %v315, %v95
    %v318 = vadd.f32 %v312, %v316
    %v319 = vadd.f32 %v313, %v317
    %s320 = sld [smem:[#allocation3 + $0x83]]
    %v321 = vstv %s320
    %v322 = vmul.f32 %v321, %v94
    %v323 = vmul.f32 %v321, %v95
    %326 = vrot.lane.b32.xlu0 %v322, 1
    %v327 = vpop.permute.xlu0 %326
    %328 = vrot.lane.b32.xlu0 %v323, 1
    %v329 = vpop.permute.xlu0 %328
    %v332 = vadd.f32 %v318, %v327
    %v333 = vadd.f32 %v319, %v329
    %s334 = sld [smem:[#allocation3 + $0x89]]
    %v335 = vstv %s334
    %v336 = vmul.f32 %v335, %v96
    %v337 = vmul.f32 %v335, %v97
    %v338 = vadd.f32 %v332, %v336
    %v339 = vadd.f32 %v333, %v337
    %s340 = sld [smem:[#allocation3 + $0x8b]]
    %v341 = vstv %s340
    %v342 = vmul.f32 %v341, %v96
    %v343 = vmul.f32 %v341, %v97
    %346 = vrot.lane.b32.xlu0 %v342, 1
    %v347 = vpop.permute.xlu0 %346
    %348 = vrot.lane.b32.xlu0 %v343, 1
    %v349 = vpop.permute.xlu0 %348
    %v352 = vadd.f32 %v338, %v347
    %v353 = vadd.f32 %v339, %v349
    %v354 = vtanh.pop %v352
    %v355 = vtanh.pop %v353
    %358 = vrot.lane.b32.xlu0 %v354, 127
    %v359 = vpop.permute.xlu0 %358
    %360 = vrot.lane.b32.xlu0 %v355, 127
    %v361 = vpop.permute.xlu0 %360
    %s364 = scalar_lea.vmem %s3, 16
    %365 = vst.msk [vmem:[%s364] sm:$0xff] %vm230, %v359
    %366 = vst.msk [vmem:[%s364 + $0x8] sm:$0x7f] %vm232, %v361
    %s367 = sld [smem:[#allocation3 + $0x4]]
    %v368 = vstv %s367
    %v369 = vmul.f32 %v368, %v84
    %v370 = vmul.f32 %v368, %v85
    %v371 = vadd.f32 %v99, %v369
    %v372 = vadd.f32 %v99, %v370
    %s373 = sld [smem:[#allocation3 + $0x6]]
    %v374 = vstv %s373
    %v375 = vmul.f32 %v374, %v84
    %v376 = vmul.f32 %v374, %v85
    %379 = vrot.lane.b32.xlu0 %v375, 1
    %v380 = vpop.permute.xlu0 %379
    %381 = vrot.lane.b32.xlu0 %v376, 1
    %v382 = vpop.permute.xlu0 %381
    %v385 = vadd.f32 %v371, %v380
    %v386 = vadd.f32 %v372, %v382
    %s387 = sld [smem:[#allocation3 + $0xc]]
    %v388 = vstv %s387
    %v389 = vmul.f32 %v388, %v86
    %v390 = vmul.f32 %v388, %v87
    %v391 = vadd.f32 %v385, %v389
    %v392 = vadd.f32 %v386, %v390
    %s393 = sld [smem:[#allocation3 + $0xe]]
    %v394 = vstv %s393
    %v395 = vmul.f32 %v394, %v86
    %v396 = vmul.f32 %v394, %v87
    %399 = vrot.lane.b32.xlu0 %v395, 1
    %v400 = vpop.permute.xlu0 %399
    %401 = vrot.lane.b32.xlu0 %v396, 1
    %v402 = vpop.permute.xlu0 %401
    %v405 = vadd.f32 %v391, %v400
    %v406 = vadd.f32 %v392, %v402
    %s407 = sld [smem:[#allocation3 + $0x44]]
    %v408 = vstv %s407
    %v409 = vmul.f32 %v408, %v89
    %v410 = vmul.f32 %v408, %v90
    %v411 = vadd.f32 %v405, %v409
    %v412 = vadd.f32 %v406, %v410
    %s413 = sld [smem:[#allocation3 + $0x46]]
    %v414 = vstv %s413
    %v415 = vmul.f32 %v414, %v89
    %v416 = vmul.f32 %v414, %v90
    %419 = vrot.lane.b32.xlu0 %v415, 1
    %v420 = vpop.permute.xlu0 %419
    %421 = vrot.lane.b32.xlu0 %v416, 1
    %v422 = vpop.permute.xlu0 %421
    %v425 = vadd.f32 %v411, %v420
    %v426 = vadd.f32 %v412, %v422
    %s427 = sld [smem:[#allocation3 + $0x4c]]
    %v428 = vstv %s427
    %v429 = vmul.f32 %v428, %v91
    %v430 = vmul.f32 %v428, %v92
    %v431 = vadd.f32 %v425, %v429
    %v432 = vadd.f32 %v426, %v430
    %s433 = sld [smem:[#allocation3 + $0x4e]]
    %v434 = vstv %s433
    %v435 = vmul.f32 %v434, %v91
    %v436 = vmul.f32 %v434, %v92
    %439 = vrot.lane.b32.xlu0 %v435, 1
    %v440 = vpop.permute.xlu0 %439
    %441 = vrot.lane.b32.xlu0 %v436, 1
    %v442 = vpop.permute.xlu0 %441
    %v445 = vadd.f32 %v431, %v440
    %v446 = vadd.f32 %v432, %v442
    %s447 = sld [smem:[#allocation3 + $0x84]]
    %v448 = vstv %s447
    %v449 = vmul.f32 %v448, %v94
    %v450 = vmul.f32 %v448, %v95
    %v451 = vadd.f32 %v445, %v449
    %v452 = vadd.f32 %v446, %v450
    %s453 = sld [smem:[#allocation3 + $0x86]]
    %v454 = vstv %s453
    %v455 = vmul.f32 %v454, %v94
    %v456 = vmul.f32 %v454, %v95
    %459 = vrot.lane.b32.xlu0 %v455, 1
    %v460 = vpop.permute.xlu0 %459
    %461 = vrot.lane.b32.xlu0 %v456, 1
    %v462 = vpop.permute.xlu0 %461
    %v465 = vadd.f32 %v451, %v460
    %v466 = vadd.f32 %v452, %v462
    %s467 = sld [smem:[#allocation3 + $0x8c]]
    %v468 = vstv %s467
    %v469 = vmul.f32 %v468, %v96
    %v470 = vmul.f32 %v468, %v97
    %v471 = vadd.f32 %v465, %v469
    %v472 = vadd.f32 %v466, %v470
    %s473 = sld [smem:[#allocation3 + $0x8e]]
    %v474 = vstv %s473
    %v475 = vmul.f32 %v474, %v96
    %v476 = vmul.f32 %v474, %v97
    %479 = vrot.lane.b32.xlu0 %v475, 1
    %v480 = vpop.permute.xlu0 %479
    %481 = vrot.lane.b32.xlu0 %v476, 1
    %v482 = vpop.permute.xlu0 %481
    %v485 = vadd.f32 %v471, %v480
    %v486 = vadd.f32 %v472, %v482
    %v487 = vtanh.pop %v485
    %v488 = vtanh.pop %v486
    %491 = vrot.lane.b32.xlu0 %v487, 127
    %v492 = vpop.permute.xlu0 %491
    %493 = vrot.lane.b32.xlu0 %v488, 127
    %v494 = vpop.permute.xlu0 %493
    %s497 = scalar_lea.vmem %s3, 32
    %498 = vst.msk [vmem:[%s497] sm:$0xff] %vm230, %v492
    %499 = vst.msk [vmem:[%s497 + $0x8] sm:$0x7f] %vm232, %v494
    %s500 = sld [smem:[#allocation3 + $0x5]]
    %v501 = vstv %s500
    %v502 = vmul.f32 %v501, %v84
    %v503 = vmul.f32 %v501, %v85
    %v504 = vadd.f32 %v99, %v502
    %v505 = vadd.f32 %v99, %v503
    %s506 = sld [smem:[#allocation3 + $0x7]]
    %v507 = vstv %s506
    %v508 = vmul.f32 %v507, %v84
    %v509 = vmul.f32 %v507, %v85
    %512 = vrot.lane.b32.xlu0 %v508, 1
    %v513 = vpop.permute.xlu0 %512
    %514 = vrot.lane.b32.xlu0 %v509, 1
    %v515 = vpop.permute.xlu0 %514
    %v518 = vadd.f32 %v504, %v513
    %v519 = vadd.f32 %v505, %v515
    %s520 = sld [smem:[#allocation3 + $0xd]]
    %v521 = vstv %s520
    %v522 = vmul.f32 %v521, %v86
    %v523 = vmul.f32 %v521, %v87
    %v524 = vadd.f32 %v518, %v522
    %v525 = vadd.f32 %v519, %v523
    %s526 = sld [smem:[#allocation3 + $0xf]]
    %v527 = vstv %s526
    %v528 = vmul.f32 %v527, %v86
    %v529 = vmul.f32 %v527, %v87
    %532 = vrot.lane.b32.xlu0 %v528, 1
    %v533 = vpop.permute.xlu0 %532
    %534 = vrot.lane.b32.xlu0 %v529, 1
    %v535 = vpop.permute.xlu0 %534
    %v538 = vadd.f32 %v524, %v533
    %v539 = vadd.f32 %v525, %v535
    %s540 = sld [smem:[#allocation3 + $0x45]]
    %v541 = vstv %s540
    %v542 = vmul.f32 %v541, %v89
    %v543 = vmul.f32 %v541, %v90
    %v544 = vadd.f32 %v538, %v542
    %v545 = vadd.f32 %v539, %v543
    %s546 = sld [smem:[#allocation3 + $0x47]]
    %v547 = vstv %s546
    %v548 = vmul.f32 %v547, %v89
    %v549 = vmul.f32 %v547, %v90
    %552 = vrot.lane.b32.xlu0 %v548, 1
    %v553 = vpop.permute.xlu0 %552
    %554 = vrot.lane.b32.xlu0 %v549, 1
    %v555 = vpop.permute.xlu0 %554
    %v558 = vadd.f32 %v544, %v553
    %v559 = vadd.f32 %v545, %v555
    %s560 = sld [smem:[#allocation3 + $0x4d]]
    %v561 = vstv %s560
    %v562 = vmul.f32 %v561, %v91
    %v563 = vmul.f32 %v561, %v92
    %v564 = vadd.f32 %v558, %v562
    %v565 = vadd.f32 %v559, %v563
    %s566 = sld [smem:[#allocation3 + $0x4f]]
    %v567 = vstv %s566
    %v568 = vmul.f32 %v567, %v91
    %v569 = vmul.f32 %v567, %v92
    %572 = vrot.lane.b32.xlu0 %v568, 1
    %v573 = vpop.permute.xlu0 %572
    %574 = vrot.lane.b32.xlu0 %v569, 1
    %v575 = vpop.permute.xlu0 %574
    %v578 = vadd.f32 %v564, %v573
    %v579 = vadd.f32 %v565, %v575
    %s580 = sld [smem:[#allocation3 + $0x85]]
    %v581 = vstv %s580
    %v582 = vmul.f32 %v581, %v94
    %v583 = vmul.f32 %v581, %v95
    %v584 = vadd.f32 %v578, %v582
    %v585 = vadd.f32 %v579, %v583
    %s586 = sld [smem:[#allocation3 + $0x87]]
    %v587 = vstv %s586
    %v588 = vmul.f32 %v587, %v94
    %v589 = vmul.f32 %v587, %v95
    %592 = vrot.lane.b32.xlu0 %v588, 1
    %v593 = vpop.permute.xlu0 %592
    %594 = vrot.lane.b32.xlu0 %v589, 1
    %v595 = vpop.permute.xlu0 %594
    %v598 = vadd.f32 %v584, %v593
    %v599 = vadd.f32 %v585, %v595
    %s600 = sld [smem:[#allocation3 + $0x8d]]
    %v601 = vstv %s600
    %v602 = vmul.f32 %v601, %v96
    %v603 = vmul.f32 %v601, %v97
    %v604 = vadd.f32 %v598, %v602
    %v605 = vadd.f32 %v599, %v603
    %s606 = sld [smem:[#allocation3 + $0x8f]]
    %v607 = vstv %s606
    %v608 = vmul.f32 %v607, %v96
    %v609 = vmul.f32 %v607, %v97
    %612 = vrot.lane.b32.xlu0 %v608, 1
    %v613 = vpop.permute.xlu0 %612
    %614 = vrot.lane.b32.xlu0 %v609, 1
    %v615 = vpop.permute.xlu0 %614
    %v618 = vadd.f32 %v604, %v613
    %v619 = vadd.f32 %v605, %v615
    %v620 = vtanh.pop %v618
    %v621 = vtanh.pop %v619
    %624 = vrot.lane.b32.xlu0 %v620, 127
    %v625 = vpop.permute.xlu0 %624
    %626 = vrot.lane.b32.xlu0 %v621, 127
    %v627 = vpop.permute.xlu0 %626
    %s630 = scalar_lea.vmem %s3, 48
    %631 = vst.msk [vmem:[%s630] sm:$0xff] %vm230, %v625
    %632 = vst.msk [vmem:[%s630 + $0x8] sm:$0x7f] %vm232, %v627
    %s633 = sld [smem:[#allocation5 + $0x1]]
    %v634 = vstv %s633
    %s635 = sld [smem:[#allocation3 + $0x10]]
    %v636 = vstv %s635
    %v637 = vmul.f32 %v636, %v84
    %v638 = vmul.f32 %v636, %v85
    %v639 = vadd.f32 %v634, %v637
    %v640 = vadd.f32 %v634, %v638
    %s641 = sld [smem:[#allocation3 + $0x12]]
    %v642 = vstv %s641
    %v643 = vmul.f32 %v642, %v84
    %v644 = vmul.f32 %v642, %v85
    %647 = vrot.lane.b32.xlu0 %v643, 1
    %v648 = vpop.permute.xlu0 %647
    %649 = vrot.lane.b32.xlu0 %v644, 1
    %v650 = vpop.permute.xlu0 %649
    %v653 = vadd.f32 %v639, %v648
    %v654 = vadd.f32 %v640, %v650
    %s655 = sld [smem:[#allocation3 + $0x18]]
    %v656 = vstv %s655
    %v657 = vmul.f32 %v656, %v86
    %v658 = vmul.f32 %v656, %v87
    %v659 = vadd.f32 %v653, %v657
    %v660 = vadd.f32 %v654, %v658
    %s661 = sld [smem:[#allocation3 + $0x1a]]
    %v662 = vstv %s661
    %v663 = vmul.f32 %v662, %v86
    %v664 = vmul.f32 %v662, %v87
    %667 = vrot.lane.b32.xlu0 %v663, 1
    %v668 = vpop.permute.xlu0 %667
    %669 = vrot.lane.b32.xlu0 %v664, 1
    %v670 = vpop.permute.xlu0 %669
    %v673 = vadd.f32 %v659, %v668
    %v674 = vadd.f32 %v660, %v670
    %s675 = sld [smem:[#allocation3 + $0x50]]
    %v676 = vstv %s675
    %v677 = vmul.f32 %v676, %v89
    %v678 = vmul.f32 %v676, %v90
    %v679 = vadd.f32 %v673, %v677
    %v680 = vadd.f32 %v674, %v678
    %s681 = sld [smem:[#allocation3 + $0x52]]
    %v682 = vstv %s681
    %v683 = vmul.f32 %v682, %v89
    %v684 = vmul.f32 %v682, %v90
    %687 = vrot.lane.b32.xlu0 %v683, 1
    %v688 = vpop.permute.xlu0 %687
    %689 = vrot.lane.b32.xlu0 %v684, 1
    %v690 = vpop.permute.xlu0 %689
    %v693 = vadd.f32 %v679, %v688
    %v694 = vadd.f32 %v680, %v690
    %s695 = sld [smem:[#allocation3 + $0x58]]
    %v696 = vstv %s695
    %v697 = vmul.f32 %v696, %v91
    %v698 = vmul.f32 %v696, %v92
    %v699 = vadd.f32 %v693, %v697
    %v700 = vadd.f32 %v694, %v698
    %s701 = sld [smem:[#allocation3 + $0x5a]]
    %v702 = vstv %s701
    %v703 = vmul.f32 %v702, %v91
    %v704 = vmul.f32 %v702, %v92
    %707 = vrot.lane.b32.xlu0 %v703, 1
    %v708 = vpop.permute.xlu0 %707
    %709 = vrot.lane.b32.xlu0 %v704, 1
    %v710 = vpop.permute.xlu0 %709
    %v713 = vadd.f32 %v699, %v708
    %v714 = vadd.f32 %v700, %v710
    %s715 = sld [smem:[#allocation3 + $0x90]]
    %v716 = vstv %s715
    %v717 = vmul.f32 %v716, %v94
    %v718 = vmul.f32 %v716, %v95
    %v719 = vadd.f32 %v713, %v717
    %v720 = vadd.f32 %v714, %v718
    %s721 = sld [smem:[#allocation3 + $0x92]]
    %v722 = vstv %s721
    %v723 = vmul.f32 %v722, %v94
    %v724 = vmul.f32 %v722, %v95
    %727 = vrot.lane.b32.xlu0 %v723, 1
    %v728 = vpop.permute.xlu0 %727
    %729 = vrot.lane.b32.xlu0 %v724, 1
    %v730 = vpop.permute.xlu0 %729
    %v733 = vadd.f32 %v719, %v728
    %v734 = vadd.f32 %v720, %v730
    %s735 = sld [smem:[#allocation3 + $0x98]]
    %v736 = vstv %s735
    %v737 = vmul.f32 %v736, %v96
    %v738 = vmul.f32 %v736, %v97
    %v739 = vadd.f32 %v733, %v737
    %v740 = vadd.f32 %v734, %v738
    %s741 = sld [smem:[#allocation3 + $0x9a]]
    %v742 = vstv %s741
    %v743 = vmul.f32 %v742, %v96
    %v744 = vmul.f32 %v742, %v97
    %747 = vrot.lane.b32.xlu0 %v743, 1
    %v748 = vpop.permute.xlu0 %747
    %749 = vrot.lane.b32.xlu0 %v744, 1
    %v750 = vpop.permute.xlu0 %749
    %v753 = vadd.f32 %v739, %v748
    %v754 = vadd.f32 %v740, %v750
    %v755 = vtanh.pop %v753
    %v756 = vtanh.pop %v754
    %759 = vrot.lane.b32.xlu0 %v755, 127
    %v760 = vpop.permute.xlu0 %759
    %761 = vrot.lane.b32.xlu0 %v756, 127
    %v762 = vpop.permute.xlu0 %761
    %s765 = scalar_lea.vmem %s3, 64
    %766 = vst.msk [vmem:[%s765] sm:$0xff] %vm230, %v760
    %767 = vst.msk [vmem:[%s765 + $0x8] sm:$0x7f] %vm232, %v762
    %s768 = sld [smem:[#allocation3 + $0x11]]
    %v769 = vstv %s768
    %v770 = vmul.f32 %v769, %v84
    %v771 = vmul.f32 %v769, %v85
    %v772 = vadd.f32 %v634, %v770
    %v773 = vadd.f32 %v634, %v771
    %s774 = sld [smem:[#allocation3 + $0x13]]
    %v775 = vstv %s774
    %v776 = vmul.f32 %v775, %v84
    %v777 = vmul.f32 %v775, %v85
    %780 = vrot.lane.b32.xlu0 %v776, 1
    %v781 = vpop.permute.xlu0 %780
    %782 = vrot.lane.b32.xlu0 %v777, 1
    %v783 = vpop.permute.xlu0 %782
    %v786 = vadd.f32 %v772, %v781
    %v787 = vadd.f32 %v773, %v783
    %s788 = sld [smem:[#allocation3 + $0x19]]
    %v789 = vstv %s788
    %v790 = vmul.f32 %v789, %v86
    %v791 = vmul.f32 %v789, %v87
    %v792 = vadd.f32 %v786, %v790
    %v793 = vadd.f32 %v787, %v791
    %s794 = sld [smem:[#allocation3 + $0x1b]]
    %v795 = vstv %s794
    %v796 = vmul.f32 %v795, %v86
    %v797 = vmul.f32 %v795, %v87
    %800 = vrot.lane.b32.xlu0 %v796, 1
    %v801 = vpop.permute.xlu0 %800
    %802 = vrot.lane.b32.xlu0 %v797, 1
    %v803 = vpop.permute.xlu0 %802
    %v806 = vadd.f32 %v792, %v801
    %v807 = vadd.f32 %v793, %v803
    %s808 = sld [smem:[#allocation3 + $0x51]]
    %v809 = vstv %s808
    %v810 = vmul.f32 %v809, %v89
    %v811 = vmul.f32 %v809, %v90
    %v812 = vadd.f32 %v806, %v810
    %v813 = vadd.f32 %v807, %v811
    %s814 = sld [smem:[#allocation3 + $0x53]]
    %v815 = vstv %s814
    %v816 = vmul.f32 %v815, %v89
    %v817 = vmul.f32 %v815, %v90
    %820 = vrot.lane.b32.xlu0 %v816, 1
    %v821 = vpop.permute.xlu0 %820
    %822 = vrot.lane.b32.xlu0 %v817, 1
    %v823 = vpop.permute.xlu0 %822
    %v826 = vadd.f32 %v812, %v821
    %v827 = vadd.f32 %v813, %v823
    %s828 = sld [smem:[#allocation3 + $0x59]]
    %v829 = vstv %s828
    %v830 = vmul.f32 %v829, %v91
    %v831 = vmul.f32 %v829, %v92
    %v832 = vadd.f32 %v826, %v830
    %v833 = vadd.f32 %v827, %v831
    %s834 = sld [smem:[#allocation3 + $0x5b]]
    %v835 = vstv %s834
    %v836 = vmul.f32 %v835, %v91
    %v837 = vmul.f32 %v835, %v92
    %840 = vrot.lane.b32.xlu0 %v836, 1
    %v841 = vpop.permute.xlu0 %840
    %842 = vrot.lane.b32.xlu0 %v837, 1
    %v843 = vpop.permute.xlu0 %842
    %v846 = vadd.f32 %v832, %v841
    %v847 = vadd.f32 %v833, %v843
    %s848 = sld [smem:[#allocation3 + $0x91]]
    %v849 = vstv %s848
    %v850 = vmul.f32 %v849, %v94
    %v851 = vmul.f32 %v849, %v95
    %v852 = vadd.f32 %v846, %v850
    %v853 = vadd.f32 %v847, %v851
    %s854 = sld [smem:[#allocation3 + $0x93]]
    %v855 = vstv %s854
    %v856 = vmul.f32 %v855, %v94
    %v857 = vmul.f32 %v855, %v95
    %860 = vrot.lane.b32.xlu0 %v856, 1
    %v861 = vpop.permute.xlu0 %860
    %862 = vrot.lane.b32.xlu0 %v857, 1
    %v863 = vpop.permute.xlu0 %862
    %v866 = vadd.f32 %v852, %v861
    %v867 = vadd.f32 %v853, %v863
    %s868 = sld [smem:[#allocation3 + $0x99]]
    %v869 = vstv %s868
    %v870 = vmul.f32 %v869, %v96
    %v871 = vmul.f32 %v869, %v97
    %v872 = vadd.f32 %v866, %v870
    %v873 = vadd.f32 %v867, %v871
    %s874 = sld [smem:[#allocation3 + $0x9b]]
    %v875 = vstv %s874
    %v876 = vmul.f32 %v875, %v96
    %v877 = vmul.f32 %v875, %v97
    %880 = vrot.lane.b32.xlu0 %v876, 1
    %v881 = vpop.permute.xlu0 %880
    %882 = vrot.lane.b32.xlu0 %v877, 1
    %v883 = vpop.permute.xlu0 %882
    %v886 = vadd.f32 %v872, %v881
    %v887 = vadd.f32 %v873, %v883
    %v888 = vtanh.pop %v886
    %v889 = vtanh.pop %v887
    %892 = vrot.lane.b32.xlu0 %v888, 127
    %v893 = vpop.permute.xlu0 %892
    %894 = vrot.lane.b32.xlu0 %v889, 127
    %v895 = vpop.permute.xlu0 %894
    %s898 = scalar_lea.vmem %s3, 80
    %899 = vst.msk [vmem:[%s898] sm:$0xff] %vm230, %v893
    %900 = vst.msk [vmem:[%s898 + $0x8] sm:$0x7f] %vm232, %v895
    %s901 = sld [smem:[#allocation3 + $0x14]]
    %v902 = vstv %s901
    %v903 = vmul.f32 %v902, %v84
    %v904 = vmul.f32 %v902, %v85
    %v905 = vadd.f32 %v634, %v903
    %v906 = vadd.f32 %v634, %v904
    %s907 = sld [smem:[#allocation3 + $0x16]]
    %v908 = vstv %s907
    %v909 = vmul.f32 %v908, %v84
    %v910 = vmul.f32 %v908, %v85
    %913 = vrot.lane.b32.xlu0 %v909, 1
    %v914 = vpop.permute.xlu0 %913
    %915 = vrot.lane.b32.xlu0 %v910, 1
    %v916 = vpop.permute.xlu0 %915
    %v919 = vadd.f32 %v905, %v914
    %v920 = vadd.f32 %v906, %v916
    %s921 = sld [smem:[#allocation3 + $0x1c]]
    %v922 = vstv %s921
    %v923 = vmul.f32 %v922, %v86
    %v924 = vmul.f32 %v922, %v87
    %v925 = vadd.f32 %v919, %v923
    %v926 = vadd.f32 %v920, %v924
    %s927 = sld [smem:[#allocation3 + $0x1e]]
    %v928 = vstv %s927
    %v929 = vmul.f32 %v928, %v86
    %v930 = vmul.f32 %v928, %v87
    %933 = vrot.lane.b32.xlu0 %v929, 1
    %v934 = vpop.permute.xlu0 %933
    %935 = vrot.lane.b32.xlu0 %v930, 1
    %v936 = vpop.permute.xlu0 %935
    %v939 = vadd.f32 %v925, %v934
    %v940 = vadd.f32 %v926, %v936
    %s941 = sld [smem:[#allocation3 + $0x54]]
    %v942 = vstv %s941
    %v943 = vmul.f32 %v942, %v89
    %v944 = vmul.f32 %v942, %v90
    %v945 = vadd.f32 %v939, %v943
    %v946 = vadd.f32 %v940, %v944
    %s947 = sld [smem:[#allocation3 + $0x56]]
    %v948 = vstv %s947
    %v949 = vmul.f32 %v948, %v89
    %v950 = vmul.f32 %v948, %v90
    %953 = vrot.lane.b32.xlu0 %v949, 1
    %v954 = vpop.permute.xlu0 %953
    %955 = vrot.lane.b32.xlu0 %v950, 1
    %v956 = vpop.permute.xlu0 %955
    %v959 = vadd.f32 %v945, %v954
    %v960 = vadd.f32 %v946, %v956
    %s961 = sld [smem:[#allocation3 + $0x5c]]
    %v962 = vstv %s961
    %v963 = vmul.f32 %v962, %v91
    %v964 = vmul.f32 %v962, %v92
    %v965 = vadd.f32 %v959, %v963
    %v966 = vadd.f32 %v960, %v964
    %s967 = sld [smem:[#allocation3 + $0x5e]]
    %v968 = vstv %s967
    %v969 = vmul.f32 %v968, %v91
    %v970 = vmul.f32 %v968, %v92
    %973 = vrot.lane.b32.xlu0 %v969, 1
    %v974 = vpop.permute.xlu0 %973
    %975 = vrot.lane.b32.xlu0 %v970, 1
    %v976 = vpop.permute.xlu0 %975
    %v979 = vadd.f32 %v965, %v974
    %v980 = vadd.f32 %v966, %v976
    %s981 = sld [smem:[#allocation3 + $0x94]]
    %v982 = vstv %s981
    %v983 = vmul.f32 %v982, %v94
    %v984 = vmul.f32 %v982, %v95
    %v985 = vadd.f32 %v979, %v983
    %v986 = vadd.f32 %v980, %v984
    %s987 = sld [smem:[#allocation3 + $0x96]]
    %v988 = vstv %s987
    %v989 = vmul.f32 %v988, %v94
    %v990 = vmul.f32 %v988, %v95
    %993 = vrot.lane.b32.xlu0 %v989, 1
    %v994 = vpop.permute.xlu0 %993
    %995 = vrot.lane.b32.xlu0 %v990, 1
    %v996 = vpop.permute.xlu0 %995
    %v999 = vadd.f32 %v985, %v994
    %v1000 = vadd.f32 %v986, %v996
    %s1001 = sld [smem:[#allocation3 + $0x9c]]
    %v1002 = vstv %s1001
    %v1003 = vmul.f32 %v1002, %v96
    %v1004 = vmul.f32 %v1002, %v97
    %v1005 = vadd.f32 %v999, %v1003
    %v1006 = vadd.f32 %v1000, %v1004
    %s1007 = sld [smem:[#allocation3 + $0x9e]]
    %v1008 = vstv %s1007
    %v1009 = vmul.f32 %v1008, %v96
    %v1010 = vmul.f32 %v1008, %v97
    %1013 = vrot.lane.b32.xlu0 %v1009, 1
    %v1014 = vpop.permute.xlu0 %1013
    %1015 = vrot.lane.b32.xlu0 %v1010, 1
    %v1016 = vpop.permute.xlu0 %1015
    %v1019 = vadd.f32 %v1005, %v1014
    %v1020 = vadd.f32 %v1006, %v1016
    %v1021 = vtanh.pop %v1019
    %v1022 = vtanh.pop %v1020
    %1025 = vrot.lane.b32.xlu0 %v1021, 127
    %v1026 = vpop.permute.xlu0 %1025
    %1027 = vrot.lane.b32.xlu0 %v1022, 127
    %v1028 = vpop.permute.xlu0 %1027
    %s1031 = scalar_lea.vmem %s3, 96
    %1032 = vst.msk [vmem:[%s1031] sm:$0xff] %vm230, %v1026
    %1033 = vst.msk [vmem:[%s1031 + $0x8] sm:$0x7f] %vm232, %v1028
    %s1034 = sld [smem:[#allocation3 + $0x15]]
    %v1035 = vstv %s1034
    %v1036 = vmul.f32 %v1035, %v84
    %v1037 = vmul.f32 %v1035, %v85
    %v1038 = vadd.f32 %v634, %v1036
    %v1039 = vadd.f32 %v634, %v1037
    %s1040 = sld [smem:[#allocation3 + $0x17]]
    %v1041 = vstv %s1040
    %v1042 = vmul.f32 %v1041, %v84
    %v1043 = vmul.f32 %v1041, %v85
    %1046 = vrot.lane.b32.xlu0 %v1042, 1
    %v1047 = vpop.permute.xlu0 %1046
    %1048 = vrot.lane.b32.xlu0 %v1043, 1
    %v1049 = vpop.permute.xlu0 %1048
    %v1052 = vadd.f32 %v1038, %v1047
    %v1053 = vadd.f32 %v1039, %v1049
    %s1054 = sld [smem:[#allocation3 + $0x1d]]
    %v1055 = vstv %s1054
    %v1056 = vmul.f32 %v1055, %v86
    %v1057 = vmul.f32 %v1055, %v87
    %v1058 = vadd.f32 %v1052, %v1056
    %v1059 = vadd.f32 %v1053, %v1057
    %s1060 = sld [smem:[#allocation3 + $0x1f]]
    %v1061 = vstv %s1060
    %v1062 = vmul.f32 %v1061, %v86
    %v1063 = vmul.f32 %v1061, %v87
    %1066 = vrot.lane.b32.xlu0 %v1062, 1
    %v1067 = vpop.permute.xlu0 %1066
    %1068 = vrot.lane.b32.xlu0 %v1063, 1
    %v1069 = vpop.permute.xlu0 %1068
    %v1072 = vadd.f32 %v1058, %v1067
    %v1073 = vadd.f32 %v1059, %v1069
    %s1074 = sld [smem:[#allocation3 + $0x55]]
    %v1075 = vstv %s1074
    %v1076 = vmul.f32 %v1075, %v89
    %v1077 = vmul.f32 %v1075, %v90
    %v1078 = vadd.f32 %v1072, %v1076
    %v1079 = vadd.f32 %v1073, %v1077
    %s1080 = sld [smem:[#allocation3 + $0x57]]
    %v1081 = vstv %s1080
    %v1082 = vmul.f32 %v1081, %v89
    %v1083 = vmul.f32 %v1081, %v90
    %1086 = vrot.lane.b32.xlu0 %v1082, 1
    %v1087 = vpop.permute.xlu0 %1086
    %1088 = vrot.lane.b32.xlu0 %v1083, 1
    %v1089 = vpop.permute.xlu0 %1088
    %v1092 = vadd.f32 %v1078, %v1087
    %v1093 = vadd.f32 %v1079, %v1089
    %s1094 = sld [smem:[#allocation3 + $0x5d]]
    %v1095 = vstv %s1094
    %v1096 = vmul.f32 %v1095, %v91
    %v1097 = vmul.f32 %v1095, %v92
    %v1098 = vadd.f32 %v1092, %v1096
    %v1099 = vadd.f32 %v1093, %v1097
    %s1100 = sld [smem:[#allocation3 + $0x5f]]
    %v1101 = vstv %s1100
    %v1102 = vmul.f32 %v1101, %v91
    %v1103 = vmul.f32 %v1101, %v92
    %1106 = vrot.lane.b32.xlu0 %v1102, 1
    %v1107 = vpop.permute.xlu0 %1106
    %1108 = vrot.lane.b32.xlu0 %v1103, 1
    %v1109 = vpop.permute.xlu0 %1108
    %v1112 = vadd.f32 %v1098, %v1107
    %v1113 = vadd.f32 %v1099, %v1109
    %s1114 = sld [smem:[#allocation3 + $0x95]]
    %v1115 = vstv %s1114
    %v1116 = vmul.f32 %v1115, %v94
    %v1117 = vmul.f32 %v1115, %v95
    %v1118 = vadd.f32 %v1112, %v1116
    %v1119 = vadd.f32 %v1113, %v1117
    %s1120 = sld [smem:[#allocation3 + $0x97]]
    %v1121 = vstv %s1120
    %v1122 = vmul.f32 %v1121, %v94
    %v1123 = vmul.f32 %v1121, %v95
    %1126 = vrot.lane.b32.xlu0 %v1122, 1
    %v1127 = vpop.permute.xlu0 %1126
    %1128 = vrot.lane.b32.xlu0 %v1123, 1
    %v1129 = vpop.permute.xlu0 %1128
    %v1132 = vadd.f32 %v1118, %v1127
    %v1133 = vadd.f32 %v1119, %v1129
    %s1134 = sld [smem:[#allocation3 + $0x9d]]
    %v1135 = vstv %s1134
    %v1136 = vmul.f32 %v1135, %v96
    %v1137 = vmul.f32 %v1135, %v97
    %v1138 = vadd.f32 %v1132, %v1136
    %v1139 = vadd.f32 %v1133, %v1137
    %s1140 = sld [smem:[#allocation3 + $0x9f]]
    %v1141 = vstv %s1140
    %v1142 = vmul.f32 %v1141, %v96
    %v1143 = vmul.f32 %v1141, %v97
    %1146 = vrot.lane.b32.xlu0 %v1142, 1
    %v1147 = vpop.permute.xlu0 %1146
    %1148 = vrot.lane.b32.xlu0 %v1143, 1
    %v1149 = vpop.permute.xlu0 %1148
    %v1152 = vadd.f32 %v1138, %v1147
    %v1153 = vadd.f32 %v1139, %v1149
    %v1154 = vtanh.pop %v1152
    %v1155 = vtanh.pop %v1153
    %1158 = vrot.lane.b32.xlu0 %v1154, 127
    %v1159 = vpop.permute.xlu0 %1158
    %1160 = vrot.lane.b32.xlu0 %v1155, 127
    %v1161 = vpop.permute.xlu0 %1160
    %s1164 = scalar_lea.vmem %s3, 112
    %1165 = vst.msk [vmem:[%s1164] sm:$0xff] %vm230, %v1159
    %1166 = vst.msk [vmem:[%s1164 + $0x8] sm:$0x7f] %vm232, %v1161
    %s1167 = sld [smem:[#allocation5 + $0x2]]
    %v1168 = vstv %s1167
    %s1169 = sld [smem:[#allocation3 + $0x20]]
    %v1170 = vstv %s1169
    %v1171 = vmul.f32 %v1170, %v84
    %v1172 = vmul.f32 %v1170, %v85
    %v1173 = vadd.f32 %v1168, %v1171
    %v1174 = vadd.f32 %v1168, %v1172
    %s1175 = sld [smem:[#allocation3 + $0x22]]
    %v1176 = vstv %s1175
    %v1177 = vmul.f32 %v1176, %v84
    %v1178 = vmul.f32 %v1176, %v85
    %1181 = vrot.lane.b32.xlu0 %v1177, 1
    %v1182 = vpop.permute.xlu0 %1181
    %1183 = vrot.lane.b32.xlu0 %v1178, 1
    %v1184 = vpop.permute.xlu0 %1183
    %v1187 = vadd.f32 %v1173, %v1182
    %v1188 = vadd.f32 %v1174, %v1184
    %s1189 = sld [smem:[#allocation3 + $0x28]]
    %v1190 = vstv %s1189
    %v1191 = vmul.f32 %v1190, %v86
    %v1192 = vmul.f32 %v1190, %v87
    %v1193 = vadd.f32 %v1187, %v1191
    %v1194 = vadd.f32 %v1188, %v1192
    %s1195 = sld [smem:[#allocation3 + $0x2a]]
    %v1196 = vstv %s1195
    %v1197 = vmul.f32 %v1196, %v86
    %v1198 = vmul.f32 %v1196, %v87
    %1201 = vrot.lane.b32.xlu0 %v1197, 1
    %v1202 = vpop.permute.xlu0 %1201
    %1203 = vrot.lane.b32.xlu0 %v1198, 1
    %v1204 = vpop.permute.xlu0 %1203
    %v1207 = vadd.f32 %v1193, %v1202
    %v1208 = vadd.f32 %v1194, %v1204
    %s1209 = sld [smem:[#allocation3 + $0x60]]
    %v1210 = vstv %s1209
    %v1211 = vmul.f32 %v1210, %v89
    %v1212 = vmul.f32 %v1210, %v90
    %v1213 = vadd.f32 %v1207, %v1211
    %v1214 = vadd.f32 %v1208, %v1212
    %s1215 = sld [smem:[#allocation3 + $0x62]]
    %v1216 = vstv %s1215
    %v1217 = vmul.f32 %v1216, %v89
    %v1218 = vmul.f32 %v1216, %v90
    %1221 = vrot.lane.b32.xlu0 %v1217, 1
    %v1222 = vpop.permute.xlu0 %1221
    %1223 = vrot.lane.b32.xlu0 %v1218, 1
    %v1224 = vpop.permute.xlu0 %1223
    %v1227 = vadd.f32 %v1213, %v1222
    %v1228 = vadd.f32 %v1214, %v1224
    %s1229 = sld [smem:[#allocation3 + $0x68]]
    %v1230 = vstv %s1229
    %v1231 = vmul.f32 %v1230, %v91
    %v1232 = vmul.f32 %v1230, %v92
    %v1233 = vadd.f32 %v1227, %v1231
    %v1234 = vadd.f32 %v1228, %v1232
    %s1235 = sld [smem:[#allocation3 + $0x6a]]
    %v1236 = vstv %s1235
    %v1237 = vmul.f32 %v1236, %v91
    %v1238 = vmul.f32 %v1236, %v92
    %1241 = vrot.lane.b32.xlu0 %v1237, 1
    %v1242 = vpop.permute.xlu0 %1241
    %1243 = vrot.lane.b32.xlu0 %v1238, 1
    %v1244 = vpop.permute.xlu0 %1243
    %v1247 = vadd.f32 %v1233, %v1242
    %v1248 = vadd.f32 %v1234, %v1244
    %s1249 = sld [smem:[#allocation3 + $0xa0]]
    %v1250 = vstv %s1249
    %v1251 = vmul.f32 %v1250, %v94
    %v1252 = vmul.f32 %v1250, %v95
    %v1253 = vadd.f32 %v1247, %v1251
    %v1254 = vadd.f32 %v1248, %v1252
    %s1255 = sld [smem:[#allocation3 + $0xa2]]
    %v1256 = vstv %s1255
    %v1257 = vmul.f32 %v1256, %v94
    %v1258 = vmul.f32 %v1256, %v95
    %1261 = vrot.lane.b32.xlu0 %v1257, 1
    %v1262 = vpop.permute.xlu0 %1261
    %1263 = vrot.lane.b32.xlu0 %v1258, 1
    %v1264 = vpop.permute.xlu0 %1263
    %v1267 = vadd.f32 %v1253, %v1262
    %v1268 = vadd.f32 %v1254, %v1264
    %s1269 = sld [smem:[#allocation3 + $0xa8]]
    %v1270 = vstv %s1269
    %v1271 = vmul.f32 %v1270, %v96
    %v1272 = vmul.f32 %v1270, %v97
    %v1273 = vadd.f32 %v1267, %v1271
    %v1274 = vadd.f32 %v1268, %v1272
    %s1275 = sld [smem:[#allocation3 + $0xaa]]
    %v1276 = vstv %s1275
    %v1277 = vmul.f32 %v1276, %v96
    %v1278 = vmul.f32 %v1276, %v97
    %1281 = vrot.lane.b32.xlu0 %v1277, 1
    %v1282 = vpop.permute.xlu0 %1281
    %1283 = vrot.lane.b32.xlu0 %v1278, 1
    %v1284 = vpop.permute.xlu0 %1283
    %v1287 = vadd.f32 %v1273, %v1282
    %v1288 = vadd.f32 %v1274, %v1284
    %v1289 = vtanh.pop %v1287
    %v1290 = vtanh.pop %v1288
    %1293 = vrot.lane.b32.xlu0 %v1289, 127
    %v1294 = vpop.permute.xlu0 %1293
    %1295 = vrot.lane.b32.xlu0 %v1290, 127
    %v1296 = vpop.permute.xlu0 %1295
    %s1299 = scalar_lea.vmem %s3, 128
    %1300 = vst.msk [vmem:[%s1299] sm:$0xff] %vm230, %v1294
    %1301 = vst.msk [vmem:[%s1299 + $0x8] sm:$0x7f] %vm232, %v1296
    %s1302 = sld [smem:[#allocation3 + $0x21]]
    %v1303 = vstv %s1302
    %v1304 = vmul.f32 %v1303, %v84
    %v1305 = vmul.f32 %v1303, %v85
    %v1306 = vadd.f32 %v1168, %v1304
    %v1307 = vadd.f32 %v1168, %v1305
    %s1308 = sld [smem:[#allocation3 + $0x23]]
    %v1309 = vstv %s1308
    %v1310 = vmul.f32 %v1309, %v84
    %v1311 = vmul.f32 %v1309, %v85
    %1314 = vrot.lane.b32.xlu0 %v1310, 1
    %v1315 = vpop.permute.xlu0 %1314
    %1316 = vrot.lane.b32.xlu0 %v1311, 1
    %v1317 = vpop.permute.xlu0 %1316
    %v1320 = vadd.f32 %v1306, %v1315
    %v1321 = vadd.f32 %v1307, %v1317
    %s1322 = sld [smem:[#allocation3 + $0x29]]
    %v1323 = vstv %s1322
    %v1324 = vmul.f32 %v1323, %v86
    %v1325 = vmul.f32 %v1323, %v87
    %v1326 = vadd.f32 %v1320, %v1324
    %v1327 = vadd.f32 %v1321, %v1325
    %s1328 = sld [smem:[#allocation3 + $0x2b]]
    %v1329 = vstv %s1328
    %v1330 = vmul.f32 %v1329, %v86
    %v1331 = vmul.f32 %v1329, %v87
    %1334 = vrot.lane.b32.xlu0 %v1330, 1
    %v1335 = vpop.permute.xlu0 %1334
    %1336 = vrot.lane.b32.xlu0 %v1331, 1
    %v1337 = vpop.permute.xlu0 %1336
    %v1340 = vadd.f32 %v1326, %v1335
    %v1341 = vadd.f32 %v1327, %v1337
    %s1342 = sld [smem:[#allocation3 + $0x61]]
    %v1343 = vstv %s1342
    %v1344 = vmul.f32 %v1343, %v89
    %v1345 = vmul.f32 %v1343, %v90
    %v1346 = vadd.f32 %v1340, %v1344
    %v1347 = vadd.f32 %v1341, %v1345
    %s1348 = sld [smem:[#allocation3 + $0x63]]
    %v1349 = vstv %s1348
    %v1350 = vmul.f32 %v1349, %v89
    %v1351 = vmul.f32 %v1349, %v90
    %1354 = vrot.lane.b32.xlu0 %v1350, 1
    %v1355 = vpop.permute.xlu0 %1354
    %1356 = vrot.lane.b32.xlu0 %v1351, 1
    %v1357 = vpop.permute.xlu0 %1356
    %v1360 = vadd.f32 %v1346, %v1355
    %v1361 = vadd.f32 %v1347, %v1357
    %s1362 = sld [smem:[#allocation3 + $0x69]]
    %v1363 = vstv %s1362
    %v1364 = vmul.f32 %v1363, %v91
    %v1365 = vmul.f32 %v1363, %v92
    %v1366 = vadd.f32 %v1360, %v1364
    %v1367 = vadd.f32 %v1361, %v1365
    %s1368 = sld [smem:[#allocation3 + $0x6b]]
    %v1369 = vstv %s1368
    %v1370 = vmul.f32 %v1369, %v91
    %v1371 = vmul.f32 %v1369, %v92
    %1374 = vrot.lane.b32.xlu0 %v1370, 1
    %v1375 = vpop.permute.xlu0 %1374
    %1376 = vrot.lane.b32.xlu0 %v1371, 1
    %v1377 = vpop.permute.xlu0 %1376
    %v1380 = vadd.f32 %v1366, %v1375
    %v1381 = vadd.f32 %v1367, %v1377
    %s1382 = sld [smem:[#allocation3 + $0xa1]]
    %v1383 = vstv %s1382
    %v1384 = vmul.f32 %v1383, %v94
    %v1385 = vmul.f32 %v1383, %v95
    %v1386 = vadd.f32 %v1380, %v1384
    %v1387 = vadd.f32 %v1381, %v1385
    %s1388 = sld [smem:[#allocation3 + $0xa3]]
    %v1389 = vstv %s1388
    %v1390 = vmul.f32 %v1389, %v94
    %v1391 = vmul.f32 %v1389, %v95
    %1394 = vrot.lane.b32.xlu0 %v1390, 1
    %v1395 = vpop.permute.xlu0 %1394
    %1396 = vrot.lane.b32.xlu0 %v1391, 1
    %v1397 = vpop.permute.xlu0 %1396
    %v1400 = vadd.f32 %v1386, %v1395
    %v1401 = vadd.f32 %v1387, %v1397
    %s1402 = sld [smem:[#allocation3 + $0xa9]]
    %v1403 = vstv %s1402
    %v1404 = vmul.f32 %v1403, %v96
    %v1405 = vmul.f32 %v1403, %v97
    %v1406 = vadd.f32 %v1400, %v1404
    %v1407 = vadd.f32 %v1401, %v1405
    %s1408 = sld [smem:[#allocation3 + $0xab]]
    %v1409 = vstv %s1408
    %v1410 = vmul.f32 %v1409, %v96
    %v1411 = vmul.f32 %v1409, %v97
    %1414 = vrot.lane.b32.xlu0 %v1410, 1
    %v1415 = vpop.permute.xlu0 %1414
    %1416 = vrot.lane.b32.xlu0 %v1411, 1
    %v1417 = vpop.permute.xlu0 %1416
    %v1420 = vadd.f32 %v1406, %v1415
    %v1421 = vadd.f32 %v1407, %v1417
    %v1422 = vtanh.pop %v1420
    %v1423 = vtanh.pop %v1421
    %1426 = vrot.lane.b32.xlu0 %v1422, 127
    %v1427 = vpop.permute.xlu0 %1426
    %1428 = vrot.lane.b32.xlu0 %v1423, 127
    %v1429 = vpop.permute.xlu0 %1428
    %s1432 = scalar_lea.vmem %s3, 144
    %1433 = vst.msk [vmem:[%s1432] sm:$0xff] %vm230, %v1427
    %1434 = vst.msk [vmem:[%s1432 + $0x8] sm:$0x7f] %vm232, %v1429
    %s1435 = sld [smem:[#allocation3 + $0x24]]
    %v1436 = vstv %s1435
    %v1437 = vmul.f32 %v1436, %v84
    %v1438 = vmul.f32 %v1436, %v85
    %v1439 = vadd.f32 %v1168, %v1437
    %v1440 = vadd.f32 %v1168, %v1438
    %s1441 = sld [smem:[#allocation3 + $0x26]]
    %v1442 = vstv %s1441
    %v1443 = vmul.f32 %v1442, %v84
    %v1444 = vmul.f32 %v1442, %v85
    %1447 = vrot.lane.b32.xlu0 %v1443, 1
    %v1448 = vpop.permute.xlu0 %1447
    %1449 = vrot.lane.b32.xlu0 %v1444, 1
    %v1450 = vpop.permute.xlu0 %1449
    %v1453 = vadd.f32 %v1439, %v1448
    %v1454 = vadd.f32 %v1440, %v1450
    %s1455 = sld [smem:[#allocation3 + $0x2c]]
    %v1456 = vstv %s1455
    %v1457 = vmul.f32 %v1456, %v86
    %v1458 = vmul.f32 %v1456, %v87
    %v1459 = vadd.f32 %v1453, %v1457
    %v1460 = vadd.f32 %v1454, %v1458
    %s1461 = sld [smem:[#allocation3 + $0x2e]]
    %v1462 = vstv %s1461
    %v1463 = vmul.f32 %v1462, %v86
    %v1464 = vmul.f32 %v1462, %v87
    %1467 = vrot.lane.b32.xlu0 %v1463, 1
    %v1468 = vpop.permute.xlu0 %1467
    %1469 = vrot.lane.b32.xlu0 %v1464, 1
    %v1470 = vpop.permute.xlu0 %1469
    %v1473 = vadd.f32 %v1459, %v1468
    %v1474 = vadd.f32 %v1460, %v1470
    %s1475 = sld [smem:[#allocation3 + $0x64]]
    %v1476 = vstv %s1475
    %v1477 = vmul.f32 %v1476, %v89
    %v1478 = vmul.f32 %v1476, %v90
    %v1479 = vadd.f32 %v1473, %v1477
    %v1480 = vadd.f32 %v1474, %v1478
    %s1481 = sld [smem:[#allocation3 + $0x66]]
    %v1482 = vstv %s1481
    %v1483 = vmul.f32 %v1482, %v89
    %v1484 = vmul.f32 %v1482, %v90
    %1487 = vrot.lane.b32.xlu0 %v1483, 1
    %v1488 = vpop.permute.xlu0 %1487
    %1489 = vrot.lane.b32.xlu0 %v1484, 1
    %v1490 = vpop.permute.xlu0 %1489
    %v1493 = vadd.f32 %v1479, %v1488
    %v1494 = vadd.f32 %v1480, %v1490
    %s1495 = sld [smem:[#allocation3 + $0x6c]]
    %v1496 = vstv %s1495
    %v1497 = vmul.f32 %v1496, %v91
    %v1498 = vmul.f32 %v1496, %v92
    %v1499 = vadd.f32 %v1493, %v1497
    %v1500 = vadd.f32 %v1494, %v1498
    %s1501 = sld [smem:[#allocation3 + $0x6e]]
    %v1502 = vstv %s1501
    %v1503 = vmul.f32 %v1502, %v91
    %v1504 = vmul.f32 %v1502, %v92
    %1507 = vrot.lane.b32.xlu0 %v1503, 1
    %v1508 = vpop.permute.xlu0 %1507
    %1509 = vrot.lane.b32.xlu0 %v1504, 1
    %v1510 = vpop.permute.xlu0 %1509
    %v1513 = vadd.f32 %v1499, %v1508
    %v1514 = vadd.f32 %v1500, %v1510
    %s1515 = sld [smem:[#allocation3 + $0xa4]]
    %v1516 = vstv %s1515
    %v1517 = vmul.f32 %v1516, %v94
    %v1518 = vmul.f32 %v1516, %v95
    %v1519 = vadd.f32 %v1513, %v1517
    %v1520 = vadd.f32 %v1514, %v1518
    %s1521 = sld [smem:[#allocation3 + $0xa6]]
    %v1522 = vstv %s1521
    %v1523 = vmul.f32 %v1522, %v94
    %v1524 = vmul.f32 %v1522, %v95
    %1527 = vrot.lane.b32.xlu0 %v1523, 1
    %v1528 = vpop.permute.xlu0 %1527
    %1529 = vrot.lane.b32.xlu0 %v1524, 1
    %v1530 = vpop.permute.xlu0 %1529
    %v1533 = vadd.f32 %v1519, %v1528
    %v1534 = vadd.f32 %v1520, %v1530
    %s1535 = sld [smem:[#allocation3 + $0xac]]
    %v1536 = vstv %s1535
    %v1537 = vmul.f32 %v1536, %v96
    %v1538 = vmul.f32 %v1536, %v97
    %v1539 = vadd.f32 %v1533, %v1537
    %v1540 = vadd.f32 %v1534, %v1538
    %s1541 = sld [smem:[#allocation3 + $0xae]]
    %v1542 = vstv %s1541
    %v1543 = vmul.f32 %v1542, %v96
    %v1544 = vmul.f32 %v1542, %v97
    %1547 = vrot.lane.b32.xlu0 %v1543, 1
    %v1548 = vpop.permute.xlu0 %1547
    %1549 = vrot.lane.b32.xlu0 %v1544, 1
    %v1550 = vpop.permute.xlu0 %1549
    %v1553 = vadd.f32 %v1539, %v1548
    %v1554 = vadd.f32 %v1540, %v1550
    %v1555 = vtanh.pop %v1553
    %v1556 = vtanh.pop %v1554
    %1559 = vrot.lane.b32.xlu0 %v1555, 127
    %v1560 = vpop.permute.xlu0 %1559
    %1561 = vrot.lane.b32.xlu0 %v1556, 127
    %v1562 = vpop.permute.xlu0 %1561
    %s1565 = scalar_lea.vmem %s3, 160
    %1566 = vst.msk [vmem:[%s1565] sm:$0xff] %vm230, %v1560
    %1567 = vst.msk [vmem:[%s1565 + $0x8] sm:$0x7f] %vm232, %v1562
    %s1568 = sld [smem:[#allocation3 + $0x25]]
    %v1569 = vstv %s1568
    %v1570 = vmul.f32 %v1569, %v84
    %v1571 = vmul.f32 %v1569, %v85
    %v1572 = vadd.f32 %v1168, %v1570
    %v1573 = vadd.f32 %v1168, %v1571
    %s1574 = sld [smem:[#allocation3 + $0x27]]
    %v1575 = vstv %s1574
    %v1576 = vmul.f32 %v1575, %v84
    %v1577 = vmul.f32 %v1575, %v85
    %1580 = vrot.lane.b32.xlu0 %v1576, 1
    %v1581 = vpop.permute.xlu0 %1580
    %1582 = vrot.lane.b32.xlu0 %v1577, 1
    %v1583 = vpop.permute.xlu0 %1582
    %v1586 = vadd.f32 %v1572, %v1581
    %v1587 = vadd.f32 %v1573, %v1583
    %s1588 = sld [smem:[#allocation3 + $0x2d]]
    %v1589 = vstv %s1588
    %v1590 = vmul.f32 %v1589, %v86
    %v1591 = vmul.f32 %v1589, %v87
    %v1592 = vadd.f32 %v1586, %v1590
    %v1593 = vadd.f32 %v1587, %v1591
    %s1594 = sld [smem:[#allocation3 + $0x2f]]
    %v1595 = vstv %s1594
    %v1596 = vmul.f32 %v1595, %v86
    %v1597 = vmul.f32 %v1595, %v87
    %1600 = vrot.lane.b32.xlu0 %v1596, 1
    %v1601 = vpop.permute.xlu0 %1600
    %1602 = vrot.lane.b32.xlu0 %v1597, 1
    %v1603 = vpop.permute.xlu0 %1602
    %v1606 = vadd.f32 %v1592, %v1601
    %v1607 = vadd.f32 %v1593, %v1603
    %s1608 = sld [smem:[#allocation3 + $0x65]]
    %v1609 = vstv %s1608
    %v1610 = vmul.f32 %v1609, %v89
    %v1611 = vmul.f32 %v1609, %v90
    %v1612 = vadd.f32 %v1606, %v1610
    %v1613 = vadd.f32 %v1607, %v1611
    %s1614 = sld [smem:[#allocation3 + $0x67]]
    %v1615 = vstv %s1614
    %v1616 = vmul.f32 %v1615, %v89
    %v1617 = vmul.f32 %v1615, %v90
    %1620 = vrot.lane.b32.xlu0 %v1616, 1
    %v1621 = vpop.permute.xlu0 %1620
    %1622 = vrot.lane.b32.xlu0 %v1617, 1
    %v1623 = vpop.permute.xlu0 %1622
    %v1626 = vadd.f32 %v1612, %v1621
    %v1627 = vadd.f32 %v1613, %v1623
    %s1628 = sld [smem:[#allocation3 + $0x6d]]
    %v1629 = vstv %s1628
    %v1630 = vmul.f32 %v1629, %v91
    %v1631 = vmul.f32 %v1629, %v92
    %v1632 = vadd.f32 %v1626, %v1630
    %v1633 = vadd.f32 %v1627, %v1631
    %s1634 = sld [smem:[#allocation3 + $0x6f]]
    %v1635 = vstv %s1634
    %v1636 = vmul.f32 %v1635, %v91
    %v1637 = vmul.f32 %v1635, %v92
    %1640 = vrot.lane.b32.xlu0 %v1636, 1
    %v1641 = vpop.permute.xlu0 %1640
    %1642 = vrot.lane.b32.xlu0 %v1637, 1
    %v1643 = vpop.permute.xlu0 %1642
    %v1646 = vadd.f32 %v1632, %v1641
    %v1647 = vadd.f32 %v1633, %v1643
    %s1648 = sld [smem:[#allocation3 + $0xa5]]
    %v1649 = vstv %s1648
    %v1650 = vmul.f32 %v1649, %v94
    %v1651 = vmul.f32 %v1649, %v95
    %v1652 = vadd.f32 %v1646, %v1650
    %v1653 = vadd.f32 %v1647, %v1651
    %s1654 = sld [smem:[#allocation3 + $0xa7]]
    %v1655 = vstv %s1654
    %v1656 = vmul.f32 %v1655, %v94
    %v1657 = vmul.f32 %v1655, %v95
    %1660 = vrot.lane.b32.xlu0 %v1656, 1
    %v1661 = vpop.permute.xlu0 %1660
    %1662 = vrot.lane.b32.xlu0 %v1657, 1
    %v1663 = vpop.permute.xlu0 %1662
    %v1666 = vadd.f32 %v1652, %v1661
    %v1667 = vadd.f32 %v1653, %v1663
    %s1668 = sld [smem:[#allocation3 + $0xad]]
    %v1669 = vstv %s1668
    %v1670 = vmul.f32 %v1669, %v96
    %v1671 = vmul.f32 %v1669, %v97
    %v1672 = vadd.f32 %v1666, %v1670
    %v1673 = vadd.f32 %v1667, %v1671
    %s1674 = sld [smem:[#allocation3 + $0xaf]]
    %v1675 = vstv %s1674
    %v1676 = vmul.f32 %v1675, %v96
    %v1677 = vmul.f32 %v1675, %v97
    %1680 = vrot.lane.b32.xlu0 %v1676, 1
    %v1681 = vpop.permute.xlu0 %1680
    %1682 = vrot.lane.b32.xlu0 %v1677, 1
    %v1683 = vpop.permute.xlu0 %1682
    %v1686 = vadd.f32 %v1672, %v1681
    %v1687 = vadd.f32 %v1673, %v1683
    %v1688 = vtanh.pop %v1686
    %v1689 = vtanh.pop %v1687
    %1692 = vrot.lane.b32.xlu0 %v1688, 127
    %v1693 = vpop.permute.xlu0 %1692
    %1694 = vrot.lane.b32.xlu0 %v1689, 127
    %v1695 = vpop.permute.xlu0 %1694
    %s1698 = scalar_lea.vmem %s3, 176
    %1699 = vst.msk [vmem:[%s1698] sm:$0xff] %vm230, %v1693
    %1700 = vst.msk [vmem:[%s1698 + $0x8] sm:$0x7f] %vm232, %v1695
    %s1701 = sld [smem:[#allocation5 + $0x3]]
    %v1702 = vstv %s1701
    %s1703 = sld [smem:[#allocation3 + $0x30]]
    %v1704 = vstv %s1703
    %v1705 = vmul.f32 %v1704, %v84
    %v1706 = vmul.f32 %v1704, %v85
    %v1707 = vadd.f32 %v1702, %v1705
    %v1708 = vadd.f32 %v1702, %v1706
    %s1709 = sld [smem:[#allocation3 + $0x32]]
    %v1710 = vstv %s1709
    %v1711 = vmul.f32 %v1710, %v84
    %v1712 = vmul.f32 %v1710, %v85
    %1715 = vrot.lane.b32.xlu0 %v1711, 1
    %v1716 = vpop.permute.xlu0 %1715
    %1717 = vrot.lane.b32.xlu0 %v1712, 1
    %v1718 = vpop.permute.xlu0 %1717
    %v1721 = vadd.f32 %v1707, %v1716
    %v1722 = vadd.f32 %v1708, %v1718
    %s1723 = sld [smem:[#allocation3 + $0x38]]
    %v1724 = vstv %s1723
    %v1725 = vmul.f32 %v1724, %v86
    %v1726 = vmul.f32 %v1724, %v87
    %v1727 = vadd.f32 %v1721, %v1725
    %v1728 = vadd.f32 %v1722, %v1726
    %s1729 = sld [smem:[#allocation3 + $0x3a]]
    %v1730 = vstv %s1729
    %v1731 = vmul.f32 %v1730, %v86
    %v1732 = vmul.f32 %v1730, %v87
    %1735 = vrot.lane.b32.xlu0 %v1731, 1
    %v1736 = vpop.permute.xlu0 %1735
    %1737 = vrot.lane.b32.xlu0 %v1732, 1
    %v1738 = vpop.permute.xlu0 %1737
    %v1741 = vadd.f32 %v1727, %v1736
    %v1742 = vadd.f32 %v1728, %v1738
    %s1743 = sld [smem:[#allocation3 + $0x70]]
    %v1744 = vstv %s1743
    %v1745 = vmul.f32 %v1744, %v89
    %v1746 = vmul.f32 %v1744, %v90
    %v1747 = vadd.f32 %v1741, %v1745
    %v1748 = vadd.f32 %v1742, %v1746
    %s1749 = sld [smem:[#allocation3 + $0x72]]
    %v1750 = vstv %s1749
    %v1751 = vmul.f32 %v1750, %v89
    %v1752 = vmul.f32 %v1750, %v90
    %1755 = vrot.lane.b32.xlu0 %v1751, 1
    %v1756 = vpop.permute.xlu0 %1755
    %1757 = vrot.lane.b32.xlu0 %v1752, 1
    %v1758 = vpop.permute.xlu0 %1757
    %v1761 = vadd.f32 %v1747, %v1756
    %v1762 = vadd.f32 %v1748, %v1758
    %s1763 = sld [smem:[#allocation3 + $0x78]]
    %v1764 = vstv %s1763
    %v1765 = vmul.f32 %v1764, %v91
    %v1766 = vmul.f32 %v1764, %v92
    %v1767 = vadd.f32 %v1761, %v1765
    %v1768 = vadd.f32 %v1762, %v1766
    %s1769 = sld [smem:[#allocation3 + $0x7a]]
    %v1770 = vstv %s1769
    %v1771 = vmul.f32 %v1770, %v91
    %v1772 = vmul.f32 %v1770, %v92
    %1775 = vrot.lane.b32.xlu0 %v1771, 1
    %v1776 = vpop.permute.xlu0 %1775
    %1777 = vrot.lane.b32.xlu0 %v1772, 1
    %v1778 = vpop.permute.xlu0 %1777
    %v1781 = vadd.f32 %v1767, %v1776
    %v1782 = vadd.f32 %v1768, %v1778
    %s1783 = sld [smem:[#allocation3 + $0xb0]]
    %v1784 = vstv %s1783
    %v1785 = vmul.f32 %v1784, %v94
    %v1786 = vmul.f32 %v1784, %v95
    %v1787 = vadd.f32 %v1781, %v1785
    %v1788 = vadd.f32 %v1782, %v1786
    %s1789 = sld [smem:[#allocation3 + $0xb2]]
    %v1790 = vstv %s1789
    %v1791 = vmul.f32 %v1790, %v94
    %v1792 = vmul.f32 %v1790, %v95
    %1795 = vrot.lane.b32.xlu0 %v1791, 1
    %v1796 = vpop.permute.xlu0 %1795
    %1797 = vrot.lane.b32.xlu0 %v1792, 1
    %v1798 = vpop.permute.xlu0 %1797
    %v1801 = vadd.f32 %v1787, %v1796
    %v1802 = vadd.f32 %v1788, %v1798
    %s1803 = sld [smem:[#allocation3 + $0xb8]]
    %v1804 = vstv %s1803
    %v1805 = vmul.f32 %v1804, %v96
    %v1806 = vmul.f32 %v1804, %v97
    %v1807 = vadd.f32 %v1801, %v1805
    %v1808 = vadd.f32 %v1802, %v1806
    %s1809 = sld [smem:[#allocation3 + $0xba]]
    %v1810 = vstv %s1809
    %v1811 = vmul.f32 %v1810, %v96
    %v1812 = vmul.f32 %v1810, %v97
    %1815 = vrot.lane.b32.xlu0 %v1811, 1
    %v1816 = vpop.permute.xlu0 %1815
    %1817 = vrot.lane.b32.xlu0 %v1812, 1
    %v1818 = vpop.permute.xlu0 %1817
    %v1821 = vadd.f32 %v1807, %v1816
    %v1822 = vadd.f32 %v1808, %v1818
    %v1823 = vtanh.pop %v1821
    %v1824 = vtanh.pop %v1822
    %1827 = vrot.lane.b32.xlu0 %v1823, 127
    %v1828 = vpop.permute.xlu0 %1827
    %1829 = vrot.lane.b32.xlu0 %v1824, 127
    %v1830 = vpop.permute.xlu0 %1829
    %s1833 = scalar_lea.vmem %s3, 192
    %1834 = vst.msk [vmem:[%s1833] sm:$0xff] %vm230, %v1828
    %1835 = vst.msk [vmem:[%s1833 + $0x8] sm:$0x7f] %vm232, %v1830
    %s1836 = sld [smem:[#allocation3 + $0x31]]
    %v1837 = vstv %s1836
    %v1838 = vmul.f32 %v1837, %v84
    %v1839 = vmul.f32 %v1837, %v85
    %v1840 = vadd.f32 %v1702, %v1838
    %v1841 = vadd.f32 %v1702, %v1839
    %s1842 = sld [smem:[#allocation3 + $0x33]]
    %v1843 = vstv %s1842
    %v1844 = vmul.f32 %v1843, %v84
    %v1845 = vmul.f32 %v1843, %v85
    %1848 = vrot.lane.b32.xlu0 %v1844, 1
    %v1849 = vpop.permute.xlu0 %1848
    %1850 = vrot.lane.b32.xlu0 %v1845, 1
    %v1851 = vpop.permute.xlu0 %1850
    %v1854 = vadd.f32 %v1840, %v1849
    %v1855 = vadd.f32 %v1841, %v1851
    %s1856 = sld [smem:[#allocation3 + $0x39]]
    %v1857 = vstv %s1856
    %v1858 = vmul.f32 %v1857, %v86
    %v1859 = vmul.f32 %v1857, %v87
    %v1860 = vadd.f32 %v1854, %v1858
    %v1861 = vadd.f32 %v1855, %v1859
    %s1862 = sld [smem:[#allocation3 + $0x3b]]
    %v1863 = vstv %s1862
    %v1864 = vmul.f32 %v1863, %v86
    %v1865 = vmul.f32 %v1863, %v87
    %1868 = vrot.lane.b32.xlu0 %v1864, 1
    %v1869 = vpop.permute.xlu0 %1868
    %1870 = vrot.lane.b32.xlu0 %v1865, 1
    %v1871 = vpop.permute.xlu0 %1870
    %v1874 = vadd.f32 %v1860, %v1869
    %v1875 = vadd.f32 %v1861, %v1871
    %s1876 = sld [smem:[#allocation3 + $0x71]]
    %v1877 = vstv %s1876
    %v1878 = vmul.f32 %v1877, %v89
    %v1879 = vmul.f32 %v1877, %v90
    %v1880 = vadd.f32 %v1874, %v1878
    %v1881 = vadd.f32 %v1875, %v1879
    %s1882 = sld [smem:[#allocation3 + $0x73]]
    %v1883 = vstv %s1882
    %v1884 = vmul.f32 %v1883, %v89
    %v1885 = vmul.f32 %v1883, %v90
    %1888 = vrot.lane.b32.xlu0 %v1884, 1
    %v1889 = vpop.permute.xlu0 %1888
    %1890 = vrot.lane.b32.xlu0 %v1885, 1
    %v1891 = vpop.permute.xlu0 %1890
    %v1894 = vadd.f32 %v1880, %v1889
    %v1895 = vadd.f32 %v1881, %v1891
    %s1896 = sld [smem:[#allocation3 + $0x79]]
    %v1897 = vstv %s1896
    %v1898 = vmul.f32 %v1897, %v91
    %v1899 = vmul.f32 %v1897, %v92
    %v1900 = vadd.f32 %v1894, %v1898
    %v1901 = vadd.f32 %v1895, %v1899
    %s1902 = sld [smem:[#allocation3 + $0x7b]]
    %v1903 = vstv %s1902
    %v1904 = vmul.f32 %v1903, %v91
    %v1905 = vmul.f32 %v1903, %v92
    %1908 = vrot.lane.b32.xlu0 %v1904, 1
    %v1909 = vpop.permute.xlu0 %1908
    %1910 = vrot.lane.b32.xlu0 %v1905, 1
    %v1911 = vpop.permute.xlu0 %1910
    %v1914 = vadd.f32 %v1900, %v1909
    %v1915 = vadd.f32 %v1901, %v1911
    %s1916 = sld [smem:[#allocation3 + $0xb1]]
    %v1917 = vstv %s1916
    %v1918 = vmul.f32 %v1917, %v94
    %v1919 = vmul.f32 %v1917, %v95
    %v1920 = vadd.f32 %v1914, %v1918
    %v1921 = vadd.f32 %v1915, %v1919
    %s1922 = sld [smem:[#allocation3 + $0xb3]]
    %v1923 = vstv %s1922
    %v1924 = vmul.f32 %v1923, %v94
    %v1925 = vmul.f32 %v1923, %v95
    %1928 = vrot.lane.b32.xlu0 %v1924, 1
    %v1929 = vpop.permute.xlu0 %1928
    %1930 = vrot.lane.b32.xlu0 %v1925, 1
    %v1931 = vpop.permute.xlu0 %1930
    %v1934 = vadd.f32 %v1920, %v1929
    %v1935 = vadd.f32 %v1921, %v1931
    %s1936 = sld [smem:[#allocation3 + $0xb9]]
    %v1937 = vstv %s1936
    %v1938 = vmul.f32 %v1937, %v96
    %v1939 = vmul.f32 %v1937, %v97
    %v1940 = vadd.f32 %v1934, %v1938
    %v1941 = vadd.f32 %v1935, %v1939
    %s1942 = sld [smem:[#allocation3 + $0xbb]]
    %v1943 = vstv %s1942
    %v1944 = vmul.f32 %v1943, %v96
    %v1945 = vmul.f32 %v1943, %v97
    %1948 = vrot.lane.b32.xlu0 %v1944, 1
    %v1949 = vpop.permute.xlu0 %1948
    %1950 = vrot.lane.b32.xlu0 %v1945, 1
    %v1951 = vpop.permute.xlu0 %1950
    %v1954 = vadd.f32 %v1940, %v1949
    %v1955 = vadd.f32 %v1941, %v1951
    %v1956 = vtanh.pop %v1954
    %v1957 = vtanh.pop %v1955
    %1960 = vrot.lane.b32.xlu0 %v1956, 127
    %v1961 = vpop.permute.xlu0 %1960
    %1962 = vrot.lane.b32.xlu0 %v1957, 127
    %v1963 = vpop.permute.xlu0 %1962
    %s1966 = scalar_lea.vmem %s3, 208
    %1967 = vst.msk [vmem:[%s1966] sm:$0xff] %vm230, %v1961
    %1968 = vst.msk [vmem:[%s1966 + $0x8] sm:$0x7f] %vm232, %v1963
    %s1969 = sld [smem:[#allocation3 + $0x34]]
    %v1970 = vstv %s1969
    %v1971 = vmul.f32 %v1970, %v84
    %v1972 = vmul.f32 %v1970, %v85
    %v1973 = vadd.f32 %v1702, %v1971
    %v1974 = vadd.f32 %v1702, %v1972
    %s1975 = sld [smem:[#allocation3 + $0x36]]
    %v1976 = vstv %s1975
    %v1977 = vmul.f32 %v1976, %v84
    %v1978 = vmul.f32 %v1976, %v85
    %1981 = vrot.lane.b32.xlu0 %v1977, 1
    %v1982 = vpop.permute.xlu0 %1981
    %1983 = vrot.lane.b32.xlu0 %v1978, 1
    %v1984 = vpop.permute.xlu0 %1983
    %v1987 = vadd.f32 %v1973, %v1982
    %v1988 = vadd.f32 %v1974, %v1984
    %s1989 = sld [smem:[#allocation3 + $0x3c]]
    %v1990 = vstv %s1989
    %v1991 = vmul.f32 %v1990, %v86
    %v1992 = vmul.f32 %v1990, %v87
    %v1993 = vadd.f32 %v1987, %v1991
    %v1994 = vadd.f32 %v1988, %v1992
    %s1995 = sld [smem:[#allocation3 + $0x3e]]
    %v1996 = vstv %s1995
    %v1997 = vmul.f32 %v1996, %v86
    %v1998 = vmul.f32 %v1996, %v87
    %2001 = vrot.lane.b32.xlu0 %v1997, 1
    %v2002 = vpop.permute.xlu0 %2001
    %2003 = vrot.lane.b32.xlu0 %v1998, 1
    %v2004 = vpop.permute.xlu0 %2003
    %v2007 = vadd.f32 %v1993, %v2002
    %v2008 = vadd.f32 %v1994, %v2004
    %s2009 = sld [smem:[#allocation3 + $0x74]]
    %v2010 = vstv %s2009
    %v2011 = vmul.f32 %v2010, %v89
    %v2012 = vmul.f32 %v2010, %v90
    %v2013 = vadd.f32 %v2007, %v2011
    %v2014 = vadd.f32 %v2008, %v2012
    %s2015 = sld [smem:[#allocation3 + $0x76]]
    %v2016 = vstv %s2015
    %v2017 = vmul.f32 %v2016, %v89
    %v2018 = vmul.f32 %v2016, %v90
    %2021 = vrot.lane.b32.xlu0 %v2017, 1
    %v2022 = vpop.permute.xlu0 %2021
    %2023 = vrot.lane.b32.xlu0 %v2018, 1
    %v2024 = vpop.permute.xlu0 %2023
    %v2027 = vadd.f32 %v2013, %v2022
    %v2028 = vadd.f32 %v2014, %v2024
    %s2029 = sld [smem:[#allocation3 + $0x7c]]
    %v2030 = vstv %s2029
    %v2031 = vmul.f32 %v2030, %v91
    %v2032 = vmul.f32 %v2030, %v92
    %v2033 = vadd.f32 %v2027, %v2031
    %v2034 = vadd.f32 %v2028, %v2032
    %s2035 = sld [smem:[#allocation3 + $0x7e]]
    %v2036 = vstv %s2035
    %v2037 = vmul.f32 %v2036, %v91
    %v2038 = vmul.f32 %v2036, %v92
    %2041 = vrot.lane.b32.xlu0 %v2037, 1
    %v2042 = vpop.permute.xlu0 %2041
    %2043 = vrot.lane.b32.xlu0 %v2038, 1
    %v2044 = vpop.permute.xlu0 %2043
    %v2047 = vadd.f32 %v2033, %v2042
    %v2048 = vadd.f32 %v2034, %v2044
    %s2049 = sld [smem:[#allocation3 + $0xb4]]
    %v2050 = vstv %s2049
    %v2051 = vmul.f32 %v2050, %v94
    %v2052 = vmul.f32 %v2050, %v95
    %v2053 = vadd.f32 %v2047, %v2051
    %v2054 = vadd.f32 %v2048, %v2052
    %s2055 = sld [smem:[#allocation3 + $0xb6]]
    %v2056 = vstv %s2055
    %v2057 = vmul.f32 %v2056, %v94
    %v2058 = vmul.f32 %v2056, %v95
    %2061 = vrot.lane.b32.xlu0 %v2057, 1
    %v2062 = vpop.permute.xlu0 %2061
    %2063 = vrot.lane.b32.xlu0 %v2058, 1
    %v2064 = vpop.permute.xlu0 %2063
    %v2067 = vadd.f32 %v2053, %v2062
    %v2068 = vadd.f32 %v2054, %v2064
    %s2069 = sld [smem:[#allocation3 + $0xbc]]
    %v2070 = vstv %s2069
    %v2071 = vmul.f32 %v2070, %v96
    %v2072 = vmul.f32 %v2070, %v97
    %v2073 = vadd.f32 %v2067, %v2071
    %v2074 = vadd.f32 %v2068, %v2072
    %s2075 = sld [smem:[#allocation3 + $0xbe]]
    %v2076 = vstv %s2075
    %v2077 = vmul.f32 %v2076, %v96
    %v2078 = vmul.f32 %v2076, %v97
    %2081 = vrot.lane.b32.xlu0 %v2077, 1
    %v2082 = vpop.permute.xlu0 %2081
    %2083 = vrot.lane.b32.xlu0 %v2078, 1
    %v2084 = vpop.permute.xlu0 %2083
    %v2087 = vadd.f32 %v2073, %v2082
    %v2088 = vadd.f32 %v2074, %v2084
    %v2089 = vtanh.pop %v2087
    %v2090 = vtanh.pop %v2088
    %2093 = vrot.lane.b32.xlu0 %v2089, 127
    %v2094 = vpop.permute.xlu0 %2093
    %2095 = vrot.lane.b32.xlu0 %v2090, 127
    %v2096 = vpop.permute.xlu0 %2095
    %s2099 = scalar_lea.vmem %s3, 224
    %2100 = vst.msk [vmem:[%s2099] sm:$0xff] %vm230, %v2094
    %2101 = vst.msk [vmem:[%s2099 + $0x8] sm:$0x7f] %vm232, %v2096
    %s2102 = sld [smem:[#allocation3 + $0x35]]
    %v2103 = vstv %s2102
    %v2104 = vmul.f32 %v2103, %v84
    %v2105 = vmul.f32 %v2103, %v85
    %v2106 = vadd.f32 %v1702, %v2104
    %v2107 = vadd.f32 %v1702, %v2105
    %s2108 = sld [smem:[#allocation3 + $0x37]]
    %v2109 = vstv %s2108
    %v2110 = vmul.f32 %v2109, %v84
    %v2111 = vmul.f32 %v2109, %v85
    %2114 = vrot.lane.b32.xlu0 %v2110, 1
    %v2115 = vpop.permute.xlu0 %2114
    %2116 = vrot.lane.b32.xlu0 %v2111, 1
    %v2117 = vpop.permute.xlu0 %2116
    %v2120 = vadd.f32 %v2106, %v2115
    %v2121 = vadd.f32 %v2107, %v2117
    %s2122 = sld [smem:[#allocation3 + $0x3d]]
    %v2123 = vstv %s2122
    %v2124 = vmul.f32 %v2123, %v86
    %v2125 = vmul.f32 %v2123, %v87
    %v2126 = vadd.f32 %v2120, %v2124
    %v2127 = vadd.f32 %v2121, %v2125
    %s2128 = sld [smem:[#allocation3 + $0x3f]]
    %v2129 = vstv %s2128
    %v2130 = vmul.f32 %v2129, %v86
    %v2131 = vmul.f32 %v2129, %v87
    %2134 = vrot.lane.b32.xlu0 %v2130, 1
    %v2135 = vpop.permute.xlu0 %2134
    %2136 = vrot.lane.b32.xlu0 %v2131, 1
    %v2137 = vpop.permute.xlu0 %2136
    %v2140 = vadd.f32 %v2126, %v2135
    %v2141 = vadd.f32 %v2127, %v2137
    %s2142 = sld [smem:[#allocation3 + $0x75]]
    %v2143 = vstv %s2142
    %v2144 = vmul.f32 %v2143, %v89
    %v2145 = vmul.f32 %v2143, %v90
    %v2146 = vadd.f32 %v2140, %v2144
    %v2147 = vadd.f32 %v2141, %v2145
    %s2148 = sld [smem:[#allocation3 + $0x77]]
    %v2149 = vstv %s2148
    %v2150 = vmul.f32 %v2149, %v89
    %v2151 = vmul.f32 %v2149, %v90
    %2154 = vrot.lane.b32.xlu0 %v2150, 1
    %v2155 = vpop.permute.xlu0 %2154
    %2156 = vrot.lane.b32.xlu0 %v2151, 1
    %v2157 = vpop.permute.xlu0 %2156
    %v2160 = vadd.f32 %v2146, %v2155
    %v2161 = vadd.f32 %v2147, %v2157
    %s2162 = sld [smem:[#allocation3 + $0x7d]]
    %v2163 = vstv %s2162
    %v2164 = vmul.f32 %v2163, %v91
    %v2165 = vmul.f32 %v2163, %v92
    %v2166 = vadd.f32 %v2160, %v2164
    %v2167 = vadd.f32 %v2161, %v2165
    %s2168 = sld [smem:[#allocation3 + $0x7f]]
    %v2169 = vstv %s2168
    %v2170 = vmul.f32 %v2169, %v91
    %v2171 = vmul.f32 %v2169, %v92
    %2174 = vrot.lane.b32.xlu0 %v2170, 1
    %v2175 = vpop.permute.xlu0 %2174
    %2176 = vrot.lane.b32.xlu0 %v2171, 1
    %v2177 = vpop.permute.xlu0 %2176
    %v2180 = vadd.f32 %v2166, %v2175
    %v2181 = vadd.f32 %v2167, %v2177
    %s2182 = sld [smem:[#allocation3 + $0xb5]]
    %v2183 = vstv %s2182
    %v2184 = vmul.f32 %v2183, %v94
    %v2185 = vmul.f32 %v2183, %v95
    %v2186 = vadd.f32 %v2180, %v2184
    %v2187 = vadd.f32 %v2181, %v2185
    %s2188 = sld [smem:[#allocation3 + $0xb7]]
    %v2189 = vstv %s2188
    %v2190 = vmul.f32 %v2189, %v94
    %v2191 = vmul.f32 %v2189, %v95
    %2194 = vrot.lane.b32.xlu0 %v2190, 1
    %v2195 = vpop.permute.xlu0 %2194
    %2196 = vrot.lane.b32.xlu0 %v2191, 1
    %v2197 = vpop.permute.xlu0 %2196
    %v2200 = vadd.f32 %v2186, %v2195
    %v2201 = vadd.f32 %v2187, %v2197
    %s2202 = sld [smem:[#allocation3 + $0xbd]]
    %v2203 = vstv %s2202
    %v2204 = vmul.f32 %v2203, %v96
    %v2205 = vmul.f32 %v2203, %v97
    %v2206 = vadd.f32 %v2200, %v2204
    %v2207 = vadd.f32 %v2201, %v2205
    %s2208 = sld [smem:[#allocation3 + $0xbf]]
    %v2209 = vstv %s2208
    %v2210 = vmul.f32 %v2209, %v96
    %v2211 = vmul.f32 %v2209, %v97
    %2214 = vrot.lane.b32.xlu0 %v2210, 1
    %v2215 = vpop.permute.xlu0 %2214
    %2216 = vrot.lane.b32.xlu0 %v2211, 1
    %v2217 = vpop.permute.xlu0 %2216
    %v2220 = vadd.f32 %v2206, %v2215
    %v2221 = vadd.f32 %v2207, %v2217
    %v2222 = vtanh.pop %v2220
    %v2223 = vtanh.pop %v2221
    %2226 = vrot.lane.b32.xlu0 %v2222, 127
    %v2227 = vpop.permute.xlu0 %2226
    %2228 = vrot.lane.b32.xlu0 %v2223, 127
    %v2229 = vpop.permute.xlu0 %2228
    %s2232 = scalar_lea.vmem %s3, 240
    %2233 = vst.msk [vmem:[%s2232] sm:$0xff] %vm230, %v2227
    %2234 = vst.msk [vmem:[%s2232 + $0x8] sm:$0x7f] %vm232, %v2229
    // Predicated region
    $region22: #{conv_transpose_tanh.1} parent=1 // pred_check
      _
    $region23: #{conv_transpose_tanh.1} parent=1 // pred_check_branch
      %2236 = sbr.rel (0) target = $region25
    $region24: #{conv_transpose_tanh.1} parent=1 // pred_region
      _
    $region25: #{conv_transpose_tanh.1} parent=1 // pred_fallthru
      _
    // Predicated region
    $region26: #{conv_transpose_tanh.1} parent=1 // pred_check
      _
    $region27: #{conv_transpose_tanh.1} parent=1 // pred_check_branch
      %2238 = sbr.rel (0) target = $region29
    $region28: #{conv_transpose_tanh.1} parent=1 // pred_region
      _
    $region29: #{conv_transpose_tanh.1} parent=1 // pred_fallthru
      _
    %2239 = vsyncpa [#allocation4], 1
    %2240 = vsyncpa [#allocation6], 1

</llo_original>
